<compile_context>
chip_gen: v7x
topology: tpu7x:2x2x1
jax: 0.10.0
libtpu: 0.0.40
codegen_flags: <defaults>
</compile_context>

<pallas_src>
import math

import jax
import jax.numpy as jnp
from jax.experimental import pallas as pl
from jax.experimental.pallas import tpu as pltpu  # noqa: F401  (kept for parity with template)

# ----------------------------- configuration --------------------------------
B = 2            # batch
C = 3            # image channels
H = W = 16       # image spatial size (stand-in for 224)
P_SZ = 4         # patch size (stand-in for 16)
NP = (H // P_SZ) * (W // P_SZ)          # 16 patches
PD = C * P_SZ * P_SZ                    # 48  raw patch dim
PDp = 128                               # zero-padded patch dim (lane-dense, == DV)
DV = 128                                # vit_dim   (stand-in for 768)
DB = 256                                # blip_dim  (stand-in for 2048)
DV_FF = 256                             # ViT MLP hidden
DB_FF = 512                             # BLIP FFN hidden
SEQ = NP + 1                            # ViT sequence length incl. CLS
VW = 512                                # packed f32 vector-slab width (max row width)

assert PDp == DV, "patch-projection rows are packed into the DV-row weight slab"

# ---- packed bf16 weight-slab column layout ----
# w_dv slab (DV = PDp = 128 rows): [ wp|wbe fused patch proj | Wq/sqrt(DV) | Wk | Wv | Wo | W1 ]
WP_LO,  WP_HI  = 0, DV + DB                    # 0    .. 384
QKV_LO, QKV_HI = WP_HI, WP_HI + 3 * DV         # 384  .. 768
WO_LO,  WO_HI  = QKV_HI, QKV_HI + DV           # 768  .. 896
W1_LO,  W1_HI  = WO_HI, WO_HI + DV_FF          # 896  .. 1152
WDV_COLS = W1_HI
# w_db slab (DB = 256 rows): [ bWk | bWv | bWo | bF1 | vit W2 ]
KV_LO,  KV_HI  = 0, 2 * DB                     # 0    .. 512
BWO_LO, BWO_HI = KV_HI, KV_HI + DB             # 512  .. 768
BF1_LO, BF1_HI = BWO_HI, BWO_HI + DB_FF        # 768  .. 1280
W2_LO,  W2_HI  = BF1_HI, BF1_HI + DV           # 1280 .. 1408
WDB_COLS = W2_HI

# ---- packed f32 vector-slab row layout (width VW, each row zero-padded) ----
(V_BP, V_LN1G, V_LN1B, V_LN2G, V_LN2B, V_B2, V_LN3G, V_LN3B, V_CLS,
 V_BBE, V_QRY, V_QS, V_LNG, V_LNB, V_B1, V_BB2, V_LNFG, V_LNFB, V_BB1) = range(19)
V_POS1 = 24                              # pos[1:] starts on an 8-sublane boundary
V_ROWS = V_POS1 + NP                     # 40 rows (multiple of 8)


# ------------------------------- kernel helpers ------------------------------
def _ln(x, g, b, eps):
    mu = jnp.mean(x, axis=-1, keepdims=True)
    var = jnp.mean(jnp.square(x - mu), axis=-1, keepdims=True)
    return (x - mu) * jax.lax.rsqrt(var + eps) * g + b


# ---------------------------------- kernel -----------------------------------
def feature_extractor_kernel(patches_ref, wdv_ref, wdb_ref, wffn2_ref, vecs_ref, out_ref):
    f32 = jnp.float32
    bf16 = jnp.bfloat16
    b = patches_ref.shape[0] // NP          # static batch size

    # ---- hoist packed bias / LN / positional vectors once (all (rows, D) f32) ----
    bp     = vecs_ref[V_BP:V_BP + 1, :DV]
    ln1g   = vecs_ref[V_LN1G:V_LN1G + 1, :DV]
    ln1b   = vecs_ref[V_LN1B:V_LN1B + 1, :DV]
    ln2g   = vecs_ref[V_LN2G:V_LN2G + 1, :DV]
    ln2b   = vecs_ref[V_LN2B:V_LN2B + 1, :DV]
    b2     = vecs_ref[V_B2:V_B2 + 1, :DV]
    ln3g   = vecs_ref[V_LN3G:V_LN3G + 1, :DV]
    ln3b   = vecs_ref[V_LN3B:V_LN3B + 1, :DV]
    cls_in = vecs_ref[V_CLS:V_CLS + 1, :DV]             # cls + pos[0]
    pos1   = vecs_ref[V_POS1:V_POS1 + NP, :DV]          # pos[1:], (NP, DV)

    bbe    = vecs_ref[V_BBE:V_BBE + 1, :DB]
    qry    = vecs_ref[V_QRY:V_QRY + 1, :DB]
    q_s    = vecs_ref[V_QS:V_QS + 1, :DB]               # qry @ bWq / sqrt(DB), folded offline
    blng   = vecs_ref[V_LNG:V_LNG + 1, :DB]
    blnb   = vecs_ref[V_LNB:V_LNB + 1, :DB]
    b1     = vecs_ref[V_B1:V_B1 + 1, :DV_FF]            # sliced at its true width
    bb2    = vecs_ref[V_BB2:V_BB2 + 1, :DB]
    blnfg  = vecs_ref[V_LNFG:V_LNFG + 1, :DB]
    blnfb  = vecs_ref[V_LNFB:V_LNFB + 1, :DB]
    bb1    = vecs_ref[V_BB1:V_BB1 + 1, :DB_FF]

    # ---- fused patch projection for both branches (one lane-dense matmul) ----
    pe = jnp.dot(patches_ref[...], wdv_ref[:, WP_LO:WP_HI],
                 preferred_element_type=f32)             # (b*NP, DV+DB)
    x_emb = pe[:, :DV] + bp                              # ViT patch embed
    xb    = pe[:, DV:] + bbe                             # BLIP patch proj

    # ------------------------------ ViT branch -------------------------------
    # positional add via broadcast on a (b, NP, DV) view (no tiled concatenate)
    patch_tok = (x_emb.reshape(b, NP, DV) + pos1).reshape(b * NP, DV)

    h_p = _ln(patch_tok, ln1g, ln1b, 1e-6)               # (b*NP, DV)
    h_c = _ln(cls_in, ln1g, ln1b, 1e-6)                  # (1, DV)

    wqkv = wdv_ref[:, QKV_LO:QKV_HI]                     # (DV, 3*DV) bf16
    qkv_p = jnp.dot(h_p.astype(bf16), wqkv, preferred_element_type=f32)   # (b*NP, 3DV)
    qkv_c = jnp.dot(h_c.astype(bf16), wqkv, preferred_element_type=f32)   # (1, 3DV)

    q_cls = qkv_c[:, 0:DV]                               # 1/sqrt(DV) folded into Wq
    k_cls = qkv_c[:, DV:2 * DV]
    v_cls = qkv_c[:, 2 * DV:3 * DV]
    k_p = qkv_p[:, DV:2 * DV].reshape(b, NP, DV)         # leading-dim split, no relayout
    v_p = qkv_p[:, 2 * DV:3 * DV].reshape(b, NP, DV)

    # Only the CLS attention row is needed downstream; softmax over the 1+NP keys
    # keeps the NP-patch block tile-aligned and folds the CLS key/value in as one
    # scalar score plus one rank-1 value add (no 17-row concat, no k.T transpose).
    q3 = jnp.broadcast_to(q_cls, (b, 1, DV))
    s_p = jnp.einsum('bqd,bkd->bqk', q3, k_p,
                     preferred_element_type=f32)         # (b, 1, NP)
    s_c = jnp.sum(q_cls * k_cls, axis=-1, keepdims=True)  # (1, 1) CLS self-score
    m = jnp.maximum(jnp.max(s_p, axis=-1, keepdims=True), s_c)   # (b, 1, 1)
    e_p = jnp.exp(s_p - m)                                # (b, 1, NP)
    e_c = jnp.exp(s_c - m)                                # (b, 1, 1)
    inv = pl.reciprocal(jnp.sum(e_p, axis=-1, keepdims=True) + e_c, approx=True)
    attn3 = jnp.einsum('bqk,bkd->bqd', e_p * inv, v_p,
                       preferred_element_type=f32)        # (b, 1, DV)
    attn_cls = (attn3 + (e_c * inv) * v_cls.reshape(1, 1, DV)).reshape(b, DV)

    cls1 = cls_in + jnp.dot(attn_cls.astype(bf16), wdv_ref[:, WO_LO:WO_HI],
                            preferred_element_type=f32)   # (b, DV) residual

    h2 = _ln(cls1, ln2g, ln2b, 1e-6)
    # TODO(synk): HF ViT uses exact (erf) GELU; tanh approximation kept for
    # guaranteed Mosaic lowering.
    mlp_h = jax.nn.gelu(
        jnp.dot(h2.astype(bf16), wdv_ref[:, W1_LO:W1_HI],
                preferred_element_type=f32) + b1)          # (b, DV_FF)
    cls2 = cls1 + jnp.dot(mlp_h.astype(bf16), wdb_ref[:, W2_LO:W2_HI],
                          preferred_element_type=f32) + b2
    vit_rep = _ln(cls2, ln3g, ln3b, 1e-6)                  # (b, DV)

    # ------------------------------ BLIP branch ------------------------------
    kv = jnp.dot(xb.astype(bf16), wdb_ref[:, KV_LO:KV_HI],
                 preferred_element_type=f32)               # (b*NP, 2*DB)
    k_b = kv[:, :DB].reshape(b, NP, DB)
    v_b = kv[:, DB:].reshape(b, NP, DB)

    q3b = jnp.broadcast_to(q_s, (b, 1, DB))
    s_b = jnp.einsum('bqd,bkd->bqk', q3b, k_b,
                     preferred_element_type=f32)           # (b, 1, NP)
    mb = jnp.max(s_b, axis=-1, keepdims=True)
    eb = jnp.exp(s_b - mb)
    invb = pl.reciprocal(jnp.sum(eb, axis=-1, keepdims=True), approx=True)
    ctx = jnp.einsum('bqk,bkd->bqd', eb * invb, v_b,
                     preferred_element_type=f32).reshape(b, DB)

    dec = qry + jnp.dot(ctx.astype(bf16), wdb_ref[:, BWO_LO:BWO_HI],
                        preferred_element_type=f32)        # (b, DB)
    hd = _ln(dec, blng, blnb, 1e-5)
    ffn_h = jnp.maximum(
        jnp.dot(hd.astype(bf16), wdb_ref[:, BF1_LO:BF1_HI],
                preferred_element_type=f32) + bb1, 0.0)    # (b, DB_FF)
    dec = dec + jnp.dot(ffn_h.astype(bf16), wffn2_ref[...],
                        preferred_element_type=f32) + bb2
    blip_rep = _ln(dec, blnfg, blnfb, 1e-5)                # (b, DB)

    # lane-aligned stores, no in-kernel concat: [blip | vit] (torch.cat order)
    out_ref[:, 0:DB] = blip_rep
    out_ref[:, DB:DB + DV] = vit_rep


# -------------------------------- parameters ---------------------------------
def make_params():
    keys = jax.random.split(jax.random.PRNGKey(42), 17)
    n = lambda i, shape, s=0.02: (s * jax.random.normal(keys[i], shape)).astype(jnp.float32)
    ones = lambda shape: jnp.ones(shape, jnp.float32)
    zeros = lambda shape: jnp.zeros(shape, jnp.float32)

    # ---- raw (unfused) synthetic stand-in weights ----
    wp, bp = n(0, (PD, DV)), zeros((1, DV))
    cls, pos = n(1, (1, DV)), n(2, (SEQ, DV))
    ln1g, ln1b = ones((1, DV)), zeros((1, DV))
    wq, wk, wv, wo = n(3, (DV, DV)), n(4, (DV, DV)), n(5, (DV, DV)), n(6, (DV, DV))
    ln2g, ln2b = ones((1, DV)), zeros((1, DV))
    w1, b1 = n(7, (DV, DV_FF)), zeros((1, DV_FF))
    w2, b2 = n(8, (DV_FF, DV)), zeros((1, DV))
    ln3g, ln3b = ones((1, DV)), zeros((1, DV))

    wbe, bbe = n(9, (PD, DB)), zeros((1, DB))
    qry = n(10, (1, DB))
    bwq, bwk, bwv, bwo = n(11, (DB, DB)), n(12, (DB, DB)), n(13, (DB, DB)), n(14, (DB, DB))
    blng, blnb = ones((1, DB)), zeros((1, DB))
    bf1, bb1 = n(15, (DB, DB_FF)), zeros((1, DB_FF))
    bf2, bb2 = n(16, (DB_FF, DB)), zeros((1, DB))
    blnfg, blnfb = ones((1, DB)), zeros((1, DB))

    bf16 = jnp.bfloat16

    # fused patch projection [wp | wbe], rows zero-padded PD -> PDp (= DV)
    wpatch = jnp.zeros((PDp, DV + DB), jnp.float32)
    wpatch = wpatch.at[:PD, :DV].set(wp).at[:PD, DV:].set(wbe)

    # DV-row bf16 slab: [patch proj | Wq/sqrt(DV) | Wk | Wv | Wo | W1]
    w_dv = jnp.concatenate(
        [wpatch, wq / math.sqrt(DV), wk, wv, wo, w1], axis=1).astype(bf16)
    # DB-row bf16 slab: [bWk | bWv | bWo | bF1 | vit W2]
    w_db = jnp.concatenate([bwk, bwv, bwo, bf1, w2], axis=1).astype(bf16)
    w_ffn2 = bf2.astype(bf16)

    # decoder query projection is input-independent -> fold offline (incl. scale)
    q_scaled = (qry @ bwq) / math.sqrt(DB)

    # single packed f32 vector slab (biases / LN params / positional embeddings),
    # every row zero-padded to width VW, row count padded to a multiple of 8.
    def row(v):
        return jnp.pad(v, ((0, 0), (0, VW - v.shape[1])))

    rows = [row(x) for x in
            (bp, ln1g, ln1b, ln2g, ln2b, b2, ln3g, ln3b, cls + pos[0:1],
             bbe, qry, q_scaled, blng, blnb, b1, bb2, blnfg, blnfb, bb1)]
    rows.append(jnp.zeros((V_POS1 - len(rows), VW), jnp.float32))   # pad to row 24
    rows.append(row(pos[1:]))                                       # rows 24..39
    vecs = jnp.concatenate(rows, axis=0)

    assert vecs.shape == (V_ROWS, VW), vecs.shape
    assert w_dv.shape == (DV, WDV_COLS), w_dv.shape
    assert w_db.shape == (DB, WDB_COLS), w_db.shape
    return (w_dv, w_db, w_ffn2, vecs)


# --------------------------------- wrapper ------------------------------------
def feature_extractor(imgs, params):
    """imgs: (B, C, H, W) float32 NCHW. Returns (B, DB + DV) = cat([blip, vit], -1)."""
    b = imgs.shape[0]
    # processor stand-in: pixel normalization
    x = (imgs - 0.5) / 0.5
    # im2col patch extraction (glue), flattened over batch, zero-padded to PDp=128
    patches = x.reshape(b, C, H // P_SZ, P_SZ, W // P_SZ, P_SZ)
    patches = patches.transpose(0, 2, 4, 1, 3, 5).reshape(b * NP, PD)
    # TODO(synk): bf16 pixel cast is MXU-native but quantizes vs an f32 reference.
    patches = jnp.pad(patches, ((0, 0), (0, PDp - PD))).astype(jnp.bfloat16)

    # Single gridless invocation: all (tiny) weights resident in VMEM, batched math.
    out = pl.pallas_call(
        feature_extractor_kernel,
        out_shape=jax.ShapeDtypeStruct((b, DB + DV), jnp.float32),
    )(patches, *params)
    return out


if __name__ == "__main__":
    key = jax.random.PRNGKey(0)
    imgs = jax.random.uniform(key, (B, C, H, W), dtype=jnp.float32)
    params = make_params()
    out = jax.jit(feature_extractor)(imgs, params)
    jax.block_until_ready(out)
    assert out.shape == (B, DB + DV), out.shape
    assert out.dtype == jnp.float32
    assert bool(jnp.all(jnp.isfinite(out)))
    print("KERNEL_OK")
</pallas_src>

<mosaic_0001>
module attributes {stable_mosaic.version = 11 : i64} {
  func.func @feature_extractor_kernel(%arg0: memref<32x128xbf16, #tpu.memory_space<vmem>>, %arg1: memref<128x1152xbf16, #tpu.memory_space<vmem>>, %arg2: memref<256x1408xbf16, #tpu.memory_space<vmem>>, %arg3: memref<512x256xbf16, #tpu.memory_space<vmem>>, %arg4: memref<40x512xf32, #tpu.memory_space<vmem>>, %arg5: memref<2x384xf32, #tpu.memory_space<vmem>>) attributes {dimension_semantics = [], scalar_prefetch = 0 : i64, scratch_operands = 0 : i64, tpu.core_type = #tpu.core_type<tc>} {
    %c0 = arith.constant 0 : index
    %c0_0 = arith.constant 0 : index
    %0 = vector.load %arg4[%c0, %c0_0] : memref<40x512xf32, #tpu.memory_space<vmem>>, vector<1x128xf32>
    %c1 = arith.constant 1 : index
    %c0_1 = arith.constant 0 : index
    %1 = vector.load %arg4[%c1, %c0_1] : memref<40x512xf32, #tpu.memory_space<vmem>>, vector<1x128xf32>
    %c2 = arith.constant 2 : index
    %c0_2 = arith.constant 0 : index
    %2 = vector.load %arg4[%c2, %c0_2] : memref<40x512xf32, #tpu.memory_space<vmem>>, vector<1x128xf32>
    %c3 = arith.constant 3 : index
    %c0_3 = arith.constant 0 : index
    %3 = vector.load %arg4[%c3, %c0_3] : memref<40x512xf32, #tpu.memory_space<vmem>>, vector<1x128xf32>
    %c4 = arith.constant 4 : index
    %c0_4 = arith.constant 0 : index
    %4 = vector.load %arg4[%c4, %c0_4] : memref<40x512xf32, #tpu.memory_space<vmem>>, vector<1x128xf32>
    %c5 = arith.constant 5 : index
    %c0_5 = arith.constant 0 : index
    %5 = vector.load %arg4[%c5, %c0_5] : memref<40x512xf32, #tpu.memory_space<vmem>>, vector<1x128xf32>
    %c6 = arith.constant 6 : index
    %c0_6 = arith.constant 0 : index
    %6 = vector.load %arg4[%c6, %c0_6] : memref<40x512xf32, #tpu.memory_space<vmem>>, vector<1x128xf32>
    %c7 = arith.constant 7 : index
    %c0_7 = arith.constant 0 : index
    %7 = vector.load %arg4[%c7, %c0_7] : memref<40x512xf32, #tpu.memory_space<vmem>>, vector<1x128xf32>
    %c8 = arith.constant 8 : index
    %c0_8 = arith.constant 0 : index
    %8 = vector.load %arg4[%c8, %c0_8] : memref<40x512xf32, #tpu.memory_space<vmem>>, vector<1x128xf32>
    %c24 = arith.constant 24 : index
    %c0_9 = arith.constant 0 : index
    %9 = vector.load %arg4[%c24, %c0_9] : memref<40x512xf32, #tpu.memory_space<vmem>>, vector<16x128xf32>
    %c9 = arith.constant 9 : index
    %c0_10 = arith.constant 0 : index
    %10 = vector.load %arg4[%c9, %c0_10] : memref<40x512xf32, #tpu.memory_space<vmem>>, vector<1x256xf32>
    %c10 = arith.constant 10 : index
    %c0_11 = arith.constant 0 : index
    %11 = vector.load %arg4[%c10, %c0_11] : memref<40x512xf32, #tpu.memory_space<vmem>>, vector<1x256xf32>
    %c11 = arith.constant 11 : index
    %c0_12 = arith.constant 0 : index
    %12 = vector.load %arg4[%c11, %c0_12] : memref<40x512xf32, #tpu.memory_space<vmem>>, vector<1x256xf32>
    %c12 = arith.constant 12 : index
    %c0_13 = arith.constant 0 : index
    %13 = vector.load %arg4[%c12, %c0_13] : memref<40x512xf32, #tpu.memory_space<vmem>>, vector<1x256xf32>
    %c13 = arith.constant 13 : index
    %c0_14 = arith.constant 0 : index
    %14 = vector.load %arg4[%c13, %c0_14] : memref<40x512xf32, #tpu.memory_space<vmem>>, vector<1x256xf32>
    %c14 = arith.constant 14 : index
    %c0_15 = arith.constant 0 : index
    %15 = vector.load %arg4[%c14, %c0_15] : memref<40x512xf32, #tpu.memory_space<vmem>>, vector<1x256xf32>
    %c15 = arith.constant 15 : index
    %c0_16 = arith.constant 0 : index
    %16 = vector.load %arg4[%c15, %c0_16] : memref<40x512xf32, #tpu.memory_space<vmem>>, vector<1x256xf32>
    %c16 = arith.constant 16 : index
    %c0_17 = arith.constant 0 : index
    %17 = vector.load %arg4[%c16, %c0_17] : memref<40x512xf32, #tpu.memory_space<vmem>>, vector<1x256xf32>
    %c17 = arith.constant 17 : index
    %c0_18 = arith.constant 0 : index
    %18 = vector.load %arg4[%c17, %c0_18] : memref<40x512xf32, #tpu.memory_space<vmem>>, vector<1x256xf32>
    %c18 = arith.constant 18 : index
    %c0_19 = arith.constant 0 : index
    %19 = vector.load %arg4[%c18, %c0_19] : memref<40x512xf32, #tpu.memory_space<vmem>>, vector<1x512xf32>
    %c0_20 = arith.constant 0 : index
    %c0_21 = arith.constant 0 : index
    %20 = vector.load %arg0[%c0_20, %c0_21] : memref<32x128xbf16, #tpu.memory_space<vmem>>, vector<32x128xbf16>
    %c0_22 = arith.constant 0 : index
    %c0_23 = arith.constant 0 : index
    %21 = vector.load %arg1[%c0_22, %c0_23] : memref<128x1152xbf16, #tpu.memory_space<vmem>>, vector<128x384xbf16>
    %cst = arith.constant dense<0.000000e+00> : vector<32x384xf32>
    %22 = tpu.matmul %20, %21, %cst {dimension_numbers = #tpu.dot_dimension_numbers<[1], [0], [0], [1], [0, 0, 1, 1], [], []>} : vector<32x128xbf16>, vector<128x384xbf16>, vector<32x384xf32> -> vector<32x384xf32>
    %23 = vector.extract_strided_slice %22 {offsets = [0, 0], sizes = [32, 128], strides = [1, 1]} : vector<32x384xf32> to vector<32x128xf32>
    %24 = vector.broadcast %0 : vector<1x128xf32> to vector<32x128xf32>
    %25 = arith.addf %23, %24 : vector<32x128xf32>
    %26 = vector.extract_strided_slice %22 {offsets = [0, 128], sizes = [32, 256], strides = [1, 1]} : vector<32x384xf32> to vector<32x256xf32>
    %27 = vector.broadcast %10 : vector<1x256xf32> to vector<32x256xf32>
    %28 = arith.addf %26, %27 : vector<32x256xf32>
    %29 = vector.shape_cast %25 : vector<32x128xf32> to vector<2x16x128xf32>
    %30 = vector.shape_cast %9 : vector<16x128xf32> to vector<1x16x128xf32>
    %31 = vector.broadcast %30 : vector<1x16x128xf32> to vector<2x16x128xf32>
    %32 = arith.addf %29, %31 : vector<2x16x128xf32>
    %33 = vector.shape_cast %32 : vector<2x16x128xf32> to vector<32x128xf32>
    %cst_24 = arith.constant dense<0.000000e+00> : vector<32xf32>
    %34 = vector.multi_reduction <add>, %33, %cst_24 [1] : vector<32x128xf32> to vector<32xf32>
    %35 = vector.shape_cast %34 : vector<32xf32> to vector<32x1xf32>
    %cst_25 = arith.constant 1.280000e+02 : f32
    %36 = vector.broadcast %cst_25 : f32 to vector<32x1xf32>
    %37 = arith.divf %35, %36 : vector<32x1xf32>
    %38 = vector.broadcast %37 : vector<32x1xf32> to vector<32x128xf32>
    %39 = arith.subf %33, %38 : vector<32x128xf32>
    %40 = arith.mulf %39, %39 : vector<32x128xf32>
    %cst_26 = arith.constant dense<0.000000e+00> : vector<32xf32>
    %41 = vector.multi_reduction <add>, %40, %cst_26 [1] : vector<32x128xf32> to vector<32xf32>
    %42 = vector.shape_cast %41 : vector<32xf32> to vector<32x1xf32>
    %cst_27 = arith.constant 1.280000e+02 : f32
    %43 = vector.broadcast %cst_27 : f32 to vector<32x1xf32>
    %44 = arith.divf %42, %43 : vector<32x1xf32>
    %45 = vector.broadcast %37 : vector<32x1xf32> to vector<32x128xf32>
    %46 = arith.subf %33, %45 : vector<32x128xf32>
    %cst_28 = arith.constant 9.99999997E-7 : f32
    %47 = vector.broadcast %cst_28 : f32 to vector<32x1xf32>
    %48 = arith.addf %44, %47 : vector<32x1xf32>
    %49 = math.rsqrt %48 : vector<32x1xf32>
    %50 = vector.broadcast %49 : vector<32x1xf32> to vector<32x128xf32>
    %51 = arith.mulf %46, %50 : vector<32x128xf32>
    %52 = vector.broadcast %1 : vector<1x128xf32> to vector<32x128xf32>
    %53 = arith.mulf %51, %52 : vector<32x128xf32>
    %54 = vector.broadcast %2 : vector<1x128xf32> to vector<32x128xf32>
    %55 = arith.addf %53, %54 : vector<32x128xf32>
    %cst_29 = arith.constant dense<0.000000e+00> : vector<1xf32>
    %56 = vector.multi_reduction <add>, %8, %cst_29 [1] : vector<1x128xf32> to vector<1xf32>
    %57 = vector.shape_cast %56 : vector<1xf32> to vector<1x1xf32>
    %cst_30 = arith.constant 1.280000e+02 : f32
    %58 = vector.broadcast %cst_30 : f32 to vector<1x1xf32>
    %59 = arith.divf %57, %58 : vector<1x1xf32>
    %60 = vector.broadcast %59 : vector<1x1xf32> to vector<1x128xf32>
    %61 = arith.subf %8, %60 : vector<1x128xf32>
    %62 = arith.mulf %61, %61 : vector<1x128xf32>
    %cst_31 = arith.constant dense<0.000000e+00> : vector<1xf32>
    %63 = vector.multi_reduction <add>, %62, %cst_31 [1] : vector<1x128xf32> to vector<1xf32>
    %64 = vector.shape_cast %63 : vector<1xf32> to vector<1x1xf32>
    %cst_32 = arith.constant 1.280000e+02 : f32
    %65 = vector.broadcast %cst_32 : f32 to vector<1x1xf32>
    %66 = arith.divf %64, %65 : vector<1x1xf32>
    %67 = vector.broadcast %59 : vector<1x1xf32> to vector<1x128xf32>
    %68 = arith.subf %8, %67 : vector<1x128xf32>
    %cst_33 = arith.constant 9.99999997E-7 : f32
    %69 = vector.broadcast %cst_33 : f32 to vector<1x1xf32>
    %70 = arith.addf %66, %69 : vector<1x1xf32>
    %71 = math.rsqrt %70 : vector<1x1xf32>
    %72 = vector.broadcast %71 : vector<1x1xf32> to vector<1x128xf32>
    %73 = arith.mulf %68, %72 : vector<1x128xf32>
    %74 = arith.mulf %73, %1 : vector<1x128xf32>
    %75 = arith.addf %74, %2 : vector<1x128xf32>
    %c0_34 = arith.constant 0 : index
    %c384 = arith.constant 384 : index
    %76 = vector.load %arg1[%c0_34, %c384] : memref<128x1152xbf16, #tpu.memory_space<vmem>>, vector<128x384xbf16>
    %77 = arith.truncf %55 : vector<32x128xf32> to vector<32x128xbf16>
    %cst_35 = arith.constant dense<0.000000e+00> : vector<32x384xf32>
    %78 = tpu.matmul %77, %76, %cst_35 {dimension_numbers = #tpu.dot_dimension_numbers<[1], [0], [0], [1], [0, 0, 1, 1], [], []>} : vector<32x128xbf16>, vector<128x384xbf16>, vector<32x384xf32> -> vector<32x384xf32>
    %79 = arith.truncf %75 : vector<1x128xf32> to vector<1x128xbf16>
    %cst_36 = arith.constant dense<0.000000e+00> : vector<1x384xf32>
    %80 = tpu.matmul %79, %76, %cst_36 {dimension_numbers = #tpu.dot_dimension_numbers<[1], [0], [0], [1], [0, 0, 1, 1], [], []>} : vector<1x128xbf16>, vector<128x384xbf16>, vector<1x384xf32> -> vector<1x384xf32>
    %81 = vector.extract_strided_slice %80 {offsets = [0, 0], sizes = [1, 128], strides = [1, 1]} : vector<1x384xf32> to vector<1x128xf32>
    %82 = vector.extract_strided_slice %80 {offsets = [0, 128], sizes = [1, 128], strides = [1, 1]} : vector<1x384xf32> to vector<1x128xf32>
    %83 = vector.extract_strided_slice %80 {offsets = [0, 256], sizes = [1, 128], strides = [1, 1]} : vector<1x384xf32> to vector<1x128xf32>
    %84 = vector.extract_strided_slice %78 {offsets = [0, 128], sizes = [32, 128], strides = [1, 1]} : vector<32x384xf32> to vector<32x128xf32>
    %85 = vector.shape_cast %84 : vector<32x128xf32> to vector<2x16x128xf32>
    %86 = vector.extract_strided_slice %78 {offsets = [0, 256], sizes = [32, 128], strides = [1, 1]} : vector<32x384xf32> to vector<32x128xf32>
    %87 = vector.shape_cast %86 : vector<32x128xf32> to vector<2x16x128xf32>
    %88 = vector.shape_cast %81 : vector<1x128xf32> to vector<1x1x128xf32>
    %89 = vector.broadcast %88 : vector<1x1x128xf32> to vector<2x1x128xf32>
    "tpu.trace_start"() <{level = 10 : i32, message = "bqd,bkd->bqk"}> : () -> ()
    %cst_37 = arith.constant dense<0.000000e+00> : vector<2x1x16xf32>
    %90 = tpu.matmul %89, %85, %cst_37 {dimension_numbers = #tpu.dot_dimension_numbers<[2], [2], [1], [1], [0, 0, 0, 1, 1, 1], [0], [0]>} : vector<2x1x128xf32>, vector<2x16x128xf32>, vector<2x1x16xf32> -> vector<2x1x16xf32>
    "tpu.trace_stop"() : () -> ()
    %91 = arith.mulf %81, %82 : vector<1x128xf32>
    %cst_38 = arith.constant dense<0.000000e+00> : vector<1xf32>
    %92 = vector.multi_reduction <add>, %91, %cst_38 [1] : vector<1x128xf32> to vector<1xf32>
    %93 = vector.shape_cast %92 : vector<1xf32> to vector<1x1xf32>
    %cst_39 = arith.constant dense<0xFF800000> : vector<2x1xf32>
    %94 = vector.multi_reduction <maximumf>, %90, %cst_39 [2] : vector<2x1x16xf32> to vector<2x1xf32>
    %95 = vector.shape_cast %94 : vector<2x1xf32> to vector<2x1x1xf32>
    %96 = vector.shape_cast %93 : vector<1x1xf32> to vector<1x1x1xf32>
    %97 = vector.broadcast %96 : vector<1x1x1xf32> to vector<2x1x1xf32>
    %98 = arith.maximumf %95, %97 : vector<2x1x1xf32>
    %99 = vector.broadcast %98 : vector<2x1x1xf32> to vector<2x1x16xf32>
    %100 = arith.subf %90, %99 : vector<2x1x16xf32>
    %101 = math.exp %100 : vector<2x1x16xf32>
    %102 = vector.shape_cast %93 : vector<1x1xf32> to vector<1x1x1xf32>
    %103 = vector.broadcast %102 : vector<1x1x1xf32> to vector<2x1x1xf32>
    %104 = arith.subf %103, %98 : vector<2x1x1xf32>
    %105 = math.exp %104 : vector<2x1x1xf32>
    %cst_40 = arith.constant dense<0.000000e+00> : vector<2x1xf32>
    %106 = vector.multi_reduction <add>, %101, %cst_40 [2] : vector<2x1x16xf32> to vector<2x1xf32>
    %107 = vector.shape_cast %106 : vector<2x1xf32> to vector<2x1x1xf32>
    %108 = arith.addf %107, %105 : vector<2x1x1xf32>
    %109 = tpu.reciprocal %108 {approx = true} : vector<2x1x1xf32> -> vector<2x1x1xf32>
    %110 = vector.broadcast %109 : vector<2x1x1xf32> to vector<2x1x16xf32>
    %111 = arith.mulf %101, %110 : vector<2x1x16xf32>
    "tpu.trace_start"() <{level = 10 : i32, message = "bqk,bkd->bqd"}> : () -> ()
    %cst_41 = arith.constant dense<0.000000e+00> : vector<2x1x128xf32>
    %112 = tpu.matmul %111, %87, %cst_41 {dimension_numbers = #tpu.dot_dimension_numbers<[2], [1], [1], [2], [0, 0, 0, 1, 1, 2], [0], [0]>} : vector<2x1x16xf32>, vector<2x16x128xf32>, vector<2x1x128xf32> -> vector<2x1x128xf32>
    "tpu.trace_stop"() : () -> ()
    %113 = arith.mulf %105, %109 : vector<2x1x1xf32>
    %114 = vector.shape_cast %83 : vector<1x128xf32> to vector<1x1x128xf32>
    %115 = vector.broadcast %113 : vector<2x1x1xf32> to vector<2x1x128xf32>
    %116 = vector.broadcast %114 : vector<1x1x128xf32> to vector<2x1x128xf32>
    %117 = arith.mulf %115, %116 : vector<2x1x128xf32>
    %118 = arith.addf %112, %117 : vector<2x1x128xf32>
    %119 = vector.shape_cast %118 : vector<2x1x128xf32> to vector<2x128xf32>
    %120 = arith.truncf %119 : vector<2x128xf32> to vector<2x128xbf16>
    %c0_42 = arith.constant 0 : index
    %c768 = arith.constant 768 : index
    %121 = vector.load %arg1[%c0_42, %c768] : memref<128x1152xbf16, #tpu.memory_space<vmem>>, vector<128x128xbf16>
    %cst_43 = arith.constant dense<0.000000e+00> : vector<2x128xf32>
    %122 = tpu.matmul %120, %121, %cst_43 {dimension_numbers = #tpu.dot_dimension_numbers<[1], [0], [0], [1], [0, 0, 1, 1], [], []>} : vector<2x128xbf16>, vector<128x128xbf16>, vector<2x128xf32> -> vector<2x128xf32>
    %123 = vector.broadcast %8 : vector<1x128xf32> to vector<2x128xf32>
    %124 = arith.addf %123, %122 : vector<2x128xf32>
    %cst_44 = arith.constant dense<0.000000e+00> : vector<2xf32>
    %125 = vector.multi_reduction <add>, %124, %cst_44 [1] : vector<2x128xf32> to vector<2xf32>
    %126 = vector.shape_cast %125 : vector<2xf32> to vector<2x1xf32>
    %cst_45 = arith.constant 1.280000e+02 : f32
    %127 = vector.broadcast %cst_45 : f32 to vector<2x1xf32>
    %128 = arith.divf %126, %127 : vector<2x1xf32>
    %129 = vector.broadcast %128 : vector<2x1xf32> to vector<2x128xf32>
    %130 = arith.subf %124, %129 : vector<2x128xf32>
    %131 = arith.mulf %130, %130 : vector<2x128xf32>
    %cst_46 = arith.constant dense<0.000000e+00> : vector<2xf32>
    %132 = vector.multi_reduction <add>, %131, %cst_46 [1] : vector<2x128xf32> to vector<2xf32>
    %133 = vector.shape_cast %132 : vector<2xf32> to vector<2x1xf32>
    %cst_47 = arith.constant 1.280000e+02 : f32
    %134 = vector.broadcast %cst_47 : f32 to vector<2x1xf32>
    %135 = arith.divf %133, %134 : vector<2x1xf32>
    %136 = vector.broadcast %128 : vector<2x1xf32> to vector<2x128xf32>
    %137 = arith.subf %124, %136 : vector<2x128xf32>
    %cst_48 = arith.constant 9.99999997E-7 : f32
    %138 = vector.broadcast %cst_48 : f32 to vector<2x1xf32>
    %139 = arith.addf %135, %138 : vector<2x1xf32>
    %140 = math.rsqrt %139 : vector<2x1xf32>
    %141 = vector.broadcast %140 : vector<2x1xf32> to vector<2x128xf32>
    %142 = arith.mulf %137, %141 : vector<2x128xf32>
    %143 = vector.broadcast %3 : vector<1x128xf32> to vector<2x128xf32>
    %144 = arith.mulf %142, %143 : vector<2x128xf32>
    %145 = vector.broadcast %4 : vector<1x128xf32> to vector<2x128xf32>
    %146 = arith.addf %144, %145 : vector<2x128xf32>
    %147 = arith.truncf %146 : vector<2x128xf32> to vector<2x128xbf16>
    %c0_49 = arith.constant 0 : index
    %c896 = arith.constant 896 : index
    %148 = vector.load %arg1[%c0_49, %c896] : memref<128x1152xbf16, #tpu.memory_space<vmem>>, vector<128x256xbf16>
    %cst_50 = arith.constant dense<0.000000e+00> : vector<2x256xf32>
    %149 = tpu.matmul %147, %148, %cst_50 {dimension_numbers = #tpu.dot_dimension_numbers<[1], [0], [0], [1], [0, 0, 1, 1], [], []>} : vector<2x128xbf16>, vector<128x256xbf16>, vector<2x256xf32> -> vector<2x256xf32>
    %150 = vector.broadcast %15 : vector<1x256xf32> to vector<2x256xf32>
    %151 = arith.addf %149, %150 : vector<2x256xf32>
    %152 = arith.mulf %151, %151 : vector<2x256xf32>
    %153 = arith.mulf %151, %152 : vector<2x256xf32>
    %cst_51 = arith.constant 4.471500e-02 : f32
    %154 = vector.broadcast %cst_51 : f32 to vector<2x256xf32>
    %155 = arith.mulf %154, %153 : vector<2x256xf32>
    %156 = arith.addf %151, %155 : vector<2x256xf32>
    %cst_52 = arith.constant 0.797884583 : f32
    %157 = vector.broadcast %cst_52 : f32 to vector<2x256xf32>
    %158 = arith.mulf %157, %156 : vector<2x256xf32>
    %159 = math.tanh %158 : vector<2x256xf32>
    %cst_53 = arith.constant 1.000000e+00 : f32
    %160 = vector.broadcast %cst_53 : f32 to vector<2x256xf32>
    %161 = arith.addf %160, %159 : vector<2x256xf32>
    %cst_54 = arith.constant 5.000000e-01 : f32
    %162 = vector.broadcast %cst_54 : f32 to vector<2x256xf32>
    %163 = arith.mulf %162, %161 : vector<2x256xf32>
    %164 = arith.mulf %151, %163 : vector<2x256xf32>
    %165 = arith.truncf %164 : vector<2x256xf32> to vector<2x256xbf16>
    %c0_55 = arith.constant 0 : index
    %c1280 = arith.constant 1280 : index
    %166 = vector.load %arg2[%c0_55, %c1280] : memref<256x1408xbf16, #tpu.memory_space<vmem>>, vector<256x128xbf16>
    %cst_56 = arith.constant dense<0.000000e+00> : vector<2x128xf32>
    %167 = tpu.matmul %165, %166, %cst_56 {dimension_numbers = #tpu.dot_dimension_numbers<[1], [0], [0], [1], [0, 0, 1, 1], [], []>} : vector<2x256xbf16>, vector<256x128xbf16>, vector<2x128xf32> -> vector<2x128xf32>
    %168 = arith.addf %124, %167 : vector<2x128xf32>
    %169 = vector.broadcast %5 : vector<1x128xf32> to vector<2x128xf32>
    %170 = arith.addf %168, %169 : vector<2x128xf32>
    %cst_57 = arith.constant dense<0.000000e+00> : vector<2xf32>
    %171 = vector.multi_reduction <add>, %170, %cst_57 [1] : vector<2x128xf32> to vector<2xf32>
    %172 = vector.shape_cast %171 : vector<2xf32> to vector<2x1xf32>
    %cst_58 = arith.constant 1.280000e+02 : f32
    %173 = vector.broadcast %cst_58 : f32 to vector<2x1xf32>
    %174 = arith.divf %172, %173 : vector<2x1xf32>
    %175 = vector.broadcast %174 : vector<2x1xf32> to vector<2x128xf32>
    %176 = arith.subf %170, %175 : vector<2x128xf32>
    %177 = arith.mulf %176, %176 : vector<2x128xf32>
    %cst_59 = arith.constant dense<0.000000e+00> : vector<2xf32>
    %178 = vector.multi_reduction <add>, %177, %cst_59 [1] : vector<2x128xf32> to vector<2xf32>
    %179 = vector.shape_cast %178 : vector<2xf32> to vector<2x1xf32>
    %cst_60 = arith.constant 1.280000e+02 : f32
    %180 = vector.broadcast %cst_60 : f32 to vector<2x1xf32>
    %181 = arith.divf %179, %180 : vector<2x1xf32>
    %182 = vector.broadcast %174 : vector<2x1xf32> to vector<2x128xf32>
    %183 = arith.subf %170, %182 : vector<2x128xf32>
    %cst_61 = arith.constant 9.99999997E-7 : f32
    %184 = vector.broadcast %cst_61 : f32 to vector<2x1xf32>
    %185 = arith.addf %181, %184 : vector<2x1xf32>
    %186 = math.rsqrt %185 : vector<2x1xf32>
    %187 = vector.broadcast %186 : vector<2x1xf32> to vector<2x128xf32>
    %188 = arith.mulf %183, %187 : vector<2x128xf32>
    %189 = vector.broadcast %6 : vector<1x128xf32> to vector<2x128xf32>
    %190 = arith.mulf %188, %189 : vector<2x128xf32>
    %191 = vector.broadcast %7 : vector<1x128xf32> to vector<2x128xf32>
    %192 = arith.addf %190, %191 : vector<2x128xf32>
    %193 = arith.truncf %28 : vector<32x256xf32> to vector<32x256xbf16>
    %c0_62 = arith.constant 0 : index
    %c0_63 = arith.constant 0 : index
    %194 = vector.load %arg2[%c0_62, %c0_63] : memref<256x1408xbf16, #tpu.memory_space<vmem>>, vector<256x512xbf16>
    %cst_64 = arith.constant dense<0.000000e+00> : vector<32x512xf32>
    %195 = tpu.matmul %193, %194, %cst_64 {dimension_numbers = #tpu.dot_dimension_numbers<[1], [0], [0], [1], [0, 0, 1, 1], [], []>} : vector<32x256xbf16>, vector<256x512xbf16>, vector<32x512xf32> -> vector<32x512xf32>
    %196 = vector.extract_strided_slice %195 {offsets = [0, 0], sizes = [32, 256], strides = [1, 1]} : vector<32x512xf32> to vector<32x256xf32>
    %197 = vector.shape_cast %196 : vector<32x256xf32> to vector<2x16x256xf32>
    %198 = vector.extract_strided_slice %195 {offsets = [0, 256], sizes = [32, 256], strides = [1, 1]} : vector<32x512xf32> to vector<32x256xf32>
    %199 = vector.shape_cast %198 : vector<32x256xf32> to vector<2x16x256xf32>
    %200 = vector.shape_cast %12 : vector<1x256xf32> to vector<1x1x256xf32>
    %201 = vector.broadcast %200 : vector<1x1x256xf32> to vector<2x1x256xf32>
    "tpu.trace_start"() <{level = 10 : i32, message = "bqd,bkd->bqk"}> : () -> ()
    %cst_65 = arith.constant dense<0.000000e+00> : vector<2x1x16xf32>
    %202 = tpu.matmul %201, %197, %cst_65 {dimension_numbers = #tpu.dot_dimension_numbers<[2], [2], [1], [1], [0, 0, 0, 1, 1, 1], [0], [0]>} : vector<2x1x256xf32>, vector<2x16x256xf32>, vector<2x1x16xf32> -> vector<2x1x16xf32>
    "tpu.trace_stop"() : () -> ()
    %cst_66 = arith.constant dense<0xFF800000> : vector<2x1xf32>
    %203 = vector.multi_reduction <maximumf>, %202, %cst_66 [2] : vector<2x1x16xf32> to vector<2x1xf32>
    %204 = vector.shape_cast %203 : vector<2x1xf32> to vector<2x1x1xf32>
    %205 = vector.broadcast %204 : vector<2x1x1xf32> to vector<2x1x16xf32>
    %206 = arith.subf %202, %205 : vector<2x1x16xf32>
    %207 = math.exp %206 : vector<2x1x16xf32>
    %cst_67 = arith.constant dense<0.000000e+00> : vector<2x1xf32>
    %208 = vector.multi_reduction <add>, %207, %cst_67 [2] : vector<2x1x16xf32> to vector<2x1xf32>
    %209 = vector.shape_cast %208 : vector<2x1xf32> to vector<2x1x1xf32>
    %210 = tpu.reciprocal %209 {approx = true} : vector<2x1x1xf32> -> vector<2x1x1xf32>
    %211 = vector.broadcast %210 : vector<2x1x1xf32> to vector<2x1x16xf32>
    %212 = arith.mulf %207, %211 : vector<2x1x16xf32>
    "tpu.trace_start"() <{level = 10 : i32, message = "bqk,bkd->bqd"}> : () -> ()
    %cst_68 = arith.constant dense<0.000000e+00> : vector<2x1x256xf32>
    %213 = tpu.matmul %212, %199, %cst_68 {dimension_numbers = #tpu.dot_dimension_numbers<[2], [1], [1], [2], [0, 0, 0, 1, 1, 2], [0], [0]>} : vector<2x1x16xf32>, vector<2x16x256xf32>, vector<2x1x256xf32> -> vector<2x1x256xf32>
    "tpu.trace_stop"() : () -> ()
    %214 = vector.shape_cast %213 : vector<2x1x256xf32> to vector<2x256xf32>
    %215 = arith.truncf %214 : vector<2x256xf32> to vector<2x256xbf16>
    %c0_69 = arith.constant 0 : index
    %c512 = arith.constant 512 : index
    %216 = vector.load %arg2[%c0_69, %c512] : memref<256x1408xbf16, #tpu.memory_space<vmem>>, vector<256x256xbf16>
    %cst_70 = arith.constant dense<0.000000e+00> : vector<2x256xf32>
    %217 = tpu.matmul %215, %216, %cst_70 {dimension_numbers = #tpu.dot_dimension_numbers<[1], [0], [0], [1], [0, 0, 1, 1], [], []>} : vector<2x256xbf16>, vector<256x256xbf16>, vector<2x256xf32> -> vector<2x256xf32>
    %218 = vector.broadcast %11 : vector<1x256xf32> to vector<2x256xf32>
    %219 = arith.addf %218, %217 : vector<2x256xf32>
    %cst_71 = arith.constant dense<0.000000e+00> : vector<2xf32>
    %220 = vector.multi_reduction <add>, %219, %cst_71 [1] : vector<2x256xf32> to vector<2xf32>
    %221 = vector.shape_cast %220 : vector<2xf32> to vector<2x1xf32>
    %cst_72 = arith.constant 2.560000e+02 : f32
    %222 = vector.broadcast %cst_72 : f32 to vector<2x1xf32>
    %223 = arith.divf %221, %222 : vector<2x1xf32>
    %224 = vector.broadcast %223 : vector<2x1xf32> to vector<2x256xf32>
    %225 = arith.subf %219, %224 : vector<2x256xf32>
    %226 = arith.mulf %225, %225 : vector<2x256xf32>
    %cst_73 = arith.constant dense<0.000000e+00> : vector<2xf32>
    %227 = vector.multi_reduction <add>, %226, %cst_73 [1] : vector<2x256xf32> to vector<2xf32>
    %228 = vector.shape_cast %227 : vector<2xf32> to vector<2x1xf32>
    %cst_74 = arith.constant 2.560000e+02 : f32
    %229 = vector.broadcast %cst_74 : f32 to vector<2x1xf32>
    %230 = arith.divf %228, %229 : vector<2x1xf32>
    %231 = vector.broadcast %223 : vector<2x1xf32> to vector<2x256xf32>
    %232 = arith.subf %219, %231 : vector<2x256xf32>
    %cst_75 = arith.constant 9.99999974E-6 : f32
    %233 = vector.broadcast %cst_75 : f32 to vector<2x1xf32>
    %234 = arith.addf %230, %233 : vector<2x1xf32>
    %235 = math.rsqrt %234 : vector<2x1xf32>
    %236 = vector.broadcast %235 : vector<2x1xf32> to vector<2x256xf32>
    %237 = arith.mulf %232, %236 : vector<2x256xf32>
    %238 = vector.broadcast %13 : vector<1x256xf32> to vector<2x256xf32>
    %239 = arith.mulf %237, %238 : vector<2x256xf32>
    %240 = vector.broadcast %14 : vector<1x256xf32> to vector<2x256xf32>
    %241 = arith.addf %239, %240 : vector<2x256xf32>
    %242 = arith.truncf %241 : vector<2x256xf32> to vector<2x256xbf16>
    %c0_76 = arith.constant 0 : index
    %c768_77 = arith.constant 768 : index
    %243 = vector.load %arg2[%c0_76, %c768_77] : memref<256x1408xbf16, #tpu.memory_space<vmem>>, vector<256x512xbf16>
    %cst_78 = arith.constant dense<0.000000e+00> : vector<2x512xf32>
    %244 = tpu.matmul %242, %243, %cst_78 {dimension_numbers = #tpu.dot_dimension_numbers<[1], [0], [0], [1], [0, 0, 1, 1], [], []>} : vector<2x256xbf16>, vector<256x512xbf16>, vector<2x512xf32> -> vector<2x512xf32>
    %245 = vector.broadcast %19 : vector<1x512xf32> to vector<2x512xf32>
    %246 = arith.addf %244, %245 : vector<2x512xf32>
    %cst_79 = arith.constant 0.000000e+00 : f32
    %247 = vector.broadcast %cst_79 : f32 to vector<2x512xf32>
    %248 = arith.maximumf %246, %247 : vector<2x512xf32>
    %249 = arith.truncf %248 : vector<2x512xf32> to vector<2x512xbf16>
    %c0_80 = arith.constant 0 : index
    %c0_81 = arith.constant 0 : index
    %250 = vector.load %arg3[%c0_80, %c0_81] : memref<512x256xbf16, #tpu.memory_space<vmem>>, vector<512x256xbf16>
    %cst_82 = arith.constant dense<0.000000e+00> : vector<2x256xf32>
    %251 = tpu.matmul %249, %250, %cst_82 {dimension_numbers = #tpu.dot_dimension_numbers<[1], [0], [0], [1], [0, 0, 1, 1], [], []>} : vector<2x512xbf16>, vector<512x256xbf16>, vector<2x256xf32> -> vector<2x256xf32>
    %252 = arith.addf %219, %251 : vector<2x256xf32>
    %253 = vector.broadcast %16 : vector<1x256xf32> to vector<2x256xf32>
    %254 = arith.addf %252, %253 : vector<2x256xf32>
    %cst_83 = arith.constant dense<0.000000e+00> : vector<2xf32>
    %255 = vector.multi_reduction <add>, %254, %cst_83 [1] : vector<2x256xf32> to vector<2xf32>
    %256 = vector.shape_cast %255 : vector<2xf32> to vector<2x1xf32>
    %cst_84 = arith.constant 2.560000e+02 : f32
    %257 = vector.broadcast %cst_84 : f32 to vector<2x1xf32>
    %258 = arith.divf %256, %257 : vector<2x1xf32>
    %259 = vector.broadcast %258 : vector<2x1xf32> to vector<2x256xf32>
    %260 = arith.subf %254, %259 : vector<2x256xf32>
    %261 = arith.mulf %260, %260 : vector<2x256xf32>
    %cst_85 = arith.constant dense<0.000000e+00> : vector<2xf32>
    %262 = vector.multi_reduction <add>, %261, %cst_85 [1] : vector<2x256xf32> to vector<2xf32>
    %263 = vector.shape_cast %262 : vector<2xf32> to vector<2x1xf32>
    %cst_86 = arith.constant 2.560000e+02 : f32
    %264 = vector.broadcast %cst_86 : f32 to vector<2x1xf32>
    %265 = arith.divf %263, %264 : vector<2x1xf32>
    %266 = vector.broadcast %258 : vector<2x1xf32> to vector<2x256xf32>
    %267 = arith.subf %254, %266 : vector<2x256xf32>
    %cst_87 = arith.constant 9.99999974E-6 : f32
    %268 = vector.broadcast %cst_87 : f32 to vector<2x1xf32>
    %269 = arith.addf %265, %268 : vector<2x1xf32>
    %270 = math.rsqrt %269 : vector<2x1xf32>
    %271 = vector.broadcast %270 : vector<2x1xf32> to vector<2x256xf32>
    %272 = arith.mulf %267, %271 : vector<2x256xf32>
    %273 = vector.broadcast %17 : vector<1x256xf32> to vector<2x256xf32>
    %274 = arith.mulf %272, %273 : vector<2x256xf32>
    %275 = vector.broadcast %18 : vector<1x256xf32> to vector<2x256xf32>
    %276 = arith.addf %274, %275 : vector<2x256xf32>
    %c0_88 = arith.constant 0 : index
    %c0_89 = arith.constant 0 : index
    %277 = vector.load %arg5[%c0_88, %c0_89] : memref<2x384xf32, #tpu.memory_space<vmem>>, vector<2x256xf32>
    tpu.vector_store %arg5[%c0_88, %c0_89], %276 {strides = array<i32>} : memref<2x384xf32, #tpu.memory_space<vmem>>, vector<2x256xf32>,
    %c0_90 = arith.constant 0 : index
    %c256 = arith.constant 256 : index
    %278 = vector.load %arg5[%c0_90, %c256] : memref<2x384xf32, #tpu.memory_space<vmem>>, vector<2x128xf32>
    tpu.vector_store %arg5[%c0_90, %c256], %192 {strides = array<i32>} : memref<2x384xf32, #tpu.memory_space<vmem>>, vector<2x128xf32>,
    return
  }
}

</mosaic_0001>

<llo_original>
// kernel: feature_extractor.1
$region0: #{feature_extractor.1}
  #allocation0 [shape = 'u32[]', space=smem, size = 0x4, offset = 0x4, fixed_abs, tag = 'smem constant byte address 0x4 - core index']
  #allocation1 [shape = 'u32[144,128]{1,0:T(1,128)}', space=vmem, size = 0x12000, scoped, tag = 'internal scratch']
  %s0 = inlined_call_operand.vmem [shape: bf16[32,128], index: 0, kind: input, shape index: {}]
  %s1 = inlined_call_operand.vmem [shape: bf16[128,1152], index: 1, kind: input, shape index: {}]
  %s2 = inlined_call_operand.hbm [shape: bf16[256,1408], index: 2, kind: input, shape index: {}]
  %s3 = inlined_call_operand.hbm [shape: bf16[512,256], index: 3, kind: input, shape index: {}]
  %s4 = inlined_call_operand.vmem [shape: f32[40,512], index: 4, kind: input, shape index: {}]
  %s5 = inlined_call_operand.hbm [shape: f32[2,384], index: 5, kind: output, shape index: {}]
  %s6 = sld [smem:[#allocation0]]
  $region38: #{feature_extractor.1} parent=0
    _
  %s8 = ssub.s32 1, %s6
  %s9 = scalar_select 0, %s8, %s6
  $region1: #{feature_extractor.1} parent=0
    #allocation2 [shape = 'u8[720896]{0}', space=vmem, size = 0xb0000, scoped, tag = 'input window, operand 2, single buffered']
    #allocation3 [shape = 's32[1]{0}', space=sflag, size = 0x4, scoped, tag = 'scoped memory for feature_extractor.1']
    #allocation4 [shape = 's32[1]{0}', space=sflag, size = 0x4, scoped, tag = 'scoped memory for feature_extractor.1']
    #allocation5 [shape = 'u8[262144]{0}', space=vmem, size = 0x40000, scoped, tag = 'input window, operand 3, single buffered']
    #allocation6 [shape = 's32[1]{0}', space=sflag, size = 0x4, scoped, tag = 'scoped memory for feature_extractor.1']
    #allocation7 [shape = 'u8[3072]{0}', space=vmem, size = 0xc00, scoped, tag = 'output window, operand 0, single buffered']
    %10 = vsyncpa [#allocation3], 0
    %11 = vsyncpa [#allocation6], 0
    %12 = vsyncpa [#allocation4], 0
    // Predicated region
    $region2: #{feature_extractor.1} parent=1 // pred_check
      _
    $region3: #{feature_extractor.1} parent=1 // pred_check_branch
      %14 = sbr.rel (0) target = $region5
    $region4: #{feature_extractor.1} parent=1 // pred_region
      _
    $region5: #{feature_extractor.1} parent=1 // pred_fallthru
      _
    // Predicated region
    $region6: #{feature_extractor.1} parent=1 // pred_check
      _
    $region7: #{feature_extractor.1} parent=1 // pred_check_branch
      %16 = sbr.rel (0) target = $region9
    $region8: #{feature_extractor.1} parent=1 // pred_region
      _
    $region9: #{feature_extractor.1} parent=1 // pred_fallthru
      _
    // Predicated region
    $region10: #{feature_extractor.1} parent=1 // pred_check
      _
    $region11: #{feature_extractor.1} parent=1 // pred_check_branch
      %18 = sbr.rel (0) target = $region13
    $region12: #{feature_extractor.1} parent=1 // pred_region
      %s20 = ssub.s32 22528, 22528
      %21 = vsyncadd [#allocation3], %s20
      %s22 = sshll.u32 [#allocation2], 4
      %s23 = int_to_ptr.vmem [resolvable:$true] %s22
      %28 = dma.hbm_to_vmem [thread:$0]  %s2, 22528, %s23, [#allocation3], 704, 704, 44
    $region13: #{feature_extractor.1} parent=1 // pred_fallthru
      _
    // Predicated region
    $region14: #{feature_extractor.1} parent=1 // pred_check
      _
    $region15: #{feature_extractor.1} parent=1 // pred_check_branch
      %30 = sbr.rel (0) target = $region17
    $region16: #{feature_extractor.1} parent=1 // pred_region
      %s32 = ssub.s32 8192, 8192
      %33 = vsyncadd [#allocation6], %s32
      %s34 = sshll.u32 [#allocation5], 4
      %s35 = int_to_ptr.vmem [resolvable:$true] %s34
      %40 = dma.hbm_to_vmem [thread:$0]  %s3, 8192, %s35, [#allocation6], 128, 128, 8
    $region17: #{feature_extractor.1} parent=1 // pred_fallthru
      _
    // Predicated region
    $region18: #{feature_extractor.1} parent=1 // pred_check
      _
    $region19: #{feature_extractor.1} parent=1 // pred_check_branch
      %42 = sbr.rel (0) target = $region21
    $region20: #{feature_extractor.1} parent=1 // pred_region
      _
    $region21: #{feature_extractor.1} parent=1 // pred_fallthru
      _
    // Predicated region
    $region22: #{feature_extractor.1} parent=1 // pred_check
      _
    $region23: #{feature_extractor.1} parent=1 // pred_check_branch
      %44 = sbr.rel (0) target = $region25
    $region24: #{feature_extractor.1} parent=1 // pred_region
      %45 = dma.done [#allocation3], 22528
    $region25: #{feature_extractor.1} parent=1 // pred_fallthru
      _
    // Predicated region
    $region26: #{feature_extractor.1} parent=1 // pred_check
      _
    $region27: #{feature_extractor.1} parent=1 // pred_check_branch
      %47 = sbr.rel (0) target = $region29
    $region28: #{feature_extractor.1} parent=1 // pred_region
      %48 = dma.done [#allocation6], 8192
    $region29: #{feature_extractor.1} parent=1 // pred_fallthru
      _
    %v50 = vld [vmem:[%s4] ss:$0 sm:$0xff]
    %v51 = vld [vmem:[%s4 + $0x1] ss:$0 sm:$0xff]
    %v52 = vld [vmem:[%s4 + $0x2] ss:$0 sm:$0xff]
    %v53 = vld [vmem:[%s4 + $0x3] ss:$0 sm:$0xff]
    %v54 = vld [vmem:[%s4 + $0x4] ss:$0 sm:$0xff]
    %v55 = vld [vmem:[%s4 + $0x5] ss:$0 sm:$0xff]
    %v56 = vld [vmem:[%s4 + $0x6] ss:$0 sm:$0xff]
    %v57 = vld [vmem:[%s4 + $0x7] ss:$0 sm:$0xff]
    %v58 = vld [vmem:[%s4 + $0x20] ss:$0 sm:$0xff]
    %v59 = vld [vmem:[%s4 + $0x60] sm:$0xff]
    %v60 = vld [vmem:[%s4 + $0x80] sm:$0xff]
    %s61 = scalar_lea.vmem %s4, 33
    %v62 = vld [vmem:[%s61] ss:$8 sm:$0x3]
    %s63 = scalar_lea.vmem %s4, 34
    %v64 = vld [vmem:[%s63] ss:$8 sm:$0x3]
    %s65 = scalar_lea.vmem %s4, 35
    %v66 = vld [vmem:[%s65] ss:$8 sm:$0x3]
    %s67 = scalar_lea.vmem %s4, 36
    %v68 = vld [vmem:[%s67] ss:$8 sm:$0x3]
    %s69 = scalar_lea.vmem %s4, 37
    %v70 = vld [vmem:[%s69] ss:$8 sm:$0x3]
    %s71 = scalar_lea.vmem %s4, 38
    %v72 = vld [vmem:[%s71] ss:$8 sm:$0x3]
    %s73 = scalar_lea.vmem %s4, 39
    %v74 = vld [vmem:[%s73] ss:$8 sm:$0x3]
    %s75 = scalar_lea.vmem %s4, 64
    %v76 = vld [vmem:[%s75] ss:$8 sm:$0x3]
    %s77 = scalar_lea.vmem %s4, 65
    %v78 = vld [vmem:[%s77] ss:$8 sm:$0x3]
    %s79 = scalar_lea.vmem %s4, 66
    %v80 = vld [vmem:[%s79] ss:$8 sm:$0xf]
    %v81 = vld [vmem:[%s0] sm:$0xf]
    %v82 = vld [vmem:[%s0 + $0x4] sm:$0xf]
    %v83 = vld [vmem:[%s0 + $0x8] sm:$0xf]
    %v84 = vld [vmem:[%s0 + $0xc] sm:$0xf]
    %v85 = vld [vmem:[%s1] sm:$0xff]
    %v86 = vld [vmem:[%s1 + $0x8] sm:$0xf]
    %v87 = vld [vmem:[%s1 + $0x24] sm:$0xff]
    %v88 = vld [vmem:[%s1 + $0x2c] sm:$0xf]
    %v89 = vld [vmem:[%s1 + $0x48] sm:$0xff]
    %v90 = vld [vmem:[%s1 + $0x50] sm:$0xf]
    %v91 = vld [vmem:[%s1 + $0x6c] sm:$0xff]
    %v92 = vld [vmem:[%s1 + $0x74] sm:$0xf]
    %v93 = vld [vmem:[%s1 + $0x90] sm:$0xff]
    %v94 = vld [vmem:[%s1 + $0x98] sm:$0xf]
    %v95 = vld [vmem:[%s1 + $0xb4] sm:$0xff]
    %v96 = vld [vmem:[%s1 + $0xbc] sm:$0xf]
    %v97 = vld [vmem:[%s1 + $0xd8] sm:$0xff]
    %v98 = vld [vmem:[%s1 + $0xe0] sm:$0xf]
    %v99 = vld [vmem:[%s1 + $0xfc] sm:$0xff]
    %v100 = vld [vmem:[%s1 + $0x104] sm:$0xf]
    %v101 = vld [vmem:[%s1 + $0x120] sm:$0xff]
    %v102 = vld [vmem:[%s1 + $0x128] sm:$0xf]
    %v103 = vld [vmem:[%s1 + $0x144] sm:$0xff]
    %v104 = vld [vmem:[%s1 + $0x14c] sm:$0xf]
    %v105 = vld [vmem:[%s1 + $0x168] sm:$0xff]
    %v106 = vld [vmem:[%s1 + $0x170] sm:$0xf]
    %v107 = vld [vmem:[%s1 + $0x18c] sm:$0xff]
    %v108 = vld [vmem:[%s1 + $0x194] sm:$0xf]
    %v109 = vld [vmem:[%s1 + $0x1b0] sm:$0xff]
    %v110 = vld [vmem:[%s1 + $0x1b8] sm:$0xf]
    %v111 = vld [vmem:[%s1 + $0x1d4] sm:$0xff]
    %v112 = vld [vmem:[%s1 + $0x1dc] sm:$0xf]
    %v113 = vld [vmem:[%s1 + $0x1f8] sm:$0xff]
    %v114 = vld [vmem:[%s1 + $0x200] sm:$0xf]
    %v115 = vld [vmem:[%s1 + $0x21c] sm:$0xff]
    %v116 = vld [vmem:[%s1 + $0x224] sm:$0xf]
    %v121 = vunpack.c.l.b16 %v81
    %v122 = vunpack.c.l.b16 %v82
    %v123 = vunpack.c.l.b16 %v83
    %v124 = vunpack.c.l.b16 %v84
    %v125 = vpack.c.b16 %v122, %v121
    %v126 = vpack.c.b16 %v124, %v123
    %v161 = vunpack.c.l.b16 %v85
    %v162 = vunpack.c.h.b16 %v85
    %v163 = vunpack.c.l.b16 %v86
    %v164 = vunpack.c.l.b16 %v87
    %v165 = vunpack.c.h.b16 %v87
    %v166 = vunpack.c.l.b16 %v88
    %v167 = vunpack.c.l.b16 %v89
    %v168 = vunpack.c.h.b16 %v89
    %v169 = vunpack.c.l.b16 %v90
    %v170 = vunpack.c.l.b16 %v91
    %v171 = vunpack.c.h.b16 %v91
    %v172 = vunpack.c.l.b16 %v92
    %v173 = vunpack.c.l.b16 %v93
    %v174 = vunpack.c.h.b16 %v93
    %v175 = vunpack.c.l.b16 %v94
    %v176 = vunpack.c.l.b16 %v95
    %v177 = vunpack.c.h.b16 %v95
    %v178 = vunpack.c.l.b16 %v96
    %v179 = vunpack.c.l.b16 %v97
    %v180 = vunpack.c.h.b16 %v97
    %v181 = vunpack.c.l.b16 %v98
    %v182 = vunpack.c.l.b16 %v99
    %v183 = vunpack.c.h.b16 %v99
    %v184 = vunpack.c.l.b16 %v100
    %v185 = vunpack.c.l.b16 %v101
    %v186 = vunpack.c.h.b16 %v101
    %v187 = vunpack.c.l.b16 %v102
    %v188 = vunpack.c.l.b16 %v103
    %v189 = vunpack.c.h.b16 %v103
    %v190 = vunpack.c.l.b16 %v104
    %v191 = vunpack.c.l.b16 %v105
    %v192 = vunpack.c.h.b16 %v105
    %v193 = vunpack.c.l.b16 %v106
    %v194 = vunpack.c.l.b16 %v107
    %v195 = vunpack.c.h.b16 %v107
    %v196 = vunpack.c.l.b16 %v108
    %v197 = vunpack.c.l.b16 %v109
    %v198 = vunpack.c.h.b16 %v109
    %v199 = vunpack.c.l.b16 %v110
    %v200 = vunpack.c.l.b16 %v111
    %v201 = vunpack.c.h.b16 %v111
    %v202 = vunpack.c.l.b16 %v112
    %v203 = vunpack.c.l.b16 %v113
    %v204 = vunpack.c.h.b16 %v113
    %v205 = vunpack.c.l.b16 %v114
    %v206 = vunpack.c.l.b16 %v115
    %v207 = vunpack.c.h.b16 %v115
    %v208 = vunpack.c.l.b16 %v116
    %v209 = vpack.c.b16 %v164, %v161
    %v210 = vpack.c.b16 %v165, %v162
    %v211 = vpack.c.b16 %v166, %v163
    %v212 = vpack.c.b16 %v170, %v167
    %v213 = vpack.c.b16 %v171, %v168
    %v214 = vpack.c.b16 %v172, %v169
    %v215 = vpack.c.b16 %v176, %v173
    %v216 = vpack.c.b16 %v177, %v174
    %v217 = vpack.c.b16 %v178, %v175
    %v218 = vpack.c.b16 %v182, %v179
    %v219 = vpack.c.b16 %v183, %v180
    %v220 = vpack.c.b16 %v184, %v181
    %v221 = vpack.c.b16 %v188, %v185
    %v222 = vpack.c.b16 %v189, %v186
    %v223 = vpack.c.b16 %v190, %v187
    %v224 = vpack.c.b16 %v194, %v191
    %v225 = vpack.c.b16 %v195, %v192
    %v226 = vpack.c.b16 %v196, %v193
    %v227 = vpack.c.b16 %v200, %v197
    %v228 = vpack.c.b16 %v201, %v198
    %v229 = vpack.c.b16 %v202, %v199
    %v230 = vpack.c.b16 %v206, %v203
    %v231 = vpack.c.b16 %v207, %v204
    %v232 = vpack.c.b16 %v208, %v205
    %257 = vmatprep.subr.bf16.mxu0 %v210
    %258 = vmatpush1.bf16.msra.mxu0 %v209
    %259 = vmatprep.subr.bf16.mxu0 %v213
    %260 = vmatpush1.bf16.msra.mxu0 %v212
    %261 = vmatprep.subr.bf16.mxu0 %v216
    %262 = vmatpush1.bf16.msra.mxu0 %v215
    %263 = vmatprep.subr.bf16.mxu0 %v219
    %264 = vmatpush1.bf16.msra.mxu0 %v218
    %265 = vmatprep.subr.bf16.mxu0 %v222
    %266 = vmatpush1.bf16.msra.mxu0 %v221
    %267 = vmatprep.subr.bf16.mxu0 %v225
    %268 = vmatpush1.bf16.msra.mxu0 %v224
    %269 = vmatprep.subr.bf16.mxu0 %v228
    %270 = vmatpush1.bf16.msra.mxu0 %v227
    %271 = vmatprep.subr.bf16.mxu0 %v231
    %272 = vmatpush1.bf16.msra.mxu0 %v230
    %273 = vmatprep.subr.bf16.mxu0 0
    %274 = vmatpush1.bf16.msra.mxu0 0
    %275 = vmatprep.subr.bf16.mxu0 0
    %276 = vmatpush1.bf16.msra.mxu0 0
    %277 = vmatprep.subr.bf16.mxu0 0
    %278 = vmatpush1.bf16.msra.mxu0 0
    %279 = vmatprep.subr.bf16.mxu0 0
    %280 = vmatpush1.bf16.msra.mxu0 0
    %281 = vmatprep.subr.bf16.mxu0 0
    %282 = vmatpush1.bf16.msra.mxu0 0
    %283 = vmatprep.subr.bf16.mxu0 0
    %284 = vmatpush1.bf16.msra.mxu0 0
    %285 = vmatprep.subr.bf16.mxu0 0
    %286 = vmatpush1.bf16.msra.mxu0 0
    %287 = vmatprep.subr.bf16.mxu0 0
    %288 = vmatpush1.bf16.msra.mxu0 0
    %289 = vmatprep.mubr.bf16.mxu0 0
    %290 = vmatmul.mubr.bf16.gmra.mrb[0].mxu0 %v125
    %v291 = vpop.f32.mrb[0].mxu0
    %v292 = vadd.f32 0.0, %v291
    %v293 = vpop.f32.mrb[0].mxu0
    %v294 = vadd.f32 0.0, %v293
    %v295 = vpop.f32.mrb[0].mxu0
    %v296 = vadd.f32 0.0, %v295
    %v297 = vpop.f32.mrb[0].mxu0
    %v298 = vadd.f32 0.0, %v297
    %299 = vmatprep.mubr.bf16.mxu0 0
    %300 = vmatmul.mubr.bf16.gmra.mrb[0].mxu0 %v126
    %v301 = vpop.f32.mrb[0].mxu0
    %v302 = vadd.f32 0.0, %v301
    %v303 = vpop.f32.mrb[0].mxu0
    %v304 = vadd.f32 0.0, %v303
    %v305 = vpop.f32.mrb[0].mxu0
    %v306 = vadd.f32 0.0, %v305
    %v307 = vpop.f32.mrb[0].mxu0
    %v308 = vadd.f32 0.0, %v307
    %309 = vdwg.mxu0
    %310 = vmatprep.subr.bf16.mxu0 0
    %311 = vmatpush1.bf16.msra.mxu0 %v211
    %312 = vmatprep.subr.bf16.mxu0 0
    %313 = vmatpush1.bf16.msra.mxu0 %v214
    %314 = vmatprep.subr.bf16.mxu0 0
    %315 = vmatpush1.bf16.msra.mxu0 %v217
    %316 = vmatprep.subr.bf16.mxu0 0
    %317 = vmatpush1.bf16.msra.mxu0 %v220
    %318 = vmatprep.subr.bf16.mxu0 0
    %319 = vmatpush1.bf16.msra.mxu0 %v223
    %320 = vmatprep.subr.bf16.mxu0 0
    %321 = vmatpush1.bf16.msra.mxu0 %v226
    %322 = vmatprep.subr.bf16.mxu0 0
    %323 = vmatpush1.bf16.msra.mxu0 %v229
    %324 = vmatprep.subr.bf16.mxu0 0
    %325 = vmatpush1.bf16.msra.mxu0 %v232
    %326 = vmatprep.subr.bf16.mxu0 0
    %327 = vmatpush1.bf16.msra.mxu0 0
    %328 = vmatprep.subr.bf16.mxu0 0
    %329 = vmatpush1.bf16.msra.mxu0 0
    %330 = vmatprep.subr.bf16.mxu0 0
    %331 = vmatpush1.bf16.msra.mxu0 0
    %332 = vmatprep.subr.bf16.mxu0 0
    %333 = vmatpush1.bf16.msra.mxu0 0
    %334 = vmatprep.subr.bf16.mxu0 0
    %335 = vmatpush1.bf16.msra.mxu0 0
    %336 = vmatprep.subr.bf16.mxu0 0
    %337 = vmatpush1.bf16.msra.mxu0 0
    %338 = vmatprep.subr.bf16.mxu0 0
    %339 = vmatpush1.bf16.msra.mxu0 0
    %340 = vmatprep.subr.bf16.mxu0 0
    %341 = vmatpush1.bf16.msra.mxu0 0
    %342 = vmatprep.mubr.bf16.mxu0 0
    %343 = vmatmul.mubr.bf16.gmra.mrb[0].mxu0 %v125
    %v344 = vpop.f32.mrb[0].mxu0
    %v345 = vadd.f32 0.0, %v344
    %v346 = vpop.f32.mrb[0].mxu0
    %v347 = vpop.f32.mrb[0].mxu0
    %v348 = vadd.f32 0.0, %v347
    %v349 = vpop.f32.mrb[0].mxu0
    %350 = vmatprep.mubr.bf16.mxu0 0
    %351 = vmatmul.mubr.bf16.gmra.mrb[0].mxu0 %v126
    %v352 = vpop.f32.mrb[0].mxu0
    %v353 = vadd.f32 0.0, %v352
    %v354 = vpop.f32.mrb[0].mxu0
    %v355 = vpop.f32.mrb[0].mxu0
    %v356 = vadd.f32 0.0, %v355
    %v357 = vpop.f32.mrb[0].mxu0
    %358 = vdwg.mxu0
    %v359 = vadd.f32 %v292, %v50
    %v360 = vadd.f32 %v296, %v50
    %v361 = vadd.f32 %v302, %v50
    %v362 = vadd.f32 %v306, %v50
    %v364 = vlaneseq
    %v365 = vshrl.u32 %v364, 7
    %v366 = vsub.s32 0, %v365
    %v367 = vrot.slane %v62, %v366
    %v368 = vlaneseq
    %v369 = vshrl.u32 %v368, 7
    %v370 = vsub.s32 1, %v369
    %v371 = vrot.slane %v62, %v370
    %v374 = vadd.f32 %v294, %v367
    %v375 = vadd.f32 %v345, %v371
    %v376 = vadd.f32 %v298, %v367
    %v377 = vadd.f32 %v348, %v371
    %v378 = vadd.f32 %v304, %v367
    %v379 = vadd.f32 %v353, %v371
    %v380 = vadd.f32 %v308, %v367
    %v381 = vadd.f32 %v356, %v371
    %v382 = vadd.f32 %v359, %v59
    %v383 = vadd.f32 %v360, %v60
    %v384 = vadd.f32 %v361, %v59
    %v385 = vadd.f32 %v362, %v60
    %386 = vadd.xlane.f32.xlu0 %v382
    %v387 = vpop.xlane.xlu0 %386
    %388 = vadd.xlane.f32.xlu0 %v383
    %v389 = vpop.xlane.xlu0 %388
    %390 = vadd.xlane.f32.xlu0 %v384
    %v391 = vpop.xlane.xlu0 %390
    %392 = vadd.xlane.f32.xlu0 %v385
    %v393 = vpop.xlane.xlu0 %392
    %v394 = vrcp.pop 128.0
    %v395 = vmul.f32 %v387, %v394
    %v396 = vmul.f32 %v389, %v394
    %v397 = vmul.f32 %v391, %v394
    %v398 = vmul.f32 %v393, %v394
    %v399 = vsub.f32 %v382, %v395
    %v400 = vsub.f32 %v383, %v396
    %v401 = vsub.f32 %v384, %v397
    %v402 = vsub.f32 %v385, %v398
    %v403 = vmul.f32 %v399, %v399
    %v404 = vmul.f32 %v400, %v400
    %v405 = vmul.f32 %v401, %v401
    %v406 = vmul.f32 %v402, %v402
    %407 = vadd.xlane.f32.xlu0 %v403
    %v408 = vpop.xlane.xlu0 %407
    %409 = vadd.xlane.f32.xlu0 %v404
    %v410 = vpop.xlane.xlu0 %409
    %411 = vadd.xlane.f32.xlu0 %v405
    %v412 = vpop.xlane.xlu0 %411
    %413 = vadd.xlane.f32.xlu0 %v406
    %v414 = vpop.xlane.xlu0 %413
    %v415 = vmul.f32 %v408, %v394
    %v416 = vmul.f32 %v410, %v394
    %v417 = vmul.f32 %v412, %v394
    %v418 = vmul.f32 %v414, %v394
    %v419 = vadd.f32 %v415, 1e-06
    %v420 = vadd.f32 %v416, 1e-06
    %v421 = vadd.f32 %v417, 1e-06
    %v422 = vadd.f32 %v418, 1e-06
    %v423 = vrsqrt.pop %v419
    %v424 = vrsqrt.pop %v420
    %v425 = vrsqrt.pop %v421
    %v426 = vrsqrt.pop %v422
    %v427 = vmul.f32 %v399, %v423
    %v428 = vmul.f32 %v400, %v424
    %v429 = vmul.f32 %v401, %v425
    %v430 = vmul.f32 %v402, %v426
    %v431 = vmul.f32 %v427, %v51
    %v432 = vmul.f32 %v428, %v51
    %v433 = vmul.f32 %v429, %v51
    %v434 = vmul.f32 %v430, %v51
    %v435 = vadd.f32 %v431, %v52
    %v436 = vadd.f32 %v432, %v52
    %v437 = vadd.f32 %v433, %v52
    %v438 = vadd.f32 %v434, %v52
    %439 = vadd.xlane.f32.xlu0 %v58
    %v440 = vpop.xlane.xlu0 %439
    %v441 = vmul.f32 %v440, %v394
    %v442 = vsub.f32 %v58, %v441
    %v443 = vmul.f32 %v442, %v442
    %444 = vadd.xlane.f32.xlu0 %v443
    %v445 = vpop.xlane.xlu0 %444
    %v446 = vmul.f32 %v445, %v394
    %v447 = vadd.f32 %v446, 1e-06
    %v448 = vrsqrt.pop %v447
    %v449 = vmul.f32 %v442, %v448
    %v450 = vmul.f32 %v449, %v51
    %v451 = vadd.f32 %v450, %v52
    %v452 = vld [vmem:[%s1 + $0xc] sm:$0xff]
    %v453 = vld [vmem:[%s1 + $0x14] sm:$0xf]
    %v454 = vld [vmem:[%s1 + $0x30] sm:$0xff]
    %v455 = vld [vmem:[%s1 + $0x38] sm:$0xf]
    %v456 = vld [vmem:[%s1 + $0x54] sm:$0xff]
    %v457 = vld [vmem:[%s1 + $0x5c] sm:$0xf]
    %v458 = vld [vmem:[%s1 + $0x78] sm:$0xff]
    %v459 = vld [vmem:[%s1 + $0x80] sm:$0xf]
    %v460 = vld [vmem:[%s1 + $0x9c] sm:$0xff]
    %v461 = vld [vmem:[%s1 + $0xa4] sm:$0xf]
    %v462 = vld [vmem:[%s1 + $0xc0] sm:$0xff]
    %v463 = vld [vmem:[%s1 + $0xc8] sm:$0xf]
    %v464 = vld [vmem:[%s1 + $0xe4] sm:$0xff]
    %v465 = vld [vmem:[%s1 + $0xec] sm:$0xf]
    %v466 = vld [vmem:[%s1 + $0x108] sm:$0xff]
    %v467 = vld [vmem:[%s1 + $0x110] sm:$0xf]
    %v468 = vld [vmem:[%s1 + $0x12c] sm:$0xff]
    %v469 = vld [vmem:[%s1 + $0x134] sm:$0xf]
    %v470 = vld [vmem:[%s1 + $0x150] sm:$0xff]
    %v471 = vld [vmem:[%s1 + $0x158] sm:$0xf]
    %v472 = vld [vmem:[%s1 + $0x174] sm:$0xff]
    %v473 = vld [vmem:[%s1 + $0x17c] sm:$0xf]
    %v474 = vld [vmem:[%s1 + $0x198] sm:$0xff]
    %v475 = vld [vmem:[%s1 + $0x1a0] sm:$0xf]
    %v476 = vld [vmem:[%s1 + $0x1bc] sm:$0xff]
    %v477 = vld [vmem:[%s1 + $0x1c4] sm:$0xf]
    %v478 = vld [vmem:[%s1 + $0x1e0] sm:$0xff]
    %v479 = vld [vmem:[%s1 + $0x1e8] sm:$0xf]
    %v480 = vld [vmem:[%s1 + $0x204] sm:$0xff]
    %v481 = vld [vmem:[%s1 + $0x20c] sm:$0xf]
    %v482 = vld [vmem:[%s1 + $0x228] sm:$0xff]
    %v483 = vld [vmem:[%s1 + $0x230] sm:$0xf]
    %v484 = vpack.c.bf16 %v436, %v435
    %v485 = vpack.c.bf16 %v438, %v437
    %v518 = vunpack.c.l.b16 %v452
    %v519 = vunpack.c.h.b16 %v452
    %v520 = vunpack.c.l.b16 %v453
    %v521 = vunpack.c.l.b16 %v454
    %v522 = vunpack.c.h.b16 %v454
    %v523 = vunpack.c.l.b16 %v455
    %v524 = vunpack.c.l.b16 %v456
    %v525 = vunpack.c.h.b16 %v456
    %v526 = vunpack.c.l.b16 %v457
    %v527 = vunpack.c.l.b16 %v458
    %v528 = vunpack.c.h.b16 %v458
    %v529 = vunpack.c.l.b16 %v459
    %v530 = vunpack.c.l.b16 %v460
    %v531 = vunpack.c.h.b16 %v460
    %v532 = vunpack.c.l.b16 %v461
    %v533 = vunpack.c.l.b16 %v462
    %v534 = vunpack.c.h.b16 %v462
    %v535 = vunpack.c.l.b16 %v463
    %v536 = vunpack.c.l.b16 %v464
    %v537 = vunpack.c.h.b16 %v464
    %v538 = vunpack.c.l.b16 %v465
    %v539 = vunpack.c.l.b16 %v466
    %v540 = vunpack.c.h.b16 %v466
    %v541 = vunpack.c.l.b16 %v467
    %v542 = vunpack.c.l.b16 %v468
    %v543 = vunpack.c.h.b16 %v468
    %v544 = vunpack.c.l.b16 %v469
    %v545 = vunpack.c.l.b16 %v470
    %v546 = vunpack.c.h.b16 %v470
    %v547 = vunpack.c.l.b16 %v471
    %v548 = vunpack.c.l.b16 %v472
    %v549 = vunpack.c.h.b16 %v472
    %v550 = vunpack.c.l.b16 %v473
    %v551 = vunpack.c.l.b16 %v474
    %v552 = vunpack.c.h.b16 %v474
    %v553 = vunpack.c.l.b16 %v475
    %v554 = vunpack.c.l.b16 %v476
    %v555 = vunpack.c.h.b16 %v476
    %v556 = vunpack.c.l.b16 %v477
    %v557 = vunpack.c.l.b16 %v478
    %v558 = vunpack.c.h.b16 %v478
    %v559 = vunpack.c.l.b16 %v479
    %v560 = vunpack.c.l.b16 %v480
    %v561 = vunpack.c.h.b16 %v480
    %v562 = vunpack.c.l.b16 %v481
    %v563 = vunpack.c.l.b16 %v482
    %v564 = vunpack.c.h.b16 %v482
    %v565 = vunpack.c.l.b16 %v483
    %v566 = vpack.c.b16 %v521, %v518
    %v567 = vpack.c.b16 %v522, %v519
    %v568 = vpack.c.b16 %v523, %v520
    %v569 = vpack.c.b16 %v527, %v524
    %v570 = vpack.c.b16 %v528, %v525
    %v571 = vpack.c.b16 %v529, %v526
    %v572 = vpack.c.b16 %v533, %v530
    %v573 = vpack.c.b16 %v534, %v531
    %v574 = vpack.c.b16 %v535, %v532
    %v575 = vpack.c.b16 %v539, %v536
    %v576 = vpack.c.b16 %v540, %v537
    %v577 = vpack.c.b16 %v541, %v538
    %v578 = vpack.c.b16 %v545, %v542
    %v579 = vpack.c.b16 %v546, %v543
    %v580 = vpack.c.b16 %v547, %v544
    %v581 = vpack.c.b16 %v551, %v548
    %v582 = vpack.c.b16 %v552, %v549
    %v583 = vpack.c.b16 %v553, %v550
    %v584 = vpack.c.b16 %v557, %v554
    %v585 = vpack.c.b16 %v558, %v555
    %v586 = vpack.c.b16 %v559, %v556
    %v587 = vpack.c.b16 %v563, %v560
    %v588 = vpack.c.b16 %v564, %v561
    %v589 = vpack.c.b16 %v565, %v562
    %614 = vmatprep.subr.bf16.mxu0 %v567
    %615 = vmatpush1.bf16.msra.mxu0 %v566
    %616 = vmatprep.subr.bf16.mxu0 %v570
    %617 = vmatpush1.bf16.msra.mxu0 %v569
    %618 = vmatprep.subr.bf16.mxu0 %v573
    %619 = vmatpush1.bf16.msra.mxu0 %v572
    %620 = vmatprep.subr.bf16.mxu0 %v576
    %621 = vmatpush1.bf16.msra.mxu0 %v575
    %622 = vmatprep.subr.bf16.mxu0 %v579
    %623 = vmatpush1.bf16.msra.mxu0 %v578
    %624 = vmatprep.subr.bf16.mxu0 %v582
    %625 = vmatpush1.bf16.msra.mxu0 %v581
    %626 = vmatprep.subr.bf16.mxu0 %v585
    %627 = vmatpush1.bf16.msra.mxu0 %v584
    %628 = vmatprep.subr.bf16.mxu0 %v588
    %629 = vmatpush1.bf16.msra.mxu0 %v587
    %630 = vmatprep.subr.bf16.mxu0 0
    %631 = vmatpush1.bf16.msra.mxu0 0
    %632 = vmatprep.subr.bf16.mxu0 0
    %633 = vmatpush1.bf16.msra.mxu0 0
    %634 = vmatprep.subr.bf16.mxu0 0
    %635 = vmatpush1.bf16.msra.mxu0 0
    %636 = vmatprep.subr.bf16.mxu0 0
    %637 = vmatpush1.bf16.msra.mxu0 0
    %638 = vmatprep.subr.bf16.mxu0 0
    %639 = vmatpush1.bf16.msra.mxu0 0
    %640 = vmatprep.subr.bf16.mxu0 0
    %641 = vmatpush1.bf16.msra.mxu0 0
    %642 = vmatprep.subr.bf16.mxu0 0
    %643 = vmatpush1.bf16.msra.mxu0 0
    %644 = vmatprep.subr.bf16.mxu0 0
    %645 = vmatpush1.bf16.msra.mxu0 0
    %646 = vmatprep.mubr.bf16.mxu0 0
    %647 = vmatmul.mubr.bf16.gmra.mrb[0].mxu0 %v484
    %v648 = vpop.f32.mrb[0].mxu0
    %v649 = vpop.f32.mrb[0].mxu0
    %v650 = vadd.f32 0.0, %v649
    %v651 = vpop.f32.mrb[0].mxu0
    %v652 = vpop.f32.mrb[0].mxu0
    %v653 = vadd.f32 0.0, %v652
    %654 = vmatprep.mubr.bf16.mxu0 0
    %655 = vmatmul.mubr.bf16.gmra.mrb[0].mxu0 %v485
    %v656 = vpop.f32.mrb[0].mxu0
    %v657 = vpop.f32.mrb[0].mxu0
    %v658 = vadd.f32 0.0, %v657
    %v659 = vpop.f32.mrb[0].mxu0
    %v660 = vpop.f32.mrb[0].mxu0
    %v661 = vadd.f32 0.0, %v660
    %662 = vdwg.mxu0
    %663 = vmatprep.subr.bf16.mxu0 0
    %664 = vmatpush1.bf16.msra.mxu0 %v568
    %665 = vmatprep.subr.bf16.mxu0 0
    %666 = vmatpush1.bf16.msra.mxu0 %v571
    %667 = vmatprep.subr.bf16.mxu0 0
    %668 = vmatpush1.bf16.msra.mxu0 %v574
    %669 = vmatprep.subr.bf16.mxu0 0
    %670 = vmatpush1.bf16.msra.mxu0 %v577
    %671 = vmatprep.subr.bf16.mxu0 0
    %672 = vmatpush1.bf16.msra.mxu0 %v580
    %673 = vmatprep.subr.bf16.mxu0 0
    %674 = vmatpush1.bf16.msra.mxu0 %v583
    %675 = vmatprep.subr.bf16.mxu0 0
    %676 = vmatpush1.bf16.msra.mxu0 %v586
    %677 = vmatprep.subr.bf16.mxu0 0
    %678 = vmatpush1.bf16.msra.mxu0 %v589
    %679 = vmatprep.subr.bf16.mxu0 0
    %680 = vmatpush1.bf16.msra.mxu0 0
    %681 = vmatprep.subr.bf16.mxu0 0
    %682 = vmatpush1.bf16.msra.mxu0 0
    %683 = vmatprep.subr.bf16.mxu0 0
    %684 = vmatpush1.bf16.msra.mxu0 0
    %685 = vmatprep.subr.bf16.mxu0 0
    %686 = vmatpush1.bf16.msra.mxu0 0
    %687 = vmatprep.subr.bf16.mxu0 0
    %688 = vmatpush1.bf16.msra.mxu0 0
    %689 = vmatprep.subr.bf16.mxu0 0
    %690 = vmatpush1.bf16.msra.mxu0 0
    %691 = vmatprep.subr.bf16.mxu0 0
    %692 = vmatpush1.bf16.msra.mxu0 0
    %693 = vmatprep.subr.bf16.mxu0 0
    %694 = vmatpush1.bf16.msra.mxu0 0
    %695 = vmatprep.mubr.bf16.mxu0 0
    %696 = vmatmul.mubr.bf16.gmra.mrb[0].mxu0 %v484
    %v697 = vpop.f32.mrb[0].mxu0
    %v698 = vadd.f32 0.0, %v697
    %v699 = vpop.f32.mrb[0].mxu0
    %v700 = vpop.f32.mrb[0].mxu0
    %v701 = vadd.f32 0.0, %v700
    %v702 = vpop.f32.mrb[0].mxu0
    %703 = vmatprep.mubr.bf16.mxu0 0
    %704 = vmatmul.mubr.bf16.gmra.mrb[0].mxu0 %v485
    %v705 = vpop.f32.mrb[0].mxu0
    %v706 = vadd.f32 0.0, %v705
    %v707 = vpop.f32.mrb[0].mxu0
    %v708 = vpop.f32.mrb[0].mxu0
    %v709 = vadd.f32 0.0, %v708
    %v710 = vpop.f32.mrb[0].mxu0
    %711 = vdwg.mxu0
    %v712 = vpack.c.bf16 %v451, %v451
    %713 = vmatprep.subr.bf16.mxu0 %v567
    %714 = vmatpush1.bf16.msra.mxu0 %v566
    %715 = vmatprep.subr.bf16.mxu0 %v570
    %716 = vmatpush1.bf16.msra.mxu0 %v569
    %717 = vmatprep.subr.bf16.mxu0 %v573
    %718 = vmatpush1.bf16.msra.mxu0 %v572
    %719 = vmatprep.subr.bf16.mxu0 %v576
    %720 = vmatpush1.bf16.msra.mxu0 %v575
    %721 = vmatprep.subr.bf16.mxu0 %v579
    %722 = vmatpush1.bf16.msra.mxu0 %v578
    %723 = vmatprep.subr.bf16.mxu0 %v582
    %724 = vmatpush1.bf16.msra.mxu0 %v581
    %725 = vmatprep.subr.bf16.mxu0 %v585
    %726 = vmatpush1.bf16.msra.mxu0 %v584
    %727 = vmatprep.subr.bf16.mxu0 %v588
    %728 = vmatpush1.bf16.msra.mxu0 %v587
    %729 = vmatprep.subr.bf16.mxu0 0
    %730 = vmatpush1.bf16.msra.mxu0 0
    %731 = vmatprep.subr.bf16.mxu0 0
    %732 = vmatpush1.bf16.msra.mxu0 0
    %733 = vmatprep.subr.bf16.mxu0 0
    %734 = vmatpush1.bf16.msra.mxu0 0
    %735 = vmatprep.subr.bf16.mxu0 0
    %736 = vmatpush1.bf16.msra.mxu0 0
    %737 = vmatprep.subr.bf16.mxu0 0
    %738 = vmatpush1.bf16.msra.mxu0 0
    %739 = vmatprep.subr.bf16.mxu0 0
    %740 = vmatpush1.bf16.msra.mxu0 0
    %741 = vmatprep.subr.bf16.mxu0 0
    %742 = vmatpush1.bf16.msra.mxu0 0
    %743 = vmatprep.subr.bf16.mxu0 0
    %744 = vmatpush1.bf16.msra.mxu0 0
    %745 = vmatprep.mubr.bf16.mxu0 0
    %746 = vmatmul.mubr.bf16.gmra.mrb[0].mxu0 %v712
    %v747 = vpop.f32.mrb[0].mxu0
    %v748 = vadd.f32 0.0, %v747
    %v749 = vpop.f32.mrb[0].mxu0
    %v750 = vadd.f32 0.0, %v749
    %v751 = vpop.f32.mrb[0].mxu0
    %v752 = vpop.f32.mrb[0].mxu0
    %753 = vdwg.mxu0
    %754 = vmatprep.subr.bf16.mxu0 0
    %755 = vmatpush1.bf16.msra.mxu0 %v568
    %756 = vmatprep.subr.bf16.mxu0 0
    %757 = vmatpush1.bf16.msra.mxu0 %v571
    %758 = vmatprep.subr.bf16.mxu0 0
    %759 = vmatpush1.bf16.msra.mxu0 %v574
    %760 = vmatprep.subr.bf16.mxu0 0
    %761 = vmatpush1.bf16.msra.mxu0 %v577
    %762 = vmatprep.subr.bf16.mxu0 0
    %763 = vmatpush1.bf16.msra.mxu0 %v580
    %764 = vmatprep.subr.bf16.mxu0 0
    %765 = vmatpush1.bf16.msra.mxu0 %v583
    %766 = vmatprep.subr.bf16.mxu0 0
    %767 = vmatpush1.bf16.msra.mxu0 %v586
    %768 = vmatprep.subr.bf16.mxu0 0
    %769 = vmatpush1.bf16.msra.mxu0 %v589
    %770 = vmatprep.subr.bf16.mxu0 0
    %771 = vmatpush1.bf16.msra.mxu0 0
    %772 = vmatprep.subr.bf16.mxu0 0
    %773 = vmatpush1.bf16.msra.mxu0 0
    %774 = vmatprep.subr.bf16.mxu0 0
    %775 = vmatpush1.bf16.msra.mxu0 0
    %776 = vmatprep.subr.bf16.mxu0 0
    %777 = vmatpush1.bf16.msra.mxu0 0
    %778 = vmatprep.subr.bf16.mxu0 0
    %779 = vmatpush1.bf16.msra.mxu0 0
    %780 = vmatprep.subr.bf16.mxu0 0
    %781 = vmatpush1.bf16.msra.mxu0 0
    %782 = vmatprep.subr.bf16.mxu0 0
    %783 = vmatpush1.bf16.msra.mxu0 0
    %784 = vmatprep.subr.bf16.mxu0 0
    %785 = vmatpush1.bf16.msra.mxu0 0
    %786 = vmatprep.mubr.bf16.mxu0 0
    %787 = vmatmul.mubr.bf16.gmra.mrb[0].mxu0 %v712
    %v788 = vpop.f32.mrb[0].mxu0
    %v789 = vadd.f32 0.0, %v788
    %v790 = vpop.f32.mrb[0].mxu0
    %v791 = vpop.f32.mrb[0].mxu0
    %v792 = vpop.f32.mrb[0].mxu0
    %793 = vdwg.mxu0
    %794 = vmatprep.subr.mxu0 0.0
    %795 = vmatpush1.xpose.msra.mxu0 %v650
    %796 = vmatprep.subr.mxu0 0.0
    %797 = vmatpush1.xpose.msra.mxu0 %v653
    %798 = vmatprep.subr.mxu0 0.0
    %799 = vmatpush1.xpose.msra.mxu0 0.0
    %800 = vmatprep.subr.mxu0 0.0
    %801 = vmatpush1.xpose.msra.mxu0 0.0
    %802 = vmatprep.subr.mxu0 0.0
    %803 = vmatpush1.xpose.msra.mxu0 0.0
    %804 = vmatprep.subr.mxu0 0.0
    %805 = vmatpush1.xpose.msra.mxu0 0.0
    %806 = vmatprep.subr.mxu0 0.0
    %807 = vmatpush1.xpose.msra.mxu0 0.0
    %808 = vmatprep.subr.mxu0 0.0
    %809 = vmatpush1.xpose.msra.mxu0 0.0
    %810 = vmatprep.subr.mxu0 0.0
    %811 = vmatpush1.xpose.msra.mxu0 0.0
    %812 = vmatprep.subr.mxu0 0.0
    %813 = vmatpush1.xpose.msra.mxu0 0.0
    %814 = vmatprep.subr.mxu0 0.0
    %815 = vmatpush1.xpose.msra.mxu0 0.0
    %816 = vmatprep.subr.mxu0 0.0
    %817 = vmatpush1.xpose.msra.mxu0 0.0
    %818 = vmatprep.subr.mxu0 0.0
    %819 = vmatpush1.xpose.msra.mxu0 0.0
    %820 = vmatprep.subr.mxu0 0.0
    %821 = vmatpush1.xpose.msra.mxu0 0.0
    %822 = vmatprep.subr.mxu0 0.0
    %823 = vmatpush1.xpose.msra.mxu0 0.0
    %824 = vmatprep.subr.mxu0 0.0
    %825 = vmatpush1.xpose.msra.mxu0 0.0
    %826 = vmatprep.subr.mxu0 0.0
    %827 = vmatpush1.xpose.msra.mxu0 0.0
    %828 = vmatprep.subr.mxu0 0.0
    %829 = vmatpush1.xpose.msra.mxu0 0.0
    %830 = vmatprep.subr.mxu0 0.0
    %831 = vmatpush1.xpose.msra.mxu0 0.0
    %832 = vmatprep.subr.mxu0 0.0
    %833 = vmatpush1.xpose.msra.mxu0 0.0
    %834 = vmatprep.subr.mxu0 0.0
    %835 = vmatpush1.xpose.msra.mxu0 0.0
    %836 = vmatprep.subr.mxu0 0.0
    %837 = vmatpush1.xpose.msra.mxu0 0.0
    %838 = vmatprep.subr.mxu0 0.0
    %839 = vmatpush1.xpose.msra.mxu0 0.0
    %840 = vmatprep.subr.mxu0 0.0
    %841 = vmatpush1.xpose.msra.mxu0 0.0
    %842 = vmatprep.subr.mxu0 0.0
    %843 = vmatpush1.xpose.msra.mxu0 0.0
    %844 = vmatprep.subr.mxu0 0.0
    %845 = vmatpush1.xpose.msra.mxu0 0.0
    %846 = vmatprep.subr.mxu0 0.0
    %847 = vmatpush1.xpose.msra.mxu0 0.0
    %848 = vmatprep.subr.mxu0 0.0
    %849 = vmatpush1.xpose.msra.mxu0 0.0
    %850 = vmatprep.subr.mxu0 0.0
    %851 = vmatpush1.xpose.msra.mxu0 0.0
    %852 = vmatprep.subr.mxu0 0.0
    %853 = vmatpush1.xpose.msra.mxu0 0.0
    %854 = vmatprep.subr.mxu0 0.0
    %855 = vmatpush1.xpose.msra.mxu0 0.0
    %856 = vmatprep.subr.mxu0 0.0
    %857 = vmatpush1.xpose.msra.mxu0 0.0
    %858 = vmatprep.mubr.f32.mxu0 0.0
    %859 = vmatmul.mubr.f32.gmra.mrb[0].mxu0 %v748
    %v860 = vpop.f32.mrb[0].mxu0
    %v861 = vadd.f32 0.0, %v860
    %v862 = vpop.f32.mrb[0].mxu0
    %863 = vdwg.mxu0
    %864 = vmatprep.subr.mxu0 0.0
    %865 = vmatpush1.xpose.msra.mxu0 %v658
    %866 = vmatprep.subr.mxu0 0.0
    %867 = vmatpush1.xpose.msra.mxu0 %v661
    %868 = vmatprep.subr.mxu0 0.0
    %869 = vmatpush1.xpose.msra.mxu0 0.0
    %870 = vmatprep.subr.mxu0 0.0
    %871 = vmatpush1.xpose.msra.mxu0 0.0
    %872 = vmatprep.subr.mxu0 0.0
    %873 = vmatpush1.xpose.msra.mxu0 0.0
    %874 = vmatprep.subr.mxu0 0.0
    %875 = vmatpush1.xpose.msra.mxu0 0.0
    %876 = vmatprep.subr.mxu0 0.0
    %877 = vmatpush1.xpose.msra.mxu0 0.0
    %878 = vmatprep.subr.mxu0 0.0
    %879 = vmatpush1.xpose.msra.mxu0 0.0
    %880 = vmatprep.subr.mxu0 0.0
    %881 = vmatpush1.xpose.msra.mxu0 0.0
    %882 = vmatprep.subr.mxu0 0.0
    %883 = vmatpush1.xpose.msra.mxu0 0.0
    %884 = vmatprep.subr.mxu0 0.0
    %885 = vmatpush1.xpose.msra.mxu0 0.0
    %886 = vmatprep.subr.mxu0 0.0
    %887 = vmatpush1.xpose.msra.mxu0 0.0
    %888 = vmatprep.subr.mxu0 0.0
    %889 = vmatpush1.xpose.msra.mxu0 0.0
    %890 = vmatprep.subr.mxu0 0.0
    %891 = vmatpush1.xpose.msra.mxu0 0.0
    %892 = vmatprep.subr.mxu0 0.0
    %893 = vmatpush1.xpose.msra.mxu0 0.0
    %894 = vmatprep.subr.mxu0 0.0
    %895 = vmatpush1.xpose.msra.mxu0 0.0
    %896 = vmatprep.subr.mxu0 0.0
    %897 = vmatpush1.xpose.msra.mxu0 0.0
    %898 = vmatprep.subr.mxu0 0.0
    %899 = vmatpush1.xpose.msra.mxu0 0.0
    %900 = vmatprep.subr.mxu0 0.0
    %901 = vmatpush1.xpose.msra.mxu0 0.0
    %902 = vmatprep.subr.mxu0 0.0
    %903 = vmatpush1.xpose.msra.mxu0 0.0
    %904 = vmatprep.subr.mxu0 0.0
    %905 = vmatpush1.xpose.msra.mxu0 0.0
    %906 = vmatprep.subr.mxu0 0.0
    %907 = vmatpush1.xpose.msra.mxu0 0.0
    %908 = vmatprep.subr.mxu0 0.0
    %909 = vmatpush1.xpose.msra.mxu0 0.0
    %910 = vmatprep.subr.mxu0 0.0
    %911 = vmatpush1.xpose.msra.mxu0 0.0
    %912 = vmatprep.subr.mxu0 0.0
    %913 = vmatpush1.xpose.msra.mxu0 0.0
    %914 = vmatprep.subr.mxu0 0.0
    %915 = vmatpush1.xpose.msra.mxu0 0.0
    %916 = vmatprep.subr.mxu0 0.0
    %917 = vmatpush1.xpose.msra.mxu0 0.0
    %918 = vmatprep.subr.mxu0 0.0
    %919 = vmatpush1.xpose.msra.mxu0 0.0
    %920 = vmatprep.subr.mxu0 0.0
    %921 = vmatpush1.xpose.msra.mxu0 0.0
    %922 = vmatprep.subr.mxu0 0.0
    %923 = vmatpush1.xpose.msra.mxu0 0.0
    %924 = vmatprep.subr.mxu0 0.0
    %925 = vmatpush1.xpose.msra.mxu0 0.0
    %926 = vmatprep.subr.mxu0 0.0
    %927 = vmatpush1.xpose.msra.mxu0 0.0
    %928 = vmatprep.mubr.f32.mxu0 0.0
    %929 = vmatmul.mubr.f32.gmra.mrb[0].mxu0 %v748
    %v930 = vpop.f32.mrb[0].mxu0
    %v931 = vadd.f32 0.0, %v930
    %v932 = vpop.f32.mrb[0].mxu0
    %933 = vdwg.mxu0
    %v934 = vmul.f32 %v748, %v750
    %vm935 = vcmask 1040384
    %v936 = vsel %vm935, %v934, 0.0
    %937 = vadd.xlane.f32.xlu0 %v936
    %v938 = vpop.xlane.xlu0 %937
    %vm939 = vcmask 122880
    %v940 = vsel %vm939, %v861, -inf
    %941 = vmax.xlane.f32.xlu0 %v940
    %v942 = vpop.xlane.xlu0 %941
    %v943 = vsel %vm939, %v931, -inf
    %944 = vmax.xlane.f32.xlu0 %v943
    %v945 = vpop.xlane.xlu0 %944
    %v946 = vmax.f32 %v942, %v938
    %v947 = vmax.f32 %v945, %v938
    %v948 = vsub.f32 %v861, %v946
    %v949 = vsub.f32 %v931, %v947
    %v950 = vmul.f32 %v948, 1.442695
    %v951 = vpow.pop %v950
    %v952 = vmul.f32 %v949, 1.442695
    %v953 = vpow.pop %v952
    %v954 = vsub.f32 %v938, %v946
    %v955 = vsub.f32 %v938, %v947
    %v956 = vmul.f32 %v954, 1.442695
    %v957 = vpow.pop %v956
    %v958 = vmul.f32 %v955, 1.442695
    %v959 = vpow.pop %v958
    %v960 = vsel %vm939, %v951, 0.0
    %961 = vadd.xlane.f32.xlu0 %v960
    %v962 = vpop.xlane.xlu0 %961
    %v963 = vsel %vm939, %v953, 0.0
    %964 = vadd.xlane.f32.xlu0 %v963
    %v965 = vpop.xlane.xlu0 %964
    %v966 = vadd.f32 %v962, %v957
    %v967 = vadd.f32 %v965, %v959
    %v968 = vrcp.pop %v966
    %v969 = vrcp.pop %v967
    %v970 = vmul.f32 %v951, %v968
    %v971 = vmul.f32 %v953, %v969
    %v972 = vmul.f32 %v957, %v968
    %v973 = vmul.f32 %v959, %v969
    %v974 = vmul.f32 %v972, %v789
    %v975 = vmul.f32 %v973, %v789
    %vm976 = vcmask 130048
    %v978 = vsel %vm976, %v970, 0
    %980 = vmatprep.subr.mxu0 0.0
    %981 = vmatpush1.msra.mxu0 %v698
    %982 = vmatprep.subr.mxu0 0.0
    %983 = vmatpush1.msra.mxu0 %v701
    %984 = vmatprep.subr.mxu0 0.0
    %985 = vmatpush1.msra.mxu0 0.0
    %986 = vmatprep.subr.mxu0 0.0
    %987 = vmatpush1.msra.mxu0 0.0
    %988 = vmatprep.subr.mxu0 0.0
    %989 = vmatpush1.msra.mxu0 0.0
    %990 = vmatprep.subr.mxu0 0.0
    %991 = vmatpush1.msra.mxu0 0.0
    %992 = vmatprep.subr.mxu0 0.0
    %993 = vmatpush1.msra.mxu0 0.0
    %994 = vmatprep.subr.mxu0 0.0
    %995 = vmatpush1.msra.mxu0 0.0
    %996 = vmatprep.subr.mxu0 0.0
    %997 = vmatpush1.msra.mxu0 0.0
    %998 = vmatprep.subr.mxu0 0.0
    %999 = vmatpush1.msra.mxu0 0.0
    %1000 = vmatprep.subr.mxu0 0.0
    %1001 = vmatpush1.msra.mxu0 0.0
    %1002 = vmatprep.subr.mxu0 0.0
    %1003 = vmatpush1.msra.mxu0 0.0
    %1004 = vmatprep.subr.mxu0 0.0
    %1005 = vmatpush1.msra.mxu0 0.0
    %1006 = vmatprep.subr.mxu0 0.0
    %1007 = vmatpush1.msra.mxu0 0.0
    %1008 = vmatprep.subr.mxu0 0.0
    %1009 = vmatpush1.msra.mxu0 0.0
    %1010 = vmatprep.subr.mxu0 0.0
    %1011 = vmatpush1.msra.mxu0 0.0
    %1012 = vmatprep.subr.mxu0 0.0
    %1013 = vmatpush1.msra.mxu0 0.0
    %1014 = vmatprep.subr.mxu0 0.0
    %1015 = vmatpush1.msra.mxu0 0.0
    %1016 = vmatprep.subr.mxu0 0.0
    %1017 = vmatpush1.msra.mxu0 0.0
    %1018 = vmatprep.subr.mxu0 0.0
    %1019 = vmatpush1.msra.mxu0 0.0
    %1020 = vmatprep.subr.mxu0 0.0
    %1021 = vmatpush1.msra.mxu0 0.0
    %1022 = vmatprep.subr.mxu0 0.0
    %1023 = vmatpush1.msra.mxu0 0.0
    %1024 = vmatprep.subr.mxu0 0.0
    %1025 = vmatpush1.msra.mxu0 0.0
    %1026 = vmatprep.subr.mxu0 0.0
    %1027 = vmatpush1.msra.mxu0 0.0
    %1028 = vmatprep.subr.mxu0 0.0
    %1029 = vmatpush1.msra.mxu0 0.0
    %1030 = vmatprep.subr.mxu0 0.0
    %1031 = vmatpush1.msra.mxu0 0.0
    %1032 = vmatprep.subr.mxu0 0.0
    %1033 = vmatpush1.msra.mxu0 0.0
    %1034 = vmatprep.subr.mxu0 0.0
    %1035 = vmatpush1.msra.mxu0 0.0
    %1036 = vmatprep.subr.mxu0 0.0
    %1037 = vmatpush1.msra.mxu0 0.0
    %1038 = vmatprep.subr.mxu0 0.0
    %1039 = vmatpush1.msra.mxu0 0.0
    %1040 = vmatprep.subr.mxu0 0.0
    %1041 = vmatpush1.msra.mxu0 0.0
    %1042 = vmatprep.subr.mxu0 0.0
    %1043 = vmatpush1.msra.mxu0 0.0
    %1044 = vmatprep.mubr.f32.mxu0 0.0
    %1045 = vmatmul.mubr.f32.gmra.mrb[0].mxu0 %v978
    %v1046 = vpop.f32.mrb[0].mxu0
    %v1047 = vadd.f32 %v974, %v1046
    %v1048 = vpop.f32.mrb[0].mxu0
    %1049 = vdwg.mxu0
    %v1051 = vsel %vm976, %v971, 0
    %1053 = vmatprep.subr.mxu0 0.0
    %1054 = vmatpush1.msra.mxu0 %v706
    %1055 = vmatprep.subr.mxu0 0.0
    %1056 = vmatpush1.msra.mxu0 %v709
    %1057 = vmatprep.subr.mxu0 0.0
    %1058 = vmatpush1.msra.mxu0 0.0
    %1059 = vmatprep.subr.mxu0 0.0
    %1060 = vmatpush1.msra.mxu0 0.0
    %1061 = vmatprep.subr.mxu0 0.0
    %1062 = vmatpush1.msra.mxu0 0.0
    %1063 = vmatprep.subr.mxu0 0.0
    %1064 = vmatpush1.msra.mxu0 0.0
    %1065 = vmatprep.subr.mxu0 0.0
    %1066 = vmatpush1.msra.mxu0 0.0
    %1067 = vmatprep.subr.mxu0 0.0
    %1068 = vmatpush1.msra.mxu0 0.0
    %1069 = vmatprep.subr.mxu0 0.0
    %1070 = vmatpush1.msra.mxu0 0.0
    %1071 = vmatprep.subr.mxu0 0.0
    %1072 = vmatpush1.msra.mxu0 0.0
    %1073 = vmatprep.subr.mxu0 0.0
    %1074 = vmatpush1.msra.mxu0 0.0
    %1075 = vmatprep.subr.mxu0 0.0
    %1076 = vmatpush1.msra.mxu0 0.0
    %1077 = vmatprep.subr.mxu0 0.0
    %1078 = vmatpush1.msra.mxu0 0.0
    %1079 = vmatprep.subr.mxu0 0.0
    %1080 = vmatpush1.msra.mxu0 0.0
    %1081 = vmatprep.subr.mxu0 0.0
    %1082 = vmatpush1.msra.mxu0 0.0
    %1083 = vmatprep.subr.mxu0 0.0
    %1084 = vmatpush1.msra.mxu0 0.0
    %1085 = vmatprep.subr.mxu0 0.0
    %1086 = vmatpush1.msra.mxu0 0.0
    %1087 = vmatprep.subr.mxu0 0.0
    %1088 = vmatpush1.msra.mxu0 0.0
    %1089 = vmatprep.subr.mxu0 0.0
    %1090 = vmatpush1.msra.mxu0 0.0
    %1091 = vmatprep.subr.mxu0 0.0
    %1092 = vmatpush1.msra.mxu0 0.0
    %1093 = vmatprep.subr.mxu0 0.0
    %1094 = vmatpush1.msra.mxu0 0.0
    %1095 = vmatprep.subr.mxu0 0.0
    %1096 = vmatpush1.msra.mxu0 0.0
    %1097 = vmatprep.subr.mxu0 0.0
    %1098 = vmatpush1.msra.mxu0 0.0
    %1099 = vmatprep.subr.mxu0 0.0
    %1100 = vmatpush1.msra.mxu0 0.0
    %1101 = vmatprep.subr.mxu0 0.0
    %1102 = vmatpush1.msra.mxu0 0.0
    %1103 = vmatprep.subr.mxu0 0.0
    %1104 = vmatpush1.msra.mxu0 0.0
    %1105 = vmatprep.subr.mxu0 0.0
    %1106 = vmatpush1.msra.mxu0 0.0
    %1107 = vmatprep.subr.mxu0 0.0
    %1108 = vmatpush1.msra.mxu0 0.0
    %1109 = vmatprep.subr.mxu0 0.0
    %1110 = vmatpush1.msra.mxu0 0.0
    %1111 = vmatprep.subr.mxu0 0.0
    %1112 = vmatpush1.msra.mxu0 0.0
    %1113 = vmatprep.subr.mxu0 0.0
    %1114 = vmatpush1.msra.mxu0 0.0
    %1115 = vmatprep.subr.mxu0 0.0
    %1116 = vmatpush1.msra.mxu0 0.0
    %1117 = vmatprep.mubr.f32.mxu0 0.0
    %1118 = vmatmul.mubr.f32.gmra.mrb[0].mxu0 %v1051
    %v1119 = vpop.f32.mrb[0].mxu0
    %v1120 = vadd.f32 %v975, %v1119
    %v1121 = vpop.f32.mrb[0].mxu0
    %1122 = vdwg.mxu0
    %v1123 = vpack.c.bf16 %v1047, %v1047
    %v1124 = vpack.c.bf16 %v1120, %v1120
    %v1125 = vld [vmem:[%s1 + $0x18] sm:$0xf]
    %v1126 = vld [vmem:[%s1 + $0x3c] sm:$0xf]
    %v1127 = vld [vmem:[%s1 + $0x60] sm:$0xf]
    %v1128 = vld [vmem:[%s1 + $0x84] sm:$0xf]
    %v1129 = vld [vmem:[%s1 + $0xa8] sm:$0xf]
    %v1130 = vld [vmem:[%s1 + $0xcc] sm:$0xf]
    %v1131 = vld [vmem:[%s1 + $0xf0] sm:$0xf]
    %v1132 = vld [vmem:[%s1 + $0x114] sm:$0xf]
    %v1133 = vld [vmem:[%s1 + $0x138] sm:$0xf]
    %v1134 = vld [vmem:[%s1 + $0x15c] sm:$0xf]
    %v1135 = vld [vmem:[%s1 + $0x180] sm:$0xf]
    %v1136 = vld [vmem:[%s1 + $0x1a4] sm:$0xf]
    %v1137 = vld [vmem:[%s1 + $0x1c8] sm:$0xf]
    %v1138 = vld [vmem:[%s1 + $0x1ec] sm:$0xf]
    %v1139 = vld [vmem:[%s1 + $0x210] sm:$0xf]
    %v1140 = vld [vmem:[%s1 + $0x234] sm:$0xf]
    %v1143 = vunpack.c.l.b16 %v1123
    %v1144 = vunpack.c.l.b16 %v1124
    %v1145 = vrot.slane %v1144, 7
    %vm1146 = vcmask 1041409
    %v1147 = vsel %vm1146, %v1145, %v1143
    %v1148 = vpack.c.b16 %v1147, %v1147
    %v1166 = vunpack.c.l.b16 %v1125
    %v1167 = vunpack.c.l.b16 %v1126
    %v1168 = vunpack.c.l.b16 %v1127
    %v1169 = vunpack.c.l.b16 %v1128
    %v1170 = vunpack.c.l.b16 %v1129
    %v1171 = vunpack.c.l.b16 %v1130
    %v1172 = vunpack.c.l.b16 %v1131
    %v1173 = vunpack.c.l.b16 %v1132
    %v1174 = vunpack.c.l.b16 %v1133
    %v1175 = vunpack.c.l.b16 %v1134
    %v1176 = vunpack.c.l.b16 %v1135
    %v1177 = vunpack.c.l.b16 %v1136
    %v1178 = vunpack.c.l.b16 %v1137
    %v1179 = vunpack.c.l.b16 %v1138
    %v1180 = vunpack.c.l.b16 %v1139
    %v1181 = vunpack.c.l.b16 %v1140
    %v1182 = vpack.c.b16 %v1167, %v1166
    %v1183 = vpack.c.b16 %v1169, %v1168
    %v1184 = vpack.c.b16 %v1171, %v1170
    %v1185 = vpack.c.b16 %v1173, %v1172
    %v1186 = vpack.c.b16 %v1175, %v1174
    %v1187 = vpack.c.b16 %v1177, %v1176
    %v1188 = vpack.c.b16 %v1179, %v1178
    %v1189 = vpack.c.b16 %v1181, %v1180
    %1198 = vmatprep.subr.bf16.mxu0 0
    %1199 = vmatpush1.bf16.msra.mxu0 %v1182
    %1200 = vmatprep.subr.bf16.mxu0 0
    %1201 = vmatpush1.bf16.msra.mxu0 %v1183
    %1202 = vmatprep.subr.bf16.mxu0 0
    %1203 = vmatpush1.bf16.msra.mxu0 %v1184
    %1204 = vmatprep.subr.bf16.mxu0 0
    %1205 = vmatpush1.bf16.msra.mxu0 %v1185
    %1206 = vmatprep.subr.bf16.mxu0 0
    %1207 = vmatpush1.bf16.msra.mxu0 %v1186
    %1208 = vmatprep.subr.bf16.mxu0 0
    %1209 = vmatpush1.bf16.msra.mxu0 %v1187
    %1210 = vmatprep.subr.bf16.mxu0 0
    %1211 = vmatpush1.bf16.msra.mxu0 %v1188
    %1212 = vmatprep.subr.bf16.mxu0 0
    %1213 = vmatpush1.bf16.msra.mxu0 %v1189
    %1214 = vmatprep.subr.bf16.mxu0 0
    %1215 = vmatpush1.bf16.msra.mxu0 0
    %1216 = vmatprep.subr.bf16.mxu0 0
    %1217 = vmatpush1.bf16.msra.mxu0 0
    %1218 = vmatprep.subr.bf16.mxu0 0
    %1219 = vmatpush1.bf16.msra.mxu0 0
    %1220 = vmatprep.subr.bf16.mxu0 0
    %1221 = vmatpush1.bf16.msra.mxu0 0
    %1222 = vmatprep.subr.bf16.mxu0 0
    %1223 = vmatpush1.bf16.msra.mxu0 0
    %1224 = vmatprep.subr.bf16.mxu0 0
    %1225 = vmatpush1.bf16.msra.mxu0 0
    %1226 = vmatprep.subr.bf16.mxu0 0
    %1227 = vmatpush1.bf16.msra.mxu0 0
    %1228 = vmatprep.subr.bf16.mxu0 0
    %1229 = vmatpush1.bf16.msra.mxu0 0
    %1230 = vmatprep.mubr.bf16.mxu0 0
    %1231 = vmatmul.mubr.bf16.gmra.mrb[0].mxu0 %v1148
    %v1232 = vpop.f32.mrb[0].mxu0
    %v1233 = vadd.f32 0.0, %v1232
    %v1234 = vpop.f32.mrb[0].mxu0
    %v1235 = vpop.f32.mrb[0].mxu0
    %v1236 = vpop.f32.mrb[0].mxu0
    %1237 = vdwg.mxu0
    %v1238 = vadd.f32 %v58, %v1233
    %vm1239 = vcmask 1041408
    %v1240 = vsel %vm1239, %v1238, 0.0
    %1241 = vadd.xlane.f32.xlu0 %v1240
    %v1242 = vpop.xlane.xlu0 %1241
    %v1243 = vmul.f32 %v1242, %v394
    %v1244 = vsub.f32 %v1238, %v1243
    %v1245 = vmul.f32 %v1244, %v1244
    %v1246 = vsel %vm1239, %v1245, 0.0
    %1247 = vadd.xlane.f32.xlu0 %v1246
    %v1248 = vpop.xlane.xlu0 %1247
    %v1249 = vmul.f32 %v1248, %v394
    %v1250 = vadd.f32 %v1249, 1e-06
    %v1251 = vrsqrt.pop %v1250
    %v1252 = vmul.f32 %v1244, %v1251
    %v1253 = vmul.f32 %v1252, %v53
    %v1254 = vadd.f32 %v1253, %v54
    %v1255 = vpack.c.bf16 %v1254, %v1254
    %v1256 = vld [vmem:[%s1 + $0x1c] sm:$0xff]
    %v1257 = vld [vmem:[%s1 + $0x40] sm:$0xff]
    %v1258 = vld [vmem:[%s1 + $0x64] sm:$0xff]
    %v1259 = vld [vmem:[%s1 + $0x88] sm:$0xff]
    %v1260 = vld [vmem:[%s1 + $0xac] sm:$0xff]
    %v1261 = vld [vmem:[%s1 + $0xd0] sm:$0xff]
    %v1262 = vld [vmem:[%s1 + $0xf4] sm:$0xff]
    %v1263 = vld [vmem:[%s1 + $0x118] sm:$0xff]
    %v1264 = vld [vmem:[%s1 + $0x13c] sm:$0xff]
    %v1265 = vld [vmem:[%s1 + $0x160] sm:$0xff]
    %v1266 = vld [vmem:[%s1 + $0x184] sm:$0xff]
    %v1267 = vld [vmem:[%s1 + $0x1a8] sm:$0xff]
    %v1268 = vld [vmem:[%s1 + $0x1cc] sm:$0xff]
    %v1269 = vld [vmem:[%s1 + $0x1f0] sm:$0xff]
    %v1270 = vld [vmem:[%s1 + $0x214] sm:$0xff]
    %v1271 = vld [vmem:[%s1 + $0x238] sm:$0xff]
    %v1273 = vlaneseq
    %v1274 = vshrl.u32 %v1273, 7
    %v1275 = vsub.s32 0, %v1274
    %v1276 = vrot.slane %v72, %v1275
    %v1277 = vlaneseq
    %v1278 = vshrl.u32 %v1277, 7
    %v1279 = vsub.s32 1, %v1278
    %v1280 = vrot.slane %v72, %v1279
    %v1299 = vunpack.c.l.b16 %v1256
    %v1300 = vunpack.c.h.b16 %v1256
    %v1301 = vunpack.c.l.b16 %v1257
    %v1302 = vunpack.c.h.b16 %v1257
    %v1303 = vunpack.c.l.b16 %v1258
    %v1304 = vunpack.c.h.b16 %v1258
    %v1305 = vunpack.c.l.b16 %v1259
    %v1306 = vunpack.c.h.b16 %v1259
    %v1307 = vunpack.c.l.b16 %v1260
    %v1308 = vunpack.c.h.b16 %v1260
    %v1309 = vunpack.c.l.b16 %v1261
    %v1310 = vunpack.c.h.b16 %v1261
    %v1311 = vunpack.c.l.b16 %v1262
    %v1312 = vunpack.c.h.b16 %v1262
    %v1313 = vunpack.c.l.b16 %v1263
    %v1314 = vunpack.c.h.b16 %v1263
    %v1315 = vunpack.c.l.b16 %v1264
    %v1316 = vunpack.c.h.b16 %v1264
    %v1317 = vunpack.c.l.b16 %v1265
    %v1318 = vunpack.c.h.b16 %v1265
    %v1319 = vunpack.c.l.b16 %v1266
    %v1320 = vunpack.c.h.b16 %v1266
    %v1321 = vunpack.c.l.b16 %v1267
    %v1322 = vunpack.c.h.b16 %v1267
    %v1323 = vunpack.c.l.b16 %v1268
    %v1324 = vunpack.c.h.b16 %v1268
    %v1325 = vunpack.c.l.b16 %v1269
    %v1326 = vunpack.c.h.b16 %v1269
    %v1327 = vunpack.c.l.b16 %v1270
    %v1328 = vunpack.c.h.b16 %v1270
    %v1329 = vunpack.c.l.b16 %v1271
    %v1330 = vunpack.c.h.b16 %v1271
    %v1331 = vpack.c.b16 %v1301, %v1299
    %v1332 = vpack.c.b16 %v1302, %v1300
    %v1333 = vpack.c.b16 %v1305, %v1303
    %v1334 = vpack.c.b16 %v1306, %v1304
    %v1335 = vpack.c.b16 %v1309, %v1307
    %v1336 = vpack.c.b16 %v1310, %v1308
    %v1337 = vpack.c.b16 %v1313, %v1311
    %v1338 = vpack.c.b16 %v1314, %v1312
    %v1339 = vpack.c.b16 %v1317, %v1315
    %v1340 = vpack.c.b16 %v1318, %v1316
    %v1341 = vpack.c.b16 %v1321, %v1319
    %v1342 = vpack.c.b16 %v1322, %v1320
    %v1343 = vpack.c.b16 %v1325, %v1323
    %v1344 = vpack.c.b16 %v1326, %v1324
    %v1345 = vpack.c.b16 %v1329, %v1327
    %v1346 = vpack.c.b16 %v1330, %v1328
    %1363 = vmatprep.subr.bf16.mxu0 %v1332
    %1364 = vmatpush1.bf16.msra.mxu0 %v1331
    %1365 = vmatprep.subr.bf16.mxu0 %v1334
    %1366 = vmatpush1.bf16.msra.mxu0 %v1333
    %1367 = vmatprep.subr.bf16.mxu0 %v1336
    %1368 = vmatpush1.bf16.msra.mxu0 %v1335
    %1369 = vmatprep.subr.bf16.mxu0 %v1338
    %1370 = vmatpush1.bf16.msra.mxu0 %v1337
    %1371 = vmatprep.subr.bf16.mxu0 %v1340
    %1372 = vmatpush1.bf16.msra.mxu0 %v1339
    %1373 = vmatprep.subr.bf16.mxu0 %v1342
    %1374 = vmatpush1.bf16.msra.mxu0 %v1341
    %1375 = vmatprep.subr.bf16.mxu0 %v1344
    %1376 = vmatpush1.bf16.msra.mxu0 %v1343
    %1377 = vmatprep.subr.bf16.mxu0 %v1346
    %1378 = vmatpush1.bf16.msra.mxu0 %v1345
    %1379 = vmatprep.subr.bf16.mxu0 0
    %1380 = vmatpush1.bf16.msra.mxu0 0
    %1381 = vmatprep.subr.bf16.mxu0 0
    %1382 = vmatpush1.bf16.msra.mxu0 0
    %1383 = vmatprep.subr.bf16.mxu0 0
    %1384 = vmatpush1.bf16.msra.mxu0 0
    %1385 = vmatprep.subr.bf16.mxu0 0
    %1386 = vmatpush1.bf16.msra.mxu0 0
    %1387 = vmatprep.subr.bf16.mxu0 0
    %1388 = vmatpush1.bf16.msra.mxu0 0
    %1389 = vmatprep.subr.bf16.mxu0 0
    %1390 = vmatpush1.bf16.msra.mxu0 0
    %1391 = vmatprep.subr.bf16.mxu0 0
    %1392 = vmatpush1.bf16.msra.mxu0 0
    %1393 = vmatprep.subr.bf16.mxu0 0
    %1394 = vmatpush1.bf16.msra.mxu0 0
    %1395 = vmatprep.mubr.bf16.mxu0 0
    %1396 = vmatmul.mubr.bf16.gmra.mrb[0].mxu0 %v1255
    %v1397 = vpop.f32.mrb[0].mxu0
    %v1398 = vadd.f32 %v1276, %v1397
    %v1399 = vpop.f32.mrb[0].mxu0
    %v1400 = vadd.f32 %v1280, %v1399
    %v1401 = vpop.f32.mrb[0].mxu0
    %v1402 = vpop.f32.mrb[0].mxu0
    %1403 = vdwg.mxu0
    %v1404 = vmul.f32 %v1398, %v1398
    %v1405 = vmul.f32 %v1400, %v1400
    %v1406 = vmul.f32 %v1398, %v1404
    %v1407 = vmul.f32 %v1400, %v1405
    %v1408 = vmul.f32 %v1406, 0.044715
    %v1409 = vmul.f32 %v1407, 0.044715
    %v1410 = vadd.f32 %v1398, %v1408
    %v1411 = vadd.f32 %v1400, %v1409
    %v1412 = vmul.f32 %v1410, 0.7978846
    %v1413 = vmul.f32 %v1411, 0.7978846
    %v1414 = vtanh.pop %v1412
    %v1415 = vtanh.pop %v1413
    %v1416 = vadd.f32 %v1414, 1.0
    %v1417 = vadd.f32 %v1415, 1.0
    %v1418 = vmul.f32 %v1416, 0.5
    %v1419 = vmul.f32 %v1417, 0.5
    %v1420 = vmul.f32 %v1398, %v1418
    %v1421 = vmul.f32 %v1400, %v1419
    %v1422 = vpack.c.bf16 %v1420, %v1420
    %v1423 = vpack.c.bf16 %v1421, %v1421
    %v1424 = vld [vmem:[#allocation2 + $0x28] sm:$0xf]
    %v1425 = vld [vmem:[#allocation2 + $0x54] sm:$0xf]
    %v1426 = vld [vmem:[#allocation2 + $0x80] sm:$0xf]
    %v1427 = vld [vmem:[#allocation2 + $0xac] sm:$0xf]
    %v1428 = vld [vmem:[#allocation2 + $0xd8] sm:$0xf]
    %v1429 = vld [vmem:[#allocation2 + $0x104] sm:$0xf]
    %v1430 = vld [vmem:[#allocation2 + $0x130] sm:$0xf]
    %v1431 = vld [vmem:[#allocation2 + $0x15c] sm:$0xf]
    %v1432 = vld [vmem:[#allocation2 + $0x188] sm:$0xf]
    %v1433 = vld [vmem:[#allocation2 + $0x1b4] sm:$0xf]
    %v1434 = vld [vmem:[#allocation2 + $0x1e0] sm:$0xf]
    %v1435 = vld [vmem:[#allocation2 + $0x20c] sm:$0xf]
    %v1436 = vld [vmem:[#allocation2 + $0x238] sm:$0xf]
    %v1437 = vld [vmem:[#allocation2 + $0x264] sm:$0xf]
    %v1438 = vld [vmem:[#allocation2 + $0x290] sm:$0xf]
    %v1439 = vld [vmem:[#allocation2 + $0x2bc] sm:$0xf]
    %v1440 = vld [vmem:[#allocation2 + $0x2e8] sm:$0xf]
    %v1441 = vld [vmem:[#allocation2 + $0x314] sm:$0xf]
    %v1442 = vld [vmem:[#allocation2 + $0x340] sm:$0xf]
    %v1443 = vld [vmem:[#allocation2 + $0x36c] sm:$0xf]
    %v1444 = vld [vmem:[#allocation2 + $0x398] sm:$0xf]
    %v1445 = vld [vmem:[#allocation2 + $0x3c4] sm:$0xf]
    %v1446 = vld [vmem:[#allocation2 + $0x3f0] sm:$0xf]
    %v1447 = vld [vmem:[#allocation2 + $0x41c] sm:$0xf]
    %v1448 = vld [vmem:[#allocation2 + $0x448] sm:$0xf]
    %v1449 = vld [vmem:[#allocation2 + $0x474] sm:$0xf]
    %v1450 = vld [vmem:[#allocation2 + $0x4a0] sm:$0xf]
    %v1451 = vld [vmem:[#allocation2 + $0x4cc] sm:$0xf]
    %v1452 = vld [vmem:[#allocation2 + $0x4f8] sm:$0xf]
    %v1453 = vld [vmem:[#allocation2 + $0x524] sm:$0xf]
    %v1454 = vld [vmem:[#allocation2 + $0x550] sm:$0xf]
    %v1455 = vld [vmem:[#allocation2 + $0x57c] sm:$0xf]
    %v1488 = vunpack.c.l.b16 %v1424
    %v1489 = vunpack.c.l.b16 %v1425
    %v1490 = vunpack.c.l.b16 %v1426
    %v1491 = vunpack.c.l.b16 %v1427
    %v1492 = vunpack.c.l.b16 %v1428
    %v1493 = vunpack.c.l.b16 %v1429
    %v1494 = vunpack.c.l.b16 %v1430
    %v1495 = vunpack.c.l.b16 %v1431
    %v1496 = vunpack.c.l.b16 %v1432
    %v1497 = vunpack.c.l.b16 %v1433
    %v1498 = vunpack.c.l.b16 %v1434
    %v1499 = vunpack.c.l.b16 %v1435
    %v1500 = vunpack.c.l.b16 %v1436
    %v1501 = vunpack.c.l.b16 %v1437
    %v1502 = vunpack.c.l.b16 %v1438
    %v1503 = vunpack.c.l.b16 %v1439
    %v1504 = vunpack.c.l.b16 %v1440
    %v1505 = vunpack.c.l.b16 %v1441
    %v1506 = vunpack.c.l.b16 %v1442
    %v1507 = vunpack.c.l.b16 %v1443
    %v1508 = vunpack.c.l.b16 %v1444
    %v1509 = vunpack.c.l.b16 %v1445
    %v1510 = vunpack.c.l.b16 %v1446
    %v1511 = vunpack.c.l.b16 %v1447
    %v1512 = vunpack.c.l.b16 %v1448
    %v1513 = vunpack.c.l.b16 %v1449
    %v1514 = vunpack.c.l.b16 %v1450
    %v1515 = vunpack.c.l.b16 %v1451
    %v1516 = vunpack.c.l.b16 %v1452
    %v1517 = vunpack.c.l.b16 %v1453
    %v1518 = vunpack.c.l.b16 %v1454
    %v1519 = vunpack.c.l.b16 %v1455
    %v1520 = vpack.c.b16 %v1489, %v1488
    %v1521 = vpack.c.b16 %v1491, %v1490
    %v1522 = vpack.c.b16 %v1493, %v1492
    %v1523 = vpack.c.b16 %v1495, %v1494
    %v1524 = vpack.c.b16 %v1497, %v1496
    %v1525 = vpack.c.b16 %v1499, %v1498
    %v1526 = vpack.c.b16 %v1501, %v1500
    %v1527 = vpack.c.b16 %v1503, %v1502
    %v1528 = vpack.c.b16 %v1505, %v1504
    %v1529 = vpack.c.b16 %v1507, %v1506
    %v1530 = vpack.c.b16 %v1509, %v1508
    %v1531 = vpack.c.b16 %v1511, %v1510
    %v1532 = vpack.c.b16 %v1513, %v1512
    %v1533 = vpack.c.b16 %v1515, %v1514
    %v1534 = vpack.c.b16 %v1517, %v1516
    %v1535 = vpack.c.b16 %v1519, %v1518
    %1552 = vmatprep.subr.bf16.mxu0 0
    %1553 = vmatpush1.bf16.msra.mxu0 %v1520
    %1554 = vmatprep.subr.bf16.mxu0 0
    %1555 = vmatpush1.bf16.msra.mxu0 %v1521
    %1556 = vmatprep.subr.bf16.mxu0 0
    %1557 = vmatpush1.bf16.msra.mxu0 %v1522
    %1558 = vmatprep.subr.bf16.mxu0 0
    %1559 = vmatpush1.bf16.msra.mxu0 %v1523
    %1560 = vmatprep.subr.bf16.mxu0 0
    %1561 = vmatpush1.bf16.msra.mxu0 %v1524
    %1562 = vmatprep.subr.bf16.mxu0 0
    %1563 = vmatpush1.bf16.msra.mxu0 %v1525
    %1564 = vmatprep.subr.bf16.mxu0 0
    %1565 = vmatpush1.bf16.msra.mxu0 %v1526
    %1566 = vmatprep.subr.bf16.mxu0 0
    %1567 = vmatpush1.bf16.msra.mxu0 %v1527
    %1568 = vmatprep.subr.bf16.mxu0 0
    %1569 = vmatpush1.bf16.msra.mxu0 %v1528
    %1570 = vmatprep.subr.bf16.mxu0 0
    %1571 = vmatpush1.bf16.msra.mxu0 %v1529
    %1572 = vmatprep.subr.bf16.mxu0 0
    %1573 = vmatpush1.bf16.msra.mxu0 %v1530
    %1574 = vmatprep.subr.bf16.mxu0 0
    %1575 = vmatpush1.bf16.msra.mxu0 %v1531
    %1576 = vmatprep.subr.bf16.mxu0 0
    %1577 = vmatpush1.bf16.msra.mxu0 %v1532
    %1578 = vmatprep.subr.bf16.mxu0 0
    %1579 = vmatpush1.bf16.msra.mxu0 %v1533
    %1580 = vmatprep.subr.bf16.mxu0 0
    %1581 = vmatpush1.bf16.msra.mxu0 %v1534
    %1582 = vmatprep.subr.bf16.mxu0 0
    %1583 = vmatpush1.bf16.msra.mxu0 %v1535
    %1584 = vmatprep.mubr.bf16.mxu0 %v1423
    %1585 = vmatmul.mubr.bf16.gmra.mrb[0].mxu0 %v1422
    %v1586 = vpop.f32.mrb[0].mxu0
    %v1587 = vadd.f32 0.0, %v1586
    %v1588 = vpop.f32.mrb[0].mxu0
    %v1589 = vpop.f32.mrb[0].mxu0
    %v1590 = vpop.f32.mrb[0].mxu0
    %1591 = vdwg.mxu0
    %v1592 = vadd.f32 %v1238, %v1587
    %v1593 = vadd.f32 %v1592, %v55
    %v1594 = vsel %vm1239, %v1593, 0.0
    %1595 = vadd.xlane.f32.xlu0 %v1594
    %v1596 = vpop.xlane.xlu0 %1595
    %v1597 = vmul.f32 %v1596, %v394
    %v1598 = vsub.f32 %v1593, %v1597
    %v1599 = vmul.f32 %v1598, %v1598
    %v1600 = vsel %vm1239, %v1599, 0.0
    %1601 = vadd.xlane.f32.xlu0 %v1600
    %v1602 = vpop.xlane.xlu0 %1601
    %v1603 = vmul.f32 %v1602, %v394
    %v1604 = vadd.f32 %v1603, 1e-06
    %v1605 = vrsqrt.pop %v1604
    %v1606 = vmul.f32 %v1598, %v1605
    %v1607 = vmul.f32 %v1606, %v56
    %v1608 = vadd.f32 %v1607, %v57
    %v1609 = vpack.c.bf16 %v376, %v374
    %v1610 = vpack.c.bf16 %v377, %v375
    %v1611 = vpack.c.bf16 %v380, %v378
    %v1612 = vpack.c.bf16 %v381, %v379
    %v1613 = vld [vmem:[#allocation2] sm:$0xff]
    %v1614 = vld [vmem:[#allocation2 + $0x8] sm:$0xff]
    %v1615 = vld [vmem:[#allocation2 + $0x2c] sm:$0xff]
    %v1616 = vld [vmem:[#allocation2 + $0x34] sm:$0xff]
    %v1617 = vld [vmem:[#allocation2 + $0x58] sm:$0xff]
    %v1618 = vld [vmem:[#allocation2 + $0x60] sm:$0xff]
    %v1619 = vld [vmem:[#allocation2 + $0x84] sm:$0xff]
    %v1620 = vld [vmem:[#allocation2 + $0x8c] sm:$0xff]
    %v1621 = vld [vmem:[#allocation2 + $0xb0] sm:$0xff]
    %v1622 = vld [vmem:[#allocation2 + $0xb8] sm:$0xff]
    %v1623 = vld [vmem:[#allocation2 + $0xdc] sm:$0xff]
    %v1624 = vld [vmem:[#allocation2 + $0xe4] sm:$0xff]
    %v1625 = vld [vmem:[#allocation2 + $0x108] sm:$0xff]
    %v1626 = vld [vmem:[#allocation2 + $0x110] sm:$0xff]
    %v1627 = vld [vmem:[#allocation2 + $0x134] sm:$0xff]
    %v1628 = vld [vmem:[#allocation2 + $0x13c] sm:$0xff]
    %v1629 = vld [vmem:[#allocation2 + $0x160] sm:$0xff]
    %v1630 = vld [vmem:[#allocation2 + $0x168] sm:$0xff]
    %v1631 = vld [vmem:[#allocation2 + $0x18c] sm:$0xff]
    %v1632 = vld [vmem:[#allocation2 + $0x194] sm:$0xff]
    %v1633 = vld [vmem:[#allocation2 + $0x1b8] sm:$0xff]
    %v1634 = vld [vmem:[#allocation2 + $0x1c0] sm:$0xff]
    %v1635 = vld [vmem:[#allocation2 + $0x1e4] sm:$0xff]
    %v1636 = vld [vmem:[#allocation2 + $0x1ec] sm:$0xff]
    %v1637 = vld [vmem:[#allocation2 + $0x210] sm:$0xff]
    %v1638 = vld [vmem:[#allocation2 + $0x218] sm:$0xff]
    %v1639 = vld [vmem:[#allocation2 + $0x23c] sm:$0xff]
    %v1640 = vld [vmem:[#allocation2 + $0x244] sm:$0xff]
    %v1641 = vld [vmem:[#allocation2 + $0x268] sm:$0xff]
    %v1642 = vld [vmem:[#allocation2 + $0x270] sm:$0xff]
    %v1643 = vld [vmem:[#allocation2 + $0x294] sm:$0xff]
    %v1644 = vld [vmem:[#allocation2 + $0x29c] sm:$0xff]
    %v1645 = vld [vmem:[#allocation2 + $0x2c0] sm:$0xff]
    %v1646 = vld [vmem:[#allocation2 + $0x2c8] sm:$0xff]
    %v1647 = vld [vmem:[#allocation2 + $0x2ec] sm:$0xff]
    %v1648 = vld [vmem:[#allocation2 + $0x2f4] sm:$0xff]
    %v1649 = vld [vmem:[#allocation2 + $0x318] sm:$0xff]
    %v1650 = vld [vmem:[#allocation2 + $0x320] sm:$0xff]
    %v1651 = vld [vmem:[#allocation2 + $0x344] sm:$0xff]
    %v1652 = vld [vmem:[#allocation2 + $0x34c] sm:$0xff]
    %v1653 = vld [vmem:[#allocation2 + $0x370] sm:$0xff]
    %v1654 = vld [vmem:[#allocation2 + $0x378] sm:$0xff]
    %v1655 = vld [vmem:[#allocation2 + $0x39c] sm:$0xff]
    %v1656 = vld [vmem:[#allocation2 + $0x3a4] sm:$0xff]
    %v1657 = vld [vmem:[#allocation2 + $0x3c8] sm:$0xff]
    %v1658 = vld [vmem:[#allocation2 + $0x3d0] sm:$0xff]
    %v1659 = vld [vmem:[#allocation2 + $0x3f4] sm:$0xff]
    %v1660 = vld [vmem:[#allocation2 + $0x3fc] sm:$0xff]
    %v1661 = vld [vmem:[#allocation2 + $0x420] sm:$0xff]
    %v1662 = vld [vmem:[#allocation2 + $0x428] sm:$0xff]
    %v1663 = vld [vmem:[#allocation2 + $0x44c] sm:$0xff]
    %v1664 = vld [vmem:[#allocation2 + $0x454] sm:$0xff]
    %v1665 = vld [vmem:[#allocation2 + $0x478] sm:$0xff]
    %v1666 = vld [vmem:[#allocation2 + $0x480] sm:$0xff]
    %v1667 = vld [vmem:[#allocation2 + $0x4a4] sm:$0xff]
    %v1668 = vld [vmem:[#allocation2 + $0x4ac] sm:$0xff]
    %v1669 = vld [vmem:[#allocation2 + $0x4d0] sm:$0xff]
    %v1670 = vld [vmem:[#allocation2 + $0x4d8] sm:$0xff]
    %v1671 = vld [vmem:[#allocation2 + $0x4fc] sm:$0xff]
    %v1672 = vld [vmem:[#allocation2 + $0x504] sm:$0xff]
    %v1673 = vld [vmem:[#allocation2 + $0x528] sm:$0xff]
    %v1674 = vld [vmem:[#allocation2 + $0x530] sm:$0xff]
    %v1675 = vld [vmem:[#allocation2 + $0x554] sm:$0xff]
    %v1676 = vld [vmem:[#allocation2 + $0x55c] sm:$0xff]
    %v1741 = vunpack.c.l.b16 %v1613
    %v1742 = vunpack.c.h.b16 %v1613
    %v1743 = vunpack.c.l.b16 %v1614
    %v1744 = vunpack.c.h.b16 %v1614
    %v1745 = vunpack.c.l.b16 %v1615
    %v1746 = vunpack.c.h.b16 %v1615
    %v1747 = vunpack.c.l.b16 %v1616
    %v1748 = vunpack.c.h.b16 %v1616
    %v1749 = vunpack.c.l.b16 %v1617
    %v1750 = vunpack.c.h.b16 %v1617
    %v1751 = vunpack.c.l.b16 %v1618
    %v1752 = vunpack.c.h.b16 %v1618
    %v1753 = vunpack.c.l.b16 %v1619
    %v1754 = vunpack.c.h.b16 %v1619
    %v1755 = vunpack.c.l.b16 %v1620
    %v1756 = vunpack.c.h.b16 %v1620
    %v1757 = vunpack.c.l.b16 %v1621
    %v1758 = vunpack.c.h.b16 %v1621
    %v1759 = vunpack.c.l.b16 %v1622
    %v1760 = vunpack.c.h.b16 %v1622
    %v1761 = vunpack.c.l.b16 %v1623
    %v1762 = vunpack.c.h.b16 %v1623
    %v1763 = vunpack.c.l.b16 %v1624
    %v1764 = vunpack.c.h.b16 %v1624
    %v1765 = vunpack.c.l.b16 %v1625
    %v1766 = vunpack.c.h.b16 %v1625
    %v1767 = vunpack.c.l.b16 %v1626
    %v1768 = vunpack.c.h.b16 %v1626
    %v1769 = vunpack.c.l.b16 %v1627
    %v1770 = vunpack.c.h.b16 %v1627
    %v1771 = vunpack.c.l.b16 %v1628
    %v1772 = vunpack.c.h.b16 %v1628
    %v1773 = vunpack.c.l.b16 %v1629
    %v1774 = vunpack.c.h.b16 %v1629
    %v1775 = vunpack.c.l.b16 %v1630
    %v1776 = vunpack.c.h.b16 %v1630
    %v1777 = vunpack.c.l.b16 %v1631
    %v1778 = vunpack.c.h.b16 %v1631
    %v1779 = vunpack.c.l.b16 %v1632
    %v1780 = vunpack.c.h.b16 %v1632
    %v1781 = vunpack.c.l.b16 %v1633
    %v1782 = vunpack.c.h.b16 %v1633
    %v1783 = vunpack.c.l.b16 %v1634
    %v1784 = vunpack.c.h.b16 %v1634
    %v1785 = vunpack.c.l.b16 %v1635
    %v1786 = vunpack.c.h.b16 %v1635
    %v1787 = vunpack.c.l.b16 %v1636
    %v1788 = vunpack.c.h.b16 %v1636
    %v1789 = vunpack.c.l.b16 %v1637
    %v1790 = vunpack.c.h.b16 %v1637
    %v1791 = vunpack.c.l.b16 %v1638
    %v1792 = vunpack.c.h.b16 %v1638
    %v1793 = vunpack.c.l.b16 %v1639
    %v1794 = vunpack.c.h.b16 %v1639
    %v1795 = vunpack.c.l.b16 %v1640
    %v1796 = vunpack.c.h.b16 %v1640
    %v1797 = vunpack.c.l.b16 %v1641
    %v1798 = vunpack.c.h.b16 %v1641
    %v1799 = vunpack.c.l.b16 %v1642
    %v1800 = vunpack.c.h.b16 %v1642
    %v1801 = vunpack.c.l.b16 %v1643
    %v1802 = vunpack.c.h.b16 %v1643
    %v1803 = vunpack.c.l.b16 %v1644
    %v1804 = vunpack.c.h.b16 %v1644
    %v1805 = vunpack.c.l.b16 %v1645
    %v1806 = vunpack.c.h.b16 %v1645
    %v1807 = vunpack.c.l.b16 %v1646
    %v1808 = vunpack.c.h.b16 %v1646
    %v1809 = vunpack.c.l.b16 %v1647
    %v1810 = vunpack.c.h.b16 %v1647
    %v1811 = vunpack.c.l.b16 %v1648
    %v1812 = vunpack.c.h.b16 %v1648
    %v1813 = vunpack.c.l.b16 %v1649
    %v1814 = vunpack.c.h.b16 %v1649
    %v1815 = vunpack.c.l.b16 %v1650
    %v1816 = vunpack.c.h.b16 %v1650
    %v1817 = vunpack.c.l.b16 %v1651
    %v1818 = vunpack.c.h.b16 %v1651
    %v1819 = vunpack.c.l.b16 %v1652
    %v1820 = vunpack.c.h.b16 %v1652
    %v1821 = vunpack.c.l.b16 %v1653
    %v1822 = vunpack.c.h.b16 %v1653
    %v1823 = vunpack.c.l.b16 %v1654
    %v1824 = vunpack.c.h.b16 %v1654
    %v1825 = vunpack.c.l.b16 %v1655
    %v1826 = vunpack.c.h.b16 %v1655
    %v1827 = vunpack.c.l.b16 %v1656
    %v1828 = vunpack.c.h.b16 %v1656
    %v1829 = vunpack.c.l.b16 %v1657
    %v1830 = vunpack.c.h.b16 %v1657
    %v1831 = vunpack.c.l.b16 %v1658
    %v1832 = vunpack.c.h.b16 %v1658
    %v1833 = vunpack.c.l.b16 %v1659
    %v1834 = vunpack.c.h.b16 %v1659
    %v1835 = vunpack.c.l.b16 %v1660
    %v1836 = vunpack.c.h.b16 %v1660
    %v1837 = vunpack.c.l.b16 %v1661
    %v1838 = vunpack.c.h.b16 %v1661
    %v1839 = vunpack.c.l.b16 %v1662
    %v1840 = vunpack.c.h.b16 %v1662
    %v1841 = vunpack.c.l.b16 %v1663
    %v1842 = vunpack.c.h.b16 %v1663
    %v1843 = vunpack.c.l.b16 %v1664
    %v1844 = vunpack.c.h.b16 %v1664
    %v1845 = vunpack.c.l.b16 %v1665
    %v1846 = vunpack.c.h.b16 %v1665
    %v1847 = vunpack.c.l.b16 %v1666
    %v1848 = vunpack.c.h.b16 %v1666
    %v1849 = vunpack.c.l.b16 %v1667
    %v1850 = vunpack.c.h.b16 %v1667
    %v1851 = vunpack.c.l.b16 %v1668
    %v1852 = vunpack.c.h.b16 %v1668
    %v1853 = vunpack.c.l.b16 %v1669
    %v1854 = vunpack.c.h.b16 %v1669
    %v1855 = vunpack.c.l.b16 %v1670
    %v1856 = vunpack.c.h.b16 %v1670
    %v1857 = vunpack.c.l.b16 %v1671
    %v1858 = vunpack.c.h.b16 %v1671
    %v1859 = vunpack.c.l.b16 %v1672
    %v1860 = vunpack.c.h.b16 %v1672
    %v1861 = vunpack.c.l.b16 %v1673
    %v1862 = vunpack.c.h.b16 %v1673
    %v1863 = vunpack.c.l.b16 %v1674
    %v1864 = vunpack.c.h.b16 %v1674
    %v1865 = vunpack.c.l.b16 %v1675
    %v1866 = vunpack.c.h.b16 %v1675
    %v1867 = vunpack.c.l.b16 %v1676
    %v1868 = vunpack.c.h.b16 %v1676
    %v1869 = vpack.c.b16 %v1745, %v1741
    %v1870 = vpack.c.b16 %v1746, %v1742
    %v1871 = vpack.c.b16 %v1747, %v1743
    %v1872 = vpack.c.b16 %v1748, %v1744
    %v1873 = vpack.c.b16 %v1753, %v1749
    %v1874 = vpack.c.b16 %v1754, %v1750
    %v1875 = vpack.c.b16 %v1755, %v1751
    %v1876 = vpack.c.b16 %v1756, %v1752
    %v1877 = vpack.c.b16 %v1761, %v1757
    %v1878 = vpack.c.b16 %v1762, %v1758
    %v1879 = vpack.c.b16 %v1763, %v1759
    %v1880 = vpack.c.b16 %v1764, %v1760
    %v1881 = vpack.c.b16 %v1769, %v1765
    %v1882 = vpack.c.b16 %v1770, %v1766
    %v1883 = vpack.c.b16 %v1771, %v1767
    %v1884 = vpack.c.b16 %v1772, %v1768
    %v1885 = vpack.c.b16 %v1777, %v1773
    %v1886 = vpack.c.b16 %v1778, %v1774
    %v1887 = vpack.c.b16 %v1779, %v1775
    %v1888 = vpack.c.b16 %v1780, %v1776
    %v1889 = vpack.c.b16 %v1785, %v1781
    %v1890 = vpack.c.b16 %v1786, %v1782
    %v1891 = vpack.c.b16 %v1787, %v1783
    %v1892 = vpack.c.b16 %v1788, %v1784
    %v1893 = vpack.c.b16 %v1793, %v1789
    %v1894 = vpack.c.b16 %v1794, %v1790
    %v1895 = vpack.c.b16 %v1795, %v1791
    %v1896 = vpack.c.b16 %v1796, %v1792
    %v1897 = vpack.c.b16 %v1801, %v1797
    %v1898 = vpack.c.b16 %v1802, %v1798
    %v1899 = vpack.c.b16 %v1803, %v1799
    %v1900 = vpack.c.b16 %v1804, %v1800
    %v1901 = vpack.c.b16 %v1809, %v1805
    %v1902 = vpack.c.b16 %v1810, %v1806
    %v1903 = vpack.c.b16 %v1811, %v1807
    %v1904 = vpack.c.b16 %v1812, %v1808
    %v1905 = vpack.c.b16 %v1817, %v1813
    %v1906 = vpack.c.b16 %v1818, %v1814
    %v1907 = vpack.c.b16 %v1819, %v1815
    %v1908 = vpack.c.b16 %v1820, %v1816
    %v1909 = vpack.c.b16 %v1825, %v1821
    %v1910 = vpack.c.b16 %v1826, %v1822
    %v1911 = vpack.c.b16 %v1827, %v1823
    %v1912 = vpack.c.b16 %v1828, %v1824
    %v1913 = vpack.c.b16 %v1833, %v1829
    %v1914 = vpack.c.b16 %v1834, %v1830
    %v1915 = vpack.c.b16 %v1835, %v1831
    %v1916 = vpack.c.b16 %v1836, %v1832
    %v1917 = vpack.c.b16 %v1841, %v1837
    %v1918 = vpack.c.b16 %v1842, %v1838
    %v1919 = vpack.c.b16 %v1843, %v1839
    %v1920 = vpack.c.b16 %v1844, %v1840
    %v1921 = vpack.c.b16 %v1849, %v1845
    %v1922 = vpack.c.b16 %v1850, %v1846
    %v1923 = vpack.c.b16 %v1851, %v1847
    %v1924 = vpack.c.b16 %v1852, %v1848
    %v1925 = vpack.c.b16 %v1857, %v1853
    %v1926 = vpack.c.b16 %v1858, %v1854
    %v1927 = vpack.c.b16 %v1859, %v1855
    %v1928 = vpack.c.b16 %v1860, %v1856
    %v1929 = vpack.c.b16 %v1865, %v1861
    %v1930 = vpack.c.b16 %v1866, %v1862
    %v1931 = vpack.c.b16 %v1867, %v1863
    %v1932 = vpack.c.b16 %v1868, %v1864
    %1997 = vmatprep.subr.bf16.mxu0 %v1870
    %1998 = vmatpush1.bf16.msra.mxu0 %v1869
    %1999 = vmatprep.subr.bf16.mxu0 %v1874
    %2000 = vmatpush1.bf16.msra.mxu0 %v1873
    %2001 = vmatprep.subr.bf16.mxu0 %v1878
    %2002 = vmatpush1.bf16.msra.mxu0 %v1877
    %2003 = vmatprep.subr.bf16.mxu0 %v1882
    %2004 = vmatpush1.bf16.msra.mxu0 %v1881
    %2005 = vmatprep.subr.bf16.mxu0 %v1886
    %2006 = vmatpush1.bf16.msra.mxu0 %v1885
    %2007 = vmatprep.subr.bf16.mxu0 %v1890
    %2008 = vmatpush1.bf16.msra.mxu0 %v1889
    %2009 = vmatprep.subr.bf16.mxu0 %v1894
    %2010 = vmatpush1.bf16.msra.mxu0 %v1893
    %2011 = vmatprep.subr.bf16.mxu0 %v1898
    %2012 = vmatpush1.bf16.msra.mxu0 %v1897
    %2013 = vmatprep.subr.bf16.mxu0 %v1902
    %2014 = vmatpush1.bf16.msra.mxu0 %v1901
    %2015 = vmatprep.subr.bf16.mxu0 %v1906
    %2016 = vmatpush1.bf16.msra.mxu0 %v1905
    %2017 = vmatprep.subr.bf16.mxu0 %v1910
    %2018 = vmatpush1.bf16.msra.mxu0 %v1909
    %2019 = vmatprep.subr.bf16.mxu0 %v1914
    %2020 = vmatpush1.bf16.msra.mxu0 %v1913
    %2021 = vmatprep.subr.bf16.mxu0 %v1918
    %2022 = vmatpush1.bf16.msra.mxu0 %v1917
    %2023 = vmatprep.subr.bf16.mxu0 %v1922
    %2024 = vmatpush1.bf16.msra.mxu0 %v1921
    %2025 = vmatprep.subr.bf16.mxu0 %v1926
    %2026 = vmatpush1.bf16.msra.mxu0 %v1925
    %2027 = vmatprep.subr.bf16.mxu0 %v1930
    %2028 = vmatpush1.bf16.msra.mxu0 %v1929
    %2029 = vmatprep.mubr.bf16.mxu0 %v1610
    %2030 = vmatmul.mubr.bf16.gmra.mrb[0].mxu0 %v1609
    %v2031 = vpop.f32.mrb[0].mxu0
    %v2032 = vadd.f32 0.0, %v2031
    %v2033 = vpop.f32.mrb[0].mxu0
    %v2034 = vadd.f32 0.0, %v2033
    %v2035 = vpop.f32.mrb[0].mxu0
    %v2036 = vadd.f32 0.0, %v2035
    %v2037 = vpop.f32.mrb[0].mxu0
    %v2038 = vadd.f32 0.0, %v2037
    %2039 = vmatprep.mubr.bf16.mxu0 %v1612
    %2040 = vmatmul.mubr.bf16.gmra.mrb[0].mxu0 %v1611
    %v2041 = vpop.f32.mrb[0].mxu0
    %v2042 = vadd.f32 0.0, %v2041
    %v2043 = vpop.f32.mrb[0].mxu0
    %v2044 = vadd.f32 0.0, %v2043
    %v2045 = vpop.f32.mrb[0].mxu0
    %v2046 = vadd.f32 0.0, %v2045
    %v2047 = vpop.f32.mrb[0].mxu0
    %v2048 = vadd.f32 0.0, %v2047
    %2049 = vdwg.mxu0
    %2050 = vmatprep.subr.bf16.mxu0 %v1872
    %2051 = vmatpush1.bf16.msra.mxu0 %v1871
    %2052 = vmatprep.subr.bf16.mxu0 %v1876
    %2053 = vmatpush1.bf16.msra.mxu0 %v1875
    %2054 = vmatprep.subr.bf16.mxu0 %v1880
    %2055 = vmatpush1.bf16.msra.mxu0 %v1879
    %2056 = vmatprep.subr.bf16.mxu0 %v1884
    %2057 = vmatpush1.bf16.msra.mxu0 %v1883
    %2058 = vmatprep.subr.bf16.mxu0 %v1888
    %2059 = vmatpush1.bf16.msra.mxu0 %v1887
    %2060 = vmatprep.subr.bf16.mxu0 %v1892
    %2061 = vmatpush1.bf16.msra.mxu0 %v1891
    %2062 = vmatprep.subr.bf16.mxu0 %v1896
    %2063 = vmatpush1.bf16.msra.mxu0 %v1895
    %2064 = vmatprep.subr.bf16.mxu0 %v1900
    %2065 = vmatpush1.bf16.msra.mxu0 %v1899
    %2066 = vmatprep.subr.bf16.mxu0 %v1904
    %2067 = vmatpush1.bf16.msra.mxu0 %v1903
    %2068 = vmatprep.subr.bf16.mxu0 %v1908
    %2069 = vmatpush1.bf16.msra.mxu0 %v1907
    %2070 = vmatprep.subr.bf16.mxu0 %v1912
    %2071 = vmatpush1.bf16.msra.mxu0 %v1911
    %2072 = vmatprep.subr.bf16.mxu0 %v1916
    %2073 = vmatpush1.bf16.msra.mxu0 %v1915
    %2074 = vmatprep.subr.bf16.mxu0 %v1920
    %2075 = vmatpush1.bf16.msra.mxu0 %v1919
    %2076 = vmatprep.subr.bf16.mxu0 %v1924
    %2077 = vmatpush1.bf16.msra.mxu0 %v1923
    %2078 = vmatprep.subr.bf16.mxu0 %v1928
    %2079 = vmatpush1.bf16.msra.mxu0 %v1927
    %2080 = vmatprep.subr.bf16.mxu0 %v1932
    %2081 = vmatpush1.bf16.msra.mxu0 %v1931
    %2082 = vmatprep.mubr.bf16.mxu0 %v1610
    %2083 = vmatmul.mubr.bf16.gmra.mrb[0].mxu0 %v1609
    %v2084 = vpop.f32.mrb[0].mxu0
    %v2085 = vadd.f32 0.0, %v2084
    %v2086 = vpop.f32.mrb[0].mxu0
    %v2087 = vadd.f32 0.0, %v2086
    %v2088 = vpop.f32.mrb[0].mxu0
    %v2089 = vadd.f32 0.0, %v2088
    %v2090 = vpop.f32.mrb[0].mxu0
    %v2091 = vadd.f32 0.0, %v2090
    %2092 = vmatprep.mubr.bf16.mxu0 %v1612
    %2093 = vmatmul.mubr.bf16.gmra.mrb[0].mxu0 %v1611
    %v2094 = vpop.f32.mrb[0].mxu0
    %v2095 = vadd.f32 0.0, %v2094
    %v2096 = vpop.f32.mrb[0].mxu0
    %v2097 = vadd.f32 0.0, %v2096
    %v2098 = vpop.f32.mrb[0].mxu0
    %v2099 = vadd.f32 0.0, %v2098
    %v2100 = vpop.f32.mrb[0].mxu0
    %v2101 = vadd.f32 0.0, %v2100
    %2102 = vdwg.mxu0
    %v2104 = vlaneseq
    %v2105 = vshrl.u32 %v2104, 7
    %v2106 = vsub.s32 0, %v2105
    %v2107 = vrot.slane %v66, %v2106
    %v2108 = vlaneseq
    %v2109 = vshrl.u32 %v2108, 7
    %v2110 = vsub.s32 1, %v2109
    %v2111 = vrot.slane %v66, %v2110
    %2114 = vmatprep.subr.mxu0 %v2034
    %2115 = vmatpush1.xpose.msra.mxu0 %v2032
    %2116 = vmatprep.subr.mxu0 %v2038
    %2117 = vmatpush1.xpose.msra.mxu0 %v2036
    %2118 = vmatprep.subr.mxu0 0.0
    %2119 = vmatpush1.xpose.msra.mxu0 0.0
    %2120 = vmatprep.subr.mxu0 0.0
    %2121 = vmatpush1.xpose.msra.mxu0 0.0
    %2122 = vmatprep.subr.mxu0 0.0
    %2123 = vmatpush1.xpose.msra.mxu0 0.0
    %2124 = vmatprep.subr.mxu0 0.0
    %2125 = vmatpush1.xpose.msra.mxu0 0.0
    %2126 = vmatprep.subr.mxu0 0.0
    %2127 = vmatpush1.xpose.msra.mxu0 0.0
    %2128 = vmatprep.subr.mxu0 0.0
    %2129 = vmatpush1.xpose.msra.mxu0 0.0
    %2130 = vmatprep.subr.mxu0 0.0
    %2131 = vmatpush1.xpose.msra.mxu0 0.0
    %2132 = vmatprep.subr.mxu0 0.0
    %2133 = vmatpush1.xpose.msra.mxu0 0.0
    %2134 = vmatprep.subr.mxu0 0.0
    %2135 = vmatpush1.xpose.msra.mxu0 0.0
    %2136 = vmatprep.subr.mxu0 0.0
    %2137 = vmatpush1.xpose.msra.mxu0 0.0
    %2138 = vmatprep.subr.mxu0 0.0
    %2139 = vmatpush1.xpose.msra.mxu0 0.0
    %2140 = vmatprep.subr.mxu0 0.0
    %2141 = vmatpush1.xpose.msra.mxu0 0.0
    %2142 = vmatprep.subr.mxu0 0.0
    %2143 = vmatpush1.xpose.msra.mxu0 0.0
    %2144 = vmatprep.subr.mxu0 0.0
    %2145 = vmatpush1.xpose.msra.mxu0 0.0
    %2146 = vmatprep.subr.mxu0 0.0
    %2147 = vmatpush1.xpose.msra.mxu0 0.0
    %2148 = vmatprep.subr.mxu0 0.0
    %2149 = vmatpush1.xpose.msra.mxu0 0.0
    %2150 = vmatprep.subr.mxu0 0.0
    %2151 = vmatpush1.xpose.msra.mxu0 0.0
    %2152 = vmatprep.subr.mxu0 0.0
    %2153 = vmatpush1.xpose.msra.mxu0 0.0
    %2154 = vmatprep.subr.mxu0 0.0
    %2155 = vmatpush1.xpose.msra.mxu0 0.0
    %2156 = vmatprep.subr.mxu0 0.0
    %2157 = vmatpush1.xpose.msra.mxu0 0.0
    %2158 = vmatprep.subr.mxu0 0.0
    %2159 = vmatpush1.xpose.msra.mxu0 0.0
    %2160 = vmatprep.subr.mxu0 0.0
    %2161 = vmatpush1.xpose.msra.mxu0 0.0
    %2162 = vmatprep.subr.mxu0 0.0
    %2163 = vmatpush1.xpose.msra.mxu0 0.0
    %2164 = vmatprep.subr.mxu0 0.0
    %2165 = vmatpush1.xpose.msra.mxu0 0.0
    %2166 = vmatprep.subr.mxu0 0.0
    %2167 = vmatpush1.xpose.msra.mxu0 0.0
    %2168 = vmatprep.subr.mxu0 0.0
    %2169 = vmatpush1.xpose.msra.mxu0 0.0
    %2170 = vmatprep.subr.mxu0 0.0
    %2171 = vmatpush1.xpose.msra.mxu0 0.0
    %2172 = vmatprep.subr.mxu0 0.0
    %2173 = vmatpush1.xpose.msra.mxu0 0.0
    %2174 = vmatprep.subr.mxu0 0.0
    %2175 = vmatpush1.xpose.msra.mxu0 0.0
    %2176 = vmatprep.subr.mxu0 0.0
    %2177 = vmatpush1.xpose.msra.mxu0 0.0
    %2178 = vmatprep.mubr.f32.mxu0 %v2111
    %2179 = vmatmul.mubr.f32.gmra.mrb[0].mxu0 %v2107
    %v2180 = vpop.f32.mrb[0].mxu0
    %v2181 = vadd.f32 0.0, %v2180
    %v2182 = vpop.f32.mrb[0].mxu0
    %2183 = vdwg.mxu0
    %2184 = vmatprep.subr.mxu0 %v2044
    %2185 = vmatpush1.xpose.msra.mxu0 %v2042
    %2186 = vmatprep.subr.mxu0 %v2048
    %2187 = vmatpush1.xpose.msra.mxu0 %v2046
    %2188 = vmatprep.subr.mxu0 0.0
    %2189 = vmatpush1.xpose.msra.mxu0 0.0
    %2190 = vmatprep.subr.mxu0 0.0
    %2191 = vmatpush1.xpose.msra.mxu0 0.0
    %2192 = vmatprep.subr.mxu0 0.0
    %2193 = vmatpush1.xpose.msra.mxu0 0.0
    %2194 = vmatprep.subr.mxu0 0.0
    %2195 = vmatpush1.xpose.msra.mxu0 0.0
    %2196 = vmatprep.subr.mxu0 0.0
    %2197 = vmatpush1.xpose.msra.mxu0 0.0
    %2198 = vmatprep.subr.mxu0 0.0
    %2199 = vmatpush1.xpose.msra.mxu0 0.0
    %2200 = vmatprep.subr.mxu0 0.0
    %2201 = vmatpush1.xpose.msra.mxu0 0.0
    %2202 = vmatprep.subr.mxu0 0.0
    %2203 = vmatpush1.xpose.msra.mxu0 0.0
    %2204 = vmatprep.subr.mxu0 0.0
    %2205 = vmatpush1.xpose.msra.mxu0 0.0
    %2206 = vmatprep.subr.mxu0 0.0
    %2207 = vmatpush1.xpose.msra.mxu0 0.0
    %2208 = vmatprep.subr.mxu0 0.0
    %2209 = vmatpush1.xpose.msra.mxu0 0.0
    %2210 = vmatprep.subr.mxu0 0.0
    %2211 = vmatpush1.xpose.msra.mxu0 0.0
    %2212 = vmatprep.subr.mxu0 0.0
    %2213 = vmatpush1.xpose.msra.mxu0 0.0
    %2214 = vmatprep.subr.mxu0 0.0
    %2215 = vmatpush1.xpose.msra.mxu0 0.0
    %2216 = vmatprep.subr.mxu0 0.0
    %2217 = vmatpush1.xpose.msra.mxu0 0.0
    %2218 = vmatprep.subr.mxu0 0.0
    %2219 = vmatpush1.xpose.msra.mxu0 0.0
    %2220 = vmatprep.subr.mxu0 0.0
    %2221 = vmatpush1.xpose.msra.mxu0 0.0
    %2222 = vmatprep.subr.mxu0 0.0
    %2223 = vmatpush1.xpose.msra.mxu0 0.0
    %2224 = vmatprep.subr.mxu0 0.0
    %2225 = vmatpush1.xpose.msra.mxu0 0.0
    %2226 = vmatprep.subr.mxu0 0.0
    %2227 = vmatpush1.xpose.msra.mxu0 0.0
    %2228 = vmatprep.subr.mxu0 0.0
    %2229 = vmatpush1.xpose.msra.mxu0 0.0
    %2230 = vmatprep.subr.mxu0 0.0
    %2231 = vmatpush1.xpose.msra.mxu0 0.0
    %2232 = vmatprep.subr.mxu0 0.0
    %2233 = vmatpush1.xpose.msra.mxu0 0.0
    %2234 = vmatprep.subr.mxu0 0.0
    %2235 = vmatpush1.xpose.msra.mxu0 0.0
    %2236 = vmatprep.subr.mxu0 0.0
    %2237 = vmatpush1.xpose.msra.mxu0 0.0
    %2238 = vmatprep.subr.mxu0 0.0
    %2239 = vmatpush1.xpose.msra.mxu0 0.0
    %2240 = vmatprep.subr.mxu0 0.0
    %2241 = vmatpush1.xpose.msra.mxu0 0.0
    %2242 = vmatprep.subr.mxu0 0.0
    %2243 = vmatpush1.xpose.msra.mxu0 0.0
    %2244 = vmatprep.subr.mxu0 0.0
    %2245 = vmatpush1.xpose.msra.mxu0 0.0
    %2246 = vmatprep.subr.mxu0 0.0
    %2247 = vmatpush1.xpose.msra.mxu0 0.0
    %2248 = vmatprep.mubr.f32.mxu0 %v2111
    %2249 = vmatmul.mubr.f32.gmra.mrb[0].mxu0 %v2107
    %v2250 = vpop.f32.mrb[0].mxu0
    %v2251 = vadd.f32 0.0, %v2250
    %v2252 = vpop.f32.mrb[0].mxu0
    %2253 = vdwg.mxu0
    %v2254 = vsel %vm939, %v2181, -inf
    %2255 = vmax.xlane.f32.xlu0 %v2254
    %v2256 = vpop.xlane.xlu0 %2255
    %v2257 = vsel %vm939, %v2251, -inf
    %2258 = vmax.xlane.f32.xlu0 %v2257
    %v2259 = vpop.xlane.xlu0 %2258
    %v2260 = vsub.f32 %v2181, %v2256
    %v2261 = vsub.f32 %v2251, %v2259
    %v2262 = vmul.f32 %v2260, 1.442695
    %v2263 = vpow.pop %v2262
    %v2264 = vmul.f32 %v2261, 1.442695
    %v2265 = vpow.pop %v2264
    %v2266 = vsel %vm939, %v2263, 0.0
    %2267 = vadd.xlane.f32.xlu0 %v2266
    %v2268 = vpop.xlane.xlu0 %2267
    %v2269 = vsel %vm939, %v2265, 0.0
    %2270 = vadd.xlane.f32.xlu0 %v2269
    %v2271 = vpop.xlane.xlu0 %2270
    %v2272 = vrcp.pop %v2268
    %v2273 = vrcp.pop %v2271
    %v2274 = vmul.f32 %v2263, %v2272
    %v2275 = vmul.f32 %v2265, %v2273
    %v2277 = vsel %vm976, %v2274, 0
    %2279 = vmatprep.subr.mxu0 %v2087
    %2280 = vmatpush1.msra.mxu0 %v2085
    %2281 = vmatprep.subr.mxu0 %v2091
    %2282 = vmatpush1.msra.mxu0 %v2089
    %2283 = vmatprep.subr.mxu0 0.0
    %2284 = vmatpush1.msra.mxu0 0.0
    %2285 = vmatprep.subr.mxu0 0.0
    %2286 = vmatpush1.msra.mxu0 0.0
    %2287 = vmatprep.subr.mxu0 0.0
    %2288 = vmatpush1.msra.mxu0 0.0
    %2289 = vmatprep.subr.mxu0 0.0
    %2290 = vmatpush1.msra.mxu0 0.0
    %2291 = vmatprep.subr.mxu0 0.0
    %2292 = vmatpush1.msra.mxu0 0.0
    %2293 = vmatprep.subr.mxu0 0.0
    %2294 = vmatpush1.msra.mxu0 0.0
    %2295 = vmatprep.subr.mxu0 0.0
    %2296 = vmatpush1.msra.mxu0 0.0
    %2297 = vmatprep.subr.mxu0 0.0
    %2298 = vmatpush1.msra.mxu0 0.0
    %2299 = vmatprep.subr.mxu0 0.0
    %2300 = vmatpush1.msra.mxu0 0.0
    %2301 = vmatprep.subr.mxu0 0.0
    %2302 = vmatpush1.msra.mxu0 0.0
    %2303 = vmatprep.subr.mxu0 0.0
    %2304 = vmatpush1.msra.mxu0 0.0
    %2305 = vmatprep.subr.mxu0 0.0
    %2306 = vmatpush1.msra.mxu0 0.0
    %2307 = vmatprep.subr.mxu0 0.0
    %2308 = vmatpush1.msra.mxu0 0.0
    %2309 = vmatprep.subr.mxu0 0.0
    %2310 = vmatpush1.msra.mxu0 0.0
    %2311 = vmatprep.subr.mxu0 0.0
    %2312 = vmatpush1.msra.mxu0 0.0
    %2313 = vmatprep.subr.mxu0 0.0
    %2314 = vmatpush1.msra.mxu0 0.0
    %2315 = vmatprep.subr.mxu0 0.0
    %2316 = vmatpush1.msra.mxu0 0.0
    %2317 = vmatprep.subr.mxu0 0.0
    %2318 = vmatpush1.msra.mxu0 0.0
    %2319 = vmatprep.subr.mxu0 0.0
    %2320 = vmatpush1.msra.mxu0 0.0
    %2321 = vmatprep.subr.mxu0 0.0
    %2322 = vmatpush1.msra.mxu0 0.0
    %2323 = vmatprep.subr.mxu0 0.0
    %2324 = vmatpush1.msra.mxu0 0.0
    %2325 = vmatprep.subr.mxu0 0.0
    %2326 = vmatpush1.msra.mxu0 0.0
    %2327 = vmatprep.subr.mxu0 0.0
    %2328 = vmatpush1.msra.mxu0 0.0
    %2329 = vmatprep.subr.mxu0 0.0
    %2330 = vmatpush1.msra.mxu0 0.0
    %2331 = vmatprep.subr.mxu0 0.0
    %2332 = vmatpush1.msra.mxu0 0.0
    %2333 = vmatprep.subr.mxu0 0.0
    %2334 = vmatpush1.msra.mxu0 0.0
    %2335 = vmatprep.subr.mxu0 0.0
    %2336 = vmatpush1.msra.mxu0 0.0
    %2337 = vmatprep.subr.mxu0 0.0
    %2338 = vmatpush1.msra.mxu0 0.0
    %2339 = vmatprep.subr.mxu0 0.0
    %2340 = vmatpush1.msra.mxu0 0.0
    %2341 = vmatprep.subr.mxu0 0.0
    %2342 = vmatpush1.msra.mxu0 0.0
    %2343 = vmatprep.mubr.f32.mxu0 0.0
    %2344 = vmatmul.mubr.f32.gmra.mrb[0].mxu0 %v2277
    %v2345 = vpop.f32.mrb[0].mxu0
    %v2346 = vadd.f32 0.0, %v2345
    %v2347 = vpop.f32.mrb[0].mxu0
    %v2348 = vadd.f32 0.0, %v2347
    %2349 = vdwg.mxu0
    %v2351 = vsel %vm976, %v2275, 0
    %2353 = vmatprep.subr.mxu0 %v2097
    %2354 = vmatpush1.msra.mxu0 %v2095
    %2355 = vmatprep.subr.mxu0 %v2101
    %2356 = vmatpush1.msra.mxu0 %v2099
    %2357 = vmatprep.subr.mxu0 0.0
    %2358 = vmatpush1.msra.mxu0 0.0
    %2359 = vmatprep.subr.mxu0 0.0
    %2360 = vmatpush1.msra.mxu0 0.0
    %2361 = vmatprep.subr.mxu0 0.0
    %2362 = vmatpush1.msra.mxu0 0.0
    %2363 = vmatprep.subr.mxu0 0.0
    %2364 = vmatpush1.msra.mxu0 0.0
    %2365 = vmatprep.subr.mxu0 0.0
    %2366 = vmatpush1.msra.mxu0 0.0
    %2367 = vmatprep.subr.mxu0 0.0
    %2368 = vmatpush1.msra.mxu0 0.0
    %2369 = vmatprep.subr.mxu0 0.0
    %2370 = vmatpush1.msra.mxu0 0.0
    %2371 = vmatprep.subr.mxu0 0.0
    %2372 = vmatpush1.msra.mxu0 0.0
    %2373 = vmatprep.subr.mxu0 0.0
    %2374 = vmatpush1.msra.mxu0 0.0
    %2375 = vmatprep.subr.mxu0 0.0
    %2376 = vmatpush1.msra.mxu0 0.0
    %2377 = vmatprep.subr.mxu0 0.0
    %2378 = vmatpush1.msra.mxu0 0.0
    %2379 = vmatprep.subr.mxu0 0.0
    %2380 = vmatpush1.msra.mxu0 0.0
    %2381 = vmatprep.subr.mxu0 0.0
    %2382 = vmatpush1.msra.mxu0 0.0
    %2383 = vmatprep.subr.mxu0 0.0
    %2384 = vmatpush1.msra.mxu0 0.0
    %2385 = vmatprep.subr.mxu0 0.0
    %2386 = vmatpush1.msra.mxu0 0.0
    %2387 = vmatprep.subr.mxu0 0.0
    %2388 = vmatpush1.msra.mxu0 0.0
    %2389 = vmatprep.subr.mxu0 0.0
    %2390 = vmatpush1.msra.mxu0 0.0
    %2391 = vmatprep.subr.mxu0 0.0
    %2392 = vmatpush1.msra.mxu0 0.0
    %2393 = vmatprep.subr.mxu0 0.0
    %2394 = vmatpush1.msra.mxu0 0.0
    %2395 = vmatprep.subr.mxu0 0.0
    %2396 = vmatpush1.msra.mxu0 0.0
    %2397 = vmatprep.subr.mxu0 0.0
    %2398 = vmatpush1.msra.mxu0 0.0
    %2399 = vmatprep.subr.mxu0 0.0
    %2400 = vmatpush1.msra.mxu0 0.0
    %2401 = vmatprep.subr.mxu0 0.0
    %2402 = vmatpush1.msra.mxu0 0.0
    %2403 = vmatprep.subr.mxu0 0.0
    %2404 = vmatpush1.msra.mxu0 0.0
    %2405 = vmatprep.subr.mxu0 0.0
    %2406 = vmatpush1.msra.mxu0 0.0
    %2407 = vmatprep.subr.mxu0 0.0
    %2408 = vmatpush1.msra.mxu0 0.0
    %2409 = vmatprep.subr.mxu0 0.0
    %2410 = vmatpush1.msra.mxu0 0.0
    %2411 = vmatprep.subr.mxu0 0.0
    %2412 = vmatpush1.msra.mxu0 0.0
    %2413 = vmatprep.subr.mxu0 0.0
    %2414 = vmatpush1.msra.mxu0 0.0
    %2415 = vmatprep.subr.mxu0 0.0
    %2416 = vmatpush1.msra.mxu0 0.0
    %2417 = vmatprep.mubr.f32.mxu0 0.0
    %2418 = vmatmul.mubr.f32.gmra.mrb[0].mxu0 %v2351
    %v2419 = vpop.f32.mrb[0].mxu0
    %v2420 = vadd.f32 0.0, %v2419
    %v2421 = vpop.f32.mrb[0].mxu0
    %v2422 = vadd.f32 0.0, %v2421
    %2423 = vdwg.mxu0
    %v2424 = vpack.c.bf16 %v2346, %v2346
    %v2425 = vpack.c.bf16 %v2348, %v2348
    %v2426 = vpack.c.bf16 %v2420, %v2420
    %v2427 = vpack.c.bf16 %v2422, %v2422
    %v2428 = vld [vmem:[#allocation2 + $0x10] sm:$0xff]
    %v2429 = vld [vmem:[#allocation2 + $0x3c] sm:$0xff]
    %v2430 = vld [vmem:[#allocation2 + $0x68] sm:$0xff]
    %v2431 = vld [vmem:[#allocation2 + $0x94] sm:$0xff]
    %v2432 = vld [vmem:[#allocation2 + $0xc0] sm:$0xff]
    %v2433 = vld [vmem:[#allocation2 + $0xec] sm:$0xff]
    %v2434 = vld [vmem:[#allocation2 + $0x118] sm:$0xff]
    %v2435 = vld [vmem:[#allocation2 + $0x144] sm:$0xff]
    %v2436 = vld [vmem:[#allocation2 + $0x170] sm:$0xff]
    %v2437 = vld [vmem:[#allocation2 + $0x19c] sm:$0xff]
    %v2438 = vld [vmem:[#allocation2 + $0x1c8] sm:$0xff]
    %v2439 = vld [vmem:[#allocation2 + $0x1f4] sm:$0xff]
    %v2440 = vld [vmem:[#allocation2 + $0x220] sm:$0xff]
    %v2441 = vld [vmem:[#allocation2 + $0x24c] sm:$0xff]
    %v2442 = vld [vmem:[#allocation2 + $0x278] sm:$0xff]
    %v2443 = vld [vmem:[#allocation2 + $0x2a4] sm:$0xff]
    %v2444 = vld [vmem:[#allocation2 + $0x2d0] sm:$0xff]
    %v2445 = vld [vmem:[#allocation2 + $0x2fc] sm:$0xff]
    %v2446 = vld [vmem:[#allocation2 + $0x328] sm:$0xff]
    %v2447 = vld [vmem:[#allocation2 + $0x354] sm:$0xff]
    %v2448 = vld [vmem:[#allocation2 + $0x380] sm:$0xff]
    %v2449 = vld [vmem:[#allocation2 + $0x3ac] sm:$0xff]
    %v2450 = vld [vmem:[#allocation2 + $0x3d8] sm:$0xff]
    %v2451 = vld [vmem:[#allocation2 + $0x404] sm:$0xff]
    %v2452 = vld [vmem:[#allocation2 + $0x430] sm:$0xff]
    %v2453 = vld [vmem:[#allocation2 + $0x45c] sm:$0xff]
    %v2454 = vld [vmem:[#allocation2 + $0x488] sm:$0xff]
    %v2455 = vld [vmem:[#allocation2 + $0x4b4] sm:$0xff]
    %v2456 = vld [vmem:[#allocation2 + $0x4e0] sm:$0xff]
    %v2457 = vld [vmem:[#allocation2 + $0x50c] sm:$0xff]
    %v2458 = vld [vmem:[#allocation2 + $0x538] sm:$0xff]
    %v2459 = vld [vmem:[#allocation2 + $0x564] sm:$0xff]
    %v2464 = vunpack.c.l.b16 %v2424
    %v2465 = vunpack.c.l.b16 %v2425
    %v2466 = vunpack.c.l.b16 %v2426
    %v2467 = vunpack.c.l.b16 %v2427
    %v2468 = vrot.slane %v2466, 7
    %v2469 = vsel %vm1146, %v2468, %v2464
    %v2470 = vrot.slane %v2467, 7
    %v2471 = vsel %vm1146, %v2470, %v2465
    %v2472 = vpack.c.b16 %v2469, %v2469
    %v2473 = vpack.c.b16 %v2471, %v2471
    %v2508 = vunpack.c.l.b16 %v2428
    %v2509 = vunpack.c.h.b16 %v2428
    %v2510 = vunpack.c.l.b16 %v2429
    %v2511 = vunpack.c.h.b16 %v2429
    %v2512 = vunpack.c.l.b16 %v2430
    %v2513 = vunpack.c.h.b16 %v2430
    %v2514 = vunpack.c.l.b16 %v2431
    %v2515 = vunpack.c.h.b16 %v2431
    %v2516 = vunpack.c.l.b16 %v2432
    %v2517 = vunpack.c.h.b16 %v2432
    %v2518 = vunpack.c.l.b16 %v2433
    %v2519 = vunpack.c.h.b16 %v2433
    %v2520 = vunpack.c.l.b16 %v2434
    %v2521 = vunpack.c.h.b16 %v2434
    %v2522 = vunpack.c.l.b16 %v2435
    %v2523 = vunpack.c.h.b16 %v2435
    %v2524 = vunpack.c.l.b16 %v2436
    %v2525 = vunpack.c.h.b16 %v2436
    %v2526 = vunpack.c.l.b16 %v2437
    %v2527 = vunpack.c.h.b16 %v2437
    %v2528 = vunpack.c.l.b16 %v2438
    %v2529 = vunpack.c.h.b16 %v2438
    %v2530 = vunpack.c.l.b16 %v2439
    %v2531 = vunpack.c.h.b16 %v2439
    %v2532 = vunpack.c.l.b16 %v2440
    %v2533 = vunpack.c.h.b16 %v2440
    %v2534 = vunpack.c.l.b16 %v2441
    %v2535 = vunpack.c.h.b16 %v2441
    %v2536 = vunpack.c.l.b16 %v2442
    %v2537 = vunpack.c.h.b16 %v2442
    %v2538 = vunpack.c.l.b16 %v2443
    %v2539 = vunpack.c.h.b16 %v2443
    %v2540 = vunpack.c.l.b16 %v2444
    %v2541 = vunpack.c.h.b16 %v2444
    %v2542 = vunpack.c.l.b16 %v2445
    %v2543 = vunpack.c.h.b16 %v2445
    %v2544 = vunpack.c.l.b16 %v2446
    %v2545 = vunpack.c.h.b16 %v2446
    %v2546 = vunpack.c.l.b16 %v2447
    %v2547 = vunpack.c.h.b16 %v2447
    %v2548 = vunpack.c.l.b16 %v2448
    %v2549 = vunpack.c.h.b16 %v2448
    %v2550 = vunpack.c.l.b16 %v2449
    %v2551 = vunpack.c.h.b16 %v2449
    %v2552 = vunpack.c.l.b16 %v2450
    %v2553 = vunpack.c.h.b16 %v2450
    %v2554 = vunpack.c.l.b16 %v2451
    %v2555 = vunpack.c.h.b16 %v2451
    %v2556 = vunpack.c.l.b16 %v2452
    %v2557 = vunpack.c.h.b16 %v2452
    %v2558 = vunpack.c.l.b16 %v2453
    %v2559 = vunpack.c.h.b16 %v2453
    %v2560 = vunpack.c.l.b16 %v2454
    %v2561 = vunpack.c.h.b16 %v2454
    %v2562 = vunpack.c.l.b16 %v2455
    %v2563 = vunpack.c.h.b16 %v2455
    %v2564 = vunpack.c.l.b16 %v2456
    %v2565 = vunpack.c.h.b16 %v2456
    %v2566 = vunpack.c.l.b16 %v2457
    %v2567 = vunpack.c.h.b16 %v2457
    %v2568 = vunpack.c.l.b16 %v2458
    %v2569 = vunpack.c.h.b16 %v2458
    %v2570 = vunpack.c.l.b16 %v2459
    %v2571 = vunpack.c.h.b16 %v2459
    %v2572 = vpack.c.b16 %v2510, %v2508
    %v2573 = vpack.c.b16 %v2511, %v2509
    %v2574 = vpack.c.b16 %v2514, %v2512
    %v2575 = vpack.c.b16 %v2515, %v2513
    %v2576 = vpack.c.b16 %v2518, %v2516
    %v2577 = vpack.c.b16 %v2519, %v2517
    %v2578 = vpack.c.b16 %v2522, %v2520
    %v2579 = vpack.c.b16 %v2523, %v2521
    %v2580 = vpack.c.b16 %v2526, %v2524
    %v2581 = vpack.c.b16 %v2527, %v2525
    %v2582 = vpack.c.b16 %v2530, %v2528
    %v2583 = vpack.c.b16 %v2531, %v2529
    %v2584 = vpack.c.b16 %v2534, %v2532
    %v2585 = vpack.c.b16 %v2535, %v2533
    %v2586 = vpack.c.b16 %v2538, %v2536
    %v2587 = vpack.c.b16 %v2539, %v2537
    %v2588 = vpack.c.b16 %v2542, %v2540
    %v2589 = vpack.c.b16 %v2543, %v2541
    %v2590 = vpack.c.b16 %v2546, %v2544
    %v2591 = vpack.c.b16 %v2547, %v2545
    %v2592 = vpack.c.b16 %v2550, %v2548
    %v2593 = vpack.c.b16 %v2551, %v2549
    %v2594 = vpack.c.b16 %v2554, %v2552
    %v2595 = vpack.c.b16 %v2555, %v2553
    %v2596 = vpack.c.b16 %v2558, %v2556
    %v2597 = vpack.c.b16 %v2559, %v2557
    %v2598 = vpack.c.b16 %v2562, %v2560
    %v2599 = vpack.c.b16 %v2563, %v2561
    %v2600 = vpack.c.b16 %v2566, %v2564
    %v2601 = vpack.c.b16 %v2567, %v2565
    %v2602 = vpack.c.b16 %v2570, %v2568
    %v2603 = vpack.c.b16 %v2571, %v2569
    %2636 = vmatprep.subr.bf16.mxu0 %v2573
    %2637 = vmatpush1.bf16.msra.mxu0 %v2572
    %2638 = vmatprep.subr.bf16.mxu0 %v2575
    %2639 = vmatpush1.bf16.msra.mxu0 %v2574
    %2640 = vmatprep.subr.bf16.mxu0 %v2577
    %2641 = vmatpush1.bf16.msra.mxu0 %v2576
    %2642 = vmatprep.subr.bf16.mxu0 %v2579
    %2643 = vmatpush1.bf16.msra.mxu0 %v2578
    %2644 = vmatprep.subr.bf16.mxu0 %v2581
    %2645 = vmatpush1.bf16.msra.mxu0 %v2580
    %2646 = vmatprep.subr.bf16.mxu0 %v2583
    %2647 = vmatpush1.bf16.msra.mxu0 %v2582
    %2648 = vmatprep.subr.bf16.mxu0 %v2585
    %2649 = vmatpush1.bf16.msra.mxu0 %v2584
    %2650 = vmatprep.subr.bf16.mxu0 %v2587
    %2651 = vmatpush1.bf16.msra.mxu0 %v2586
    %2652 = vmatprep.subr.bf16.mxu0 %v2589
    %2653 = vmatpush1.bf16.msra.mxu0 %v2588
    %2654 = vmatprep.subr.bf16.mxu0 %v2591
    %2655 = vmatpush1.bf16.msra.mxu0 %v2590
    %2656 = vmatprep.subr.bf16.mxu0 %v2593
    %2657 = vmatpush1.bf16.msra.mxu0 %v2592
    %2658 = vmatprep.subr.bf16.mxu0 %v2595
    %2659 = vmatpush1.bf16.msra.mxu0 %v2594
    %2660 = vmatprep.subr.bf16.mxu0 %v2597
    %2661 = vmatpush1.bf16.msra.mxu0 %v2596
    %2662 = vmatprep.subr.bf16.mxu0 %v2599
    %2663 = vmatpush1.bf16.msra.mxu0 %v2598
    %2664 = vmatprep.subr.bf16.mxu0 %v2601
    %2665 = vmatpush1.bf16.msra.mxu0 %v2600
    %2666 = vmatprep.subr.bf16.mxu0 %v2603
    %2667 = vmatpush1.bf16.msra.mxu0 %v2602
    %2668 = vmatprep.mubr.bf16.mxu0 %v2473
    %2669 = vmatmul.mubr.bf16.gmra.mrb[0].mxu0 %v2472
    %v2670 = vpop.f32.mrb[0].mxu0
    %v2671 = vadd.f32 0.0, %v2670
    %v2672 = vpop.f32.mrb[0].mxu0
    %v2673 = vadd.f32 0.0, %v2672
    %v2674 = vpop.f32.mrb[0].mxu0
    %v2675 = vpop.f32.mrb[0].mxu0
    %2676 = vdwg.mxu0
    %v2678 = vlaneseq
    %v2679 = vshrl.u32 %v2678, 7
    %v2680 = vsub.s32 0, %v2679
    %v2681 = vrot.slane %v64, %v2680
    %v2682 = vlaneseq
    %v2683 = vshrl.u32 %v2682, 7
    %v2684 = vsub.s32 1, %v2683
    %v2685 = vrot.slane %v64, %v2684
    %v2688 = vadd.f32 %v2681, %v2671
    %v2689 = vadd.f32 %v2685, %v2673
    %v2690 = vsel %vm1239, %v2688, 0.0
    %v2691 = vsel %vm1239, %v2689, 0.0
    %v2692 = vadd.f32 %v2690, %v2691
    %2693 = vadd.xlane.f32.xlu0 %v2692
    %v2694 = vpop.xlane.xlu0 %2693
    %v2695 = vrcp.pop 256.0
    %v2696 = vmul.f32 %v2694, %v2695
    %v2697 = vsub.f32 %v2688, %v2696
    %v2698 = vsub.f32 %v2689, %v2696
    %v2699 = vmul.f32 %v2697, %v2697
    %v2700 = vmul.f32 %v2698, %v2698
    %v2701 = vsel %vm1239, %v2699, 0.0
    %v2702 = vsel %vm1239, %v2700, 0.0
    %v2703 = vadd.f32 %v2701, %v2702
    %2704 = vadd.xlane.f32.xlu0 %v2703
    %v2705 = vpop.xlane.xlu0 %2704
    %v2706 = vmul.f32 %v2705, %v2695
    %v2707 = vadd.f32 %v2706, 1e-05
    %v2708 = vrsqrt.pop %v2707
    %v2709 = vmul.f32 %v2697, %v2708
    %v2710 = vmul.f32 %v2698, %v2708
    %v2712 = vlaneseq
    %v2713 = vshrl.u32 %v2712, 7
    %v2714 = vsub.s32 0, %v2713
    %v2715 = vrot.slane %v68, %v2714
    %v2716 = vlaneseq
    %v2717 = vshrl.u32 %v2716, 7
    %v2718 = vsub.s32 1, %v2717
    %v2719 = vrot.slane %v68, %v2718
    %v2722 = vmul.f32 %v2709, %v2715
    %v2723 = vmul.f32 %v2710, %v2719
    %v2725 = vlaneseq
    %v2726 = vshrl.u32 %v2725, 7
    %v2727 = vsub.s32 0, %v2726
    %v2728 = vrot.slane %v70, %v2727
    %v2729 = vlaneseq
    %v2730 = vshrl.u32 %v2729, 7
    %v2731 = vsub.s32 1, %v2730
    %v2732 = vrot.slane %v70, %v2731
    %v2735 = vadd.f32 %v2722, %v2728
    %v2736 = vadd.f32 %v2723, %v2732
    %v2737 = vpack.c.bf16 %v2735, %v2735
    %v2738 = vpack.c.bf16 %v2736, %v2736
    %v2739 = vld [vmem:[#allocation2 + $0x18] sm:$0xff]
    %v2740 = vld [vmem:[#allocation2 + $0x20] sm:$0xff]
    %v2741 = vld [vmem:[#allocation2 + $0x44] sm:$0xff]
    %v2742 = vld [vmem:[#allocation2 + $0x4c] sm:$0xff]
    %v2743 = vld [vmem:[#allocation2 + $0x70] sm:$0xff]
    %v2744 = vld [vmem:[#allocation2 + $0x78] sm:$0xff]
    %v2745 = vld [vmem:[#allocation2 + $0x9c] sm:$0xff]
    %v2746 = vld [vmem:[#allocation2 + $0xa4] sm:$0xff]
    %v2747 = vld [vmem:[#allocation2 + $0xc8] sm:$0xff]
    %v2748 = vld [vmem:[#allocation2 + $0xd0] sm:$0xff]
    %v2749 = vld [vmem:[#allocation2 + $0xf4] sm:$0xff]
    %v2750 = vld [vmem:[#allocation2 + $0xfc] sm:$0xff]
    %v2751 = vld [vmem:[#allocation2 + $0x120] sm:$0xff]
    %v2752 = vld [vmem:[#allocation2 + $0x128] sm:$0xff]
    %v2753 = vld [vmem:[#allocation2 + $0x14c] sm:$0xff]
    %v2754 = vld [vmem:[#allocation2 + $0x154] sm:$0xff]
    %v2755 = vld [vmem:[#allocation2 + $0x178] sm:$0xff]
    %v2756 = vld [vmem:[#allocation2 + $0x180] sm:$0xff]
    %v2757 = vld [vmem:[#allocation2 + $0x1a4] sm:$0xff]
    %v2758 = vld [vmem:[#allocation2 + $0x1ac] sm:$0xff]
    %v2759 = vld [vmem:[#allocation2 + $0x1d0] sm:$0xff]
    %v2760 = vld [vmem:[#allocation2 + $0x1d8] sm:$0xff]
    %v2761 = vld [vmem:[#allocation2 + $0x1fc] sm:$0xff]
    %v2762 = vld [vmem:[#allocation2 + $0x204] sm:$0xff]
    %v2763 = vld [vmem:[#allocation2 + $0x228] sm:$0xff]
    %v2764 = vld [vmem:[#allocation2 + $0x230] sm:$0xff]
    %v2765 = vld [vmem:[#allocation2 + $0x254] sm:$0xff]
    %v2766 = vld [vmem:[#allocation2 + $0x25c] sm:$0xff]
    %v2767 = vld [vmem:[#allocation2 + $0x280] sm:$0xff]
    %v2768 = vld [vmem:[#allocation2 + $0x288] sm:$0xff]
    %v2769 = vld [vmem:[#allocation2 + $0x2ac] sm:$0xff]
    %v2770 = vld [vmem:[#allocation2 + $0x2b4] sm:$0xff]
    %v2771 = vld [vmem:[#allocation2 + $0x2d8] sm:$0xff]
    %v2772 = vld [vmem:[#allocation2 + $0x2e0] sm:$0xff]
    %v2773 = vld [vmem:[#allocation2 + $0x304] sm:$0xff]
    %v2774 = vld [vmem:[#allocation2 + $0x30c] sm:$0xff]
    %v2775 = vld [vmem:[#allocation2 + $0x330] sm:$0xff]
    %v2776 = vld [vmem:[#allocation2 + $0x338] sm:$0xff]
    %v2777 = vld [vmem:[#allocation2 + $0x35c] sm:$0xff]
    %v2778 = vld [vmem:[#allocation2 + $0x364] sm:$0xff]
    %v2779 = vld [vmem:[#allocation2 + $0x388] sm:$0xff]
    %v2780 = vld [vmem:[#allocation2 + $0x390] sm:$0xff]
    %v2781 = vld [vmem:[#allocation2 + $0x3b4] sm:$0xff]
    %v2782 = vld [vmem:[#allocation2 + $0x3bc] sm:$0xff]
    %v2783 = vld [vmem:[#allocation2 + $0x3e0] sm:$0xff]
    %v2784 = vld [vmem:[#allocation2 + $0x3e8] sm:$0xff]
    %v2785 = vld [vmem:[#allocation2 + $0x40c] sm:$0xff]
    %v2786 = vld [vmem:[#allocation2 + $0x414] sm:$0xff]
    %v2787 = vld [vmem:[#allocation2 + $0x438] sm:$0xff]
    %v2788 = vld [vmem:[#allocation2 + $0x440] sm:$0xff]
    %v2789 = vld [vmem:[#allocation2 + $0x464] sm:$0xff]
    %v2790 = vld [vmem:[#allocation2 + $0x46c] sm:$0xff]
    %v2791 = vld [vmem:[#allocation2 + $0x490] sm:$0xff]
    %v2792 = vld [vmem:[#allocation2 + $0x498] sm:$0xff]
    %v2793 = vld [vmem:[#allocation2 + $0x4bc] sm:$0xff]
    %v2794 = vld [vmem:[#allocation2 + $0x4c4] sm:$0xff]
    %v2795 = vld [vmem:[#allocation2 + $0x4e8] sm:$0xff]
    %v2796 = vld [vmem:[#allocation2 + $0x4f0] sm:$0xff]
    %v2797 = vld [vmem:[#allocation2 + $0x514] sm:$0xff]
    %v2798 = vld [vmem:[#allocation2 + $0x51c] sm:$0xff]
    %v2799 = vld [vmem:[#allocation2 + $0x540] sm:$0xff]
    %v2800 = vld [vmem:[#allocation2 + $0x548] sm:$0xff]
    %v2801 = vld [vmem:[#allocation2 + $0x56c] sm:$0xff]
    %v2802 = vld [vmem:[#allocation2 + $0x574] sm:$0xff]
    %v2804 = vlaneseq
    %v2805 = vshrl.u32 %v2804, 7
    %v2806 = vsub.s32 0, %v2805
    %v2807 = vrot.slane %v80, %v2806
    %v2808 = vlaneseq
    %v2809 = vshrl.u32 %v2808, 7
    %v2810 = vsub.s32 1, %v2809
    %v2811 = vrot.slane %v80, %v2810
    %v2812 = vlaneseq
    %v2813 = vshrl.u32 %v2812, 7
    %v2814 = vsub.s32 2, %v2813
    %v2815 = vrot.slane %v80, %v2814
    %v2816 = vlaneseq
    %v2817 = vshrl.u32 %v2816, 7
    %v2818 = vsub.s32 3, %v2817
    %v2819 = vrot.slane %v80, %v2818
    %v2888 = vunpack.c.l.b16 %v2739
    %v2889 = vunpack.c.h.b16 %v2739
    %v2890 = vunpack.c.l.b16 %v2740
    %v2891 = vunpack.c.h.b16 %v2740
    %v2892 = vunpack.c.l.b16 %v2741
    %v2893 = vunpack.c.h.b16 %v2741
    %v2894 = vunpack.c.l.b16 %v2742
    %v2895 = vunpack.c.h.b16 %v2742
    %v2896 = vunpack.c.l.b16 %v2743
    %v2897 = vunpack.c.h.b16 %v2743
    %v2898 = vunpack.c.l.b16 %v2744
    %v2899 = vunpack.c.h.b16 %v2744
    %v2900 = vunpack.c.l.b16 %v2745
    %v2901 = vunpack.c.h.b16 %v2745
    %v2902 = vunpack.c.l.b16 %v2746
    %v2903 = vunpack.c.h.b16 %v2746
    %v2904 = vunpack.c.l.b16 %v2747
    %v2905 = vunpack.c.h.b16 %v2747
    %v2906 = vunpack.c.l.b16 %v2748
    %v2907 = vunpack.c.h.b16 %v2748
    %v2908 = vunpack.c.l.b16 %v2749
    %v2909 = vunpack.c.h.b16 %v2749
    %v2910 = vunpack.c.l.b16 %v2750
    %v2911 = vunpack.c.h.b16 %v2750
    %v2912 = vunpack.c.l.b16 %v2751
    %v2913 = vunpack.c.h.b16 %v2751
    %v2914 = vunpack.c.l.b16 %v2752
    %v2915 = vunpack.c.h.b16 %v2752
    %v2916 = vunpack.c.l.b16 %v2753
    %v2917 = vunpack.c.h.b16 %v2753
    %v2918 = vunpack.c.l.b16 %v2754
    %v2919 = vunpack.c.h.b16 %v2754
    %v2920 = vunpack.c.l.b16 %v2755
    %v2921 = vunpack.c.h.b16 %v2755
    %v2922 = vunpack.c.l.b16 %v2756
    %v2923 = vunpack.c.h.b16 %v2756
    %v2924 = vunpack.c.l.b16 %v2757
    %v2925 = vunpack.c.h.b16 %v2757
    %v2926 = vunpack.c.l.b16 %v2758
    %v2927 = vunpack.c.h.b16 %v2758
    %v2928 = vunpack.c.l.b16 %v2759
    %v2929 = vunpack.c.h.b16 %v2759
    %v2930 = vunpack.c.l.b16 %v2760
    %v2931 = vunpack.c.h.b16 %v2760
    %v2932 = vunpack.c.l.b16 %v2761
    %v2933 = vunpack.c.h.b16 %v2761
    %v2934 = vunpack.c.l.b16 %v2762
    %v2935 = vunpack.c.h.b16 %v2762
    %v2936 = vunpack.c.l.b16 %v2763
    %v2937 = vunpack.c.h.b16 %v2763
    %v2938 = vunpack.c.l.b16 %v2764
    %v2939 = vunpack.c.h.b16 %v2764
    %v2940 = vunpack.c.l.b16 %v2765
    %v2941 = vunpack.c.h.b16 %v2765
    %v2942 = vunpack.c.l.b16 %v2766
    %v2943 = vunpack.c.h.b16 %v2766
    %v2944 = vunpack.c.l.b16 %v2767
    %v2945 = vunpack.c.h.b16 %v2767
    %v2946 = vunpack.c.l.b16 %v2768
    %v2947 = vunpack.c.h.b16 %v2768
    %v2948 = vunpack.c.l.b16 %v2769
    %v2949 = vunpack.c.h.b16 %v2769
    %v2950 = vunpack.c.l.b16 %v2770
    %v2951 = vunpack.c.h.b16 %v2770
    %v2952 = vunpack.c.l.b16 %v2771
    %v2953 = vunpack.c.h.b16 %v2771
    %v2954 = vunpack.c.l.b16 %v2772
    %v2955 = vunpack.c.h.b16 %v2772
    %v2956 = vunpack.c.l.b16 %v2773
    %v2957 = vunpack.c.h.b16 %v2773
    %v2958 = vunpack.c.l.b16 %v2774
    %v2959 = vunpack.c.h.b16 %v2774
    %v2960 = vunpack.c.l.b16 %v2775
    %v2961 = vunpack.c.h.b16 %v2775
    %v2962 = vunpack.c.l.b16 %v2776
    %v2963 = vunpack.c.h.b16 %v2776
    %v2964 = vunpack.c.l.b16 %v2777
    %v2965 = vunpack.c.h.b16 %v2777
    %v2966 = vunpack.c.l.b16 %v2778
    %v2967 = vunpack.c.h.b16 %v2778
    %v2968 = vunpack.c.l.b16 %v2779
    %v2969 = vunpack.c.h.b16 %v2779
    %v2970 = vunpack.c.l.b16 %v2780
    %v2971 = vunpack.c.h.b16 %v2780
    %v2972 = vunpack.c.l.b16 %v2781
    %v2973 = vunpack.c.h.b16 %v2781
    %v2974 = vunpack.c.l.b16 %v2782
    %v2975 = vunpack.c.h.b16 %v2782
    %v2976 = vunpack.c.l.b16 %v2783
    %v2977 = vunpack.c.h.b16 %v2783
    %v2978 = vunpack.c.l.b16 %v2784
    %v2979 = vunpack.c.h.b16 %v2784
    %v2980 = vunpack.c.l.b16 %v2785
    %v2981 = vunpack.c.h.b16 %v2785
    %v2982 = vunpack.c.l.b16 %v2786
    %v2983 = vunpack.c.h.b16 %v2786
    %v2984 = vunpack.c.l.b16 %v2787
    %v2985 = vunpack.c.h.b16 %v2787
    %v2986 = vunpack.c.l.b16 %v2788
    %v2987 = vunpack.c.h.b16 %v2788
    %v2988 = vunpack.c.l.b16 %v2789
    %v2989 = vunpack.c.h.b16 %v2789
    %v2990 = vunpack.c.l.b16 %v2790
    %v2991 = vunpack.c.h.b16 %v2790
    %v2992 = vunpack.c.l.b16 %v2791
    %v2993 = vunpack.c.h.b16 %v2791
    %v2994 = vunpack.c.l.b16 %v2792
    %v2995 = vunpack.c.h.b16 %v2792
    %v2996 = vunpack.c.l.b16 %v2793
    %v2997 = vunpack.c.h.b16 %v2793
    %v2998 = vunpack.c.l.b16 %v2794
    %v2999 = vunpack.c.h.b16 %v2794
    %v3000 = vunpack.c.l.b16 %v2795
    %v3001 = vunpack.c.h.b16 %v2795
    %v3002 = vunpack.c.l.b16 %v2796
    %v3003 = vunpack.c.h.b16 %v2796
    %v3004 = vunpack.c.l.b16 %v2797
    %v3005 = vunpack.c.h.b16 %v2797
    %v3006 = vunpack.c.l.b16 %v2798
    %v3007 = vunpack.c.h.b16 %v2798
    %v3008 = vunpack.c.l.b16 %v2799
    %v3009 = vunpack.c.h.b16 %v2799
    %v3010 = vunpack.c.l.b16 %v2800
    %v3011 = vunpack.c.h.b16 %v2800
    %v3012 = vunpack.c.l.b16 %v2801
    %v3013 = vunpack.c.h.b16 %v2801
    %v3014 = vunpack.c.l.b16 %v2802
    %v3015 = vunpack.c.h.b16 %v2802
    %v3016 = vpack.c.b16 %v2892, %v2888
    %v3017 = vpack.c.b16 %v2893, %v2889
    %v3018 = vpack.c.b16 %v2894, %v2890
    %v3019 = vpack.c.b16 %v2895, %v2891
    %v3020 = vpack.c.b16 %v2900, %v2896
    %v3021 = vpack.c.b16 %v2901, %v2897
    %v3022 = vpack.c.b16 %v2902, %v2898
    %v3023 = vpack.c.b16 %v2903, %v2899
    %v3024 = vpack.c.b16 %v2908, %v2904
    %v3025 = vpack.c.b16 %v2909, %v2905
    %v3026 = vpack.c.b16 %v2910, %v2906
    %v3027 = vpack.c.b16 %v2911, %v2907
    %v3028 = vpack.c.b16 %v2916, %v2912
    %v3029 = vpack.c.b16 %v2917, %v2913
    %v3030 = vpack.c.b16 %v2918, %v2914
    %v3031 = vpack.c.b16 %v2919, %v2915
    %v3032 = vpack.c.b16 %v2924, %v2920
    %v3033 = vpack.c.b16 %v2925, %v2921
    %v3034 = vpack.c.b16 %v2926, %v2922
    %v3035 = vpack.c.b16 %v2927, %v2923
    %v3036 = vpack.c.b16 %v2932, %v2928
    %v3037 = vpack.c.b16 %v2933, %v2929
    %v3038 = vpack.c.b16 %v2934, %v2930
    %v3039 = vpack.c.b16 %v2935, %v2931
    %v3040 = vpack.c.b16 %v2940, %v2936
    %v3041 = vpack.c.b16 %v2941, %v2937
    %v3042 = vpack.c.b16 %v2942, %v2938
    %v3043 = vpack.c.b16 %v2943, %v2939
    %v3044 = vpack.c.b16 %v2948, %v2944
    %v3045 = vpack.c.b16 %v2949, %v2945
    %v3046 = vpack.c.b16 %v2950, %v2946
    %v3047 = vpack.c.b16 %v2951, %v2947
    %v3048 = vpack.c.b16 %v2956, %v2952
    %v3049 = vpack.c.b16 %v2957, %v2953
    %v3050 = vpack.c.b16 %v2958, %v2954
    %v3051 = vpack.c.b16 %v2959, %v2955
    %v3052 = vpack.c.b16 %v2964, %v2960
    %v3053 = vpack.c.b16 %v2965, %v2961
    %v3054 = vpack.c.b16 %v2966, %v2962
    %v3055 = vpack.c.b16 %v2967, %v2963
    %v3056 = vpack.c.b16 %v2972, %v2968
    %v3057 = vpack.c.b16 %v2973, %v2969
    %v3058 = vpack.c.b16 %v2974, %v2970
    %v3059 = vpack.c.b16 %v2975, %v2971
    %v3060 = vpack.c.b16 %v2980, %v2976
    %v3061 = vpack.c.b16 %v2981, %v2977
    %v3062 = vpack.c.b16 %v2982, %v2978
    %v3063 = vpack.c.b16 %v2983, %v2979
    %v3064 = vpack.c.b16 %v2988, %v2984
    %v3065 = vpack.c.b16 %v2989, %v2985
    %v3066 = vpack.c.b16 %v2990, %v2986
    %v3067 = vpack.c.b16 %v2991, %v2987
    %v3068 = vpack.c.b16 %v2996, %v2992
    %v3069 = vpack.c.b16 %v2997, %v2993
    %v3070 = vpack.c.b16 %v2998, %v2994
    %v3071 = vpack.c.b16 %v2999, %v2995
    %v3072 = vpack.c.b16 %v3004, %v3000
    %v3073 = vpack.c.b16 %v3005, %v3001
    %v3074 = vpack.c.b16 %v3006, %v3002
    %v3075 = vpack.c.b16 %v3007, %v3003
    %v3076 = vpack.c.b16 %v3012, %v3008
    %v3077 = vpack.c.b16 %v3013, %v3009
    %v3078 = vpack.c.b16 %v3014, %v3010
    %v3079 = vpack.c.b16 %v3015, %v3011
    %3144 = vmatprep.subr.bf16.mxu0 %v3017
    %3145 = vmatpush1.bf16.msra.mxu0 %v3016
    %3146 = vmatprep.subr.bf16.mxu0 %v3021
    %3147 = vmatpush1.bf16.msra.mxu0 %v3020
    %3148 = vmatprep.subr.bf16.mxu0 %v3025
    %3149 = vmatpush1.bf16.msra.mxu0 %v3024
    %3150 = vmatprep.subr.bf16.mxu0 %v3029
    %3151 = vmatpush1.bf16.msra.mxu0 %v3028
    %3152 = vmatprep.subr.bf16.mxu0 %v3033
    %3153 = vmatpush1.bf16.msra.mxu0 %v3032
    %3154 = vmatprep.subr.bf16.mxu0 %v3037
    %3155 = vmatpush1.bf16.msra.mxu0 %v3036
    %3156 = vmatprep.subr.bf16.mxu0 %v3041
    %3157 = vmatpush1.bf16.msra.mxu0 %v3040
    %3158 = vmatprep.subr.bf16.mxu0 %v3045
    %3159 = vmatpush1.bf16.msra.mxu0 %v3044
    %3160 = vmatprep.subr.bf16.mxu0 %v3049
    %3161 = vmatpush1.bf16.msra.mxu0 %v3048
    %3162 = vmatprep.subr.bf16.mxu0 %v3053
    %3163 = vmatpush1.bf16.msra.mxu0 %v3052
    %3164 = vmatprep.subr.bf16.mxu0 %v3057
    %3165 = vmatpush1.bf16.msra.mxu0 %v3056
    %3166 = vmatprep.subr.bf16.mxu0 %v3061
    %3167 = vmatpush1.bf16.msra.mxu0 %v3060
    %3168 = vmatprep.subr.bf16.mxu0 %v3065
    %3169 = vmatpush1.bf16.msra.mxu0 %v3064
    %3170 = vmatprep.subr.bf16.mxu0 %v3069
    %3171 = vmatpush1.bf16.msra.mxu0 %v3068
    %3172 = vmatprep.subr.bf16.mxu0 %v3073
    %3173 = vmatpush1.bf16.msra.mxu0 %v3072
    %3174 = vmatprep.subr.bf16.mxu0 %v3077
    %3175 = vmatpush1.bf16.msra.mxu0 %v3076
    %3176 = vmatprep.mubr.bf16.mxu0 %v2738
    %3177 = vmatmul.mubr.bf16.gmra.mrb[0].mxu0 %v2737
    %v3178 = vpop.f32.mrb[0].mxu0
    %v3179 = vadd.f32 %v2807, %v3178
    %v3180 = vpop.f32.mrb[0].mxu0
    %v3181 = vadd.f32 %v2811, %v3180
    %v3182 = vpop.f32.mrb[0].mxu0
    %v3183 = vpop.f32.mrb[0].mxu0
    %3184 = vdwg.mxu0
    %3185 = vmatprep.subr.bf16.mxu0 %v3019
    %3186 = vmatpush1.bf16.msra.mxu0 %v3018
    %3187 = vmatprep.subr.bf16.mxu0 %v3023
    %3188 = vmatpush1.bf16.msra.mxu0 %v3022
    %3189 = vmatprep.subr.bf16.mxu0 %v3027
    %3190 = vmatpush1.bf16.msra.mxu0 %v3026
    %3191 = vmatprep.subr.bf16.mxu0 %v3031
    %3192 = vmatpush1.bf16.msra.mxu0 %v3030
    %3193 = vmatprep.subr.bf16.mxu0 %v3035
    %3194 = vmatpush1.bf16.msra.mxu0 %v3034
    %3195 = vmatprep.subr.bf16.mxu0 %v3039
    %3196 = vmatpush1.bf16.msra.mxu0 %v3038
    %3197 = vmatprep.subr.bf16.mxu0 %v3043
    %3198 = vmatpush1.bf16.msra.mxu0 %v3042
    %3199 = vmatprep.subr.bf16.mxu0 %v3047
    %3200 = vmatpush1.bf16.msra.mxu0 %v3046
    %3201 = vmatprep.subr.bf16.mxu0 %v3051
    %3202 = vmatpush1.bf16.msra.mxu0 %v3050
    %3203 = vmatprep.subr.bf16.mxu0 %v3055
    %3204 = vmatpush1.bf16.msra.mxu0 %v3054
    %3205 = vmatprep.subr.bf16.mxu0 %v3059
    %3206 = vmatpush1.bf16.msra.mxu0 %v3058
    %3207 = vmatprep.subr.bf16.mxu0 %v3063
    %3208 = vmatpush1.bf16.msra.mxu0 %v3062
    %3209 = vmatprep.subr.bf16.mxu0 %v3067
    %3210 = vmatpush1.bf16.msra.mxu0 %v3066
    %3211 = vmatprep.subr.bf16.mxu0 %v3071
    %3212 = vmatpush1.bf16.msra.mxu0 %v3070
    %3213 = vmatprep.subr.bf16.mxu0 %v3075
    %3214 = vmatpush1.bf16.msra.mxu0 %v3074
    %3215 = vmatprep.subr.bf16.mxu0 %v3079
    %3216 = vmatpush1.bf16.msra.mxu0 %v3078
    %3217 = vmatprep.mubr.bf16.mxu0 %v2738
    %3218 = vmatmul.mubr.bf16.gmra.mrb[0].mxu0 %v2737
    %v3219 = vpop.f32.mrb[0].mxu0
    %v3220 = vadd.f32 %v2815, %v3219
    %v3221 = vpop.f32.mrb[0].mxu0
    %v3222 = vadd.f32 %v2819, %v3221
    %v3223 = vpop.f32.mrb[0].mxu0
    %v3224 = vpop.f32.mrb[0].mxu0
    %3225 = vdwg.mxu0
    %v3226 = vmax.f32 %v3179, 0.0
    %v3227 = vmax.f32 %v3181, 0.0
    %v3228 = vmax.f32 %v3220, 0.0
    %v3229 = vmax.f32 %v3222, 0.0
    %v3230 = vpack.c.bf16 %v3226, %v3226
    %v3231 = vpack.c.bf16 %v3227, %v3227
    %v3232 = vpack.c.bf16 %v3228, %v3228
    %v3233 = vpack.c.bf16 %v3229, %v3229
    %v3234 = vld [vmem:[#allocation5] sm:$0xff]
    %v3235 = vld [vmem:[#allocation5 + $0x8] sm:$0xff]
    %v3236 = vld [vmem:[#allocation5 + $0x10] sm:$0xff]
    %v3237 = vld [vmem:[#allocation5 + $0x18] sm:$0xff]
    %v3238 = vld [vmem:[#allocation5 + $0x20] sm:$0xff]
    %v3239 = vld [vmem:[#allocation5 + $0x28] sm:$0xff]
    %v3240 = vld [vmem:[#allocation5 + $0x30] sm:$0xff]
    %v3241 = vld [vmem:[#allocation5 + $0x38] sm:$0xff]
    %v3242 = vld [vmem:[#allocation5 + $0x40] sm:$0xff]
    %v3243 = vld [vmem:[#allocation5 + $0x48] sm:$0xff]
    %v3244 = vld [vmem:[#allocation5 + $0x50] sm:$0xff]
    %v3245 = vld [vmem:[#allocation5 + $0x58] sm:$0xff]
    %v3246 = vld [vmem:[#allocation5 + $0x60] sm:$0xff]
    %v3247 = vld [vmem:[#allocation5 + $0x68] sm:$0xff]
    %v3248 = vld [vmem:[#allocation5 + $0x70] sm:$0xff]
    %v3249 = vld [vmem:[#allocation5 + $0x78] sm:$0xff]
    %v3250 = vld [vmem:[#allocation5 + $0x80] sm:$0xff]
    %v3251 = vld [vmem:[#allocation5 + $0x88] sm:$0xff]
    %v3252 = vld [vmem:[#allocation5 + $0x90] sm:$0xff]
    %v3253 = vld [vmem:[#allocation5 + $0x98] sm:$0xff]
    %v3254 = vld [vmem:[#allocation5 + $0xa0] sm:$0xff]
    %v3255 = vld [vmem:[#allocation5 + $0xa8] sm:$0xff]
    %v3256 = vld [vmem:[#allocation5 + $0xb0] sm:$0xff]
    %v3257 = vld [vmem:[#allocation5 + $0xb8] sm:$0xff]
    %v3258 = vld [vmem:[#allocation5 + $0xc0] sm:$0xff]
    %v3259 = vld [vmem:[#allocation5 + $0xc8] sm:$0xff]
    %v3260 = vld [vmem:[#allocation5 + $0xd0] sm:$0xff]
    %v3261 = vld [vmem:[#allocation5 + $0xd8] sm:$0xff]
    %v3262 = vld [vmem:[#allocation5 + $0xe0] sm:$0xff]
    %v3263 = vld [vmem:[#allocation5 + $0xe8] sm:$0xff]
    %v3264 = vld [vmem:[#allocation5 + $0xf0] sm:$0xff]
    %v3265 = vld [vmem:[#allocation5 + $0xf8] sm:$0xff]
    %v3266 = vld [vmem:[#allocation5 + $0x100] sm:$0xff]
    %v3267 = vld [vmem:[#allocation5 + $0x108] sm:$0xff]
    %v3268 = vld [vmem:[#allocation5 + $0x110] sm:$0xff]
    %v3269 = vld [vmem:[#allocation5 + $0x118] sm:$0xff]
    %v3270 = vld [vmem:[#allocation5 + $0x120] sm:$0xff]
    %v3271 = vld [vmem:[#allocation5 + $0x128] sm:$0xff]
    %v3272 = vld [vmem:[#allocation5 + $0x130] sm:$0xff]
    %v3273 = vld [vmem:[#allocation5 + $0x138] sm:$0xff]
    %v3274 = vld [vmem:[#allocation5 + $0x140] sm:$0xff]
    %v3275 = vld [vmem:[#allocation5 + $0x148] sm:$0xff]
    %v3276 = vld [vmem:[#allocation5 + $0x150] sm:$0xff]
    %v3277 = vld [vmem:[#allocation5 + $0x158] sm:$0xff]
    %v3278 = vld [vmem:[#allocation5 + $0x160] sm:$0xff]
    %v3279 = vld [vmem:[#allocation5 + $0x168] sm:$0xff]
    %v3280 = vld [vmem:[#allocation5 + $0x170] sm:$0xff]
    %v3281 = vld [vmem:[#allocation5 + $0x178] sm:$0xff]
    %v3282 = vld [vmem:[#allocation5 + $0x180] sm:$0xff]
    %v3283 = vld [vmem:[#allocation5 + $0x188] sm:$0xff]
    %v3284 = vld [vmem:[#allocation5 + $0x190] sm:$0xff]
    %v3285 = vld [vmem:[#allocation5 + $0x198] sm:$0xff]
    %v3286 = vld [vmem:[#allocation5 + $0x1a0] sm:$0xff]
    %v3287 = vld [vmem:[#allocation5 + $0x1a8] sm:$0xff]
    %v3288 = vld [vmem:[#allocation5 + $0x1b0] sm:$0xff]
    %v3289 = vld [vmem:[#allocation5 + $0x1b8] sm:$0xff]
    %v3290 = vld [vmem:[#allocation5 + $0x1c0] sm:$0xff]
    %v3291 = vld [vmem:[#allocation5 + $0x1c8] sm:$0xff]
    %v3292 = vld [vmem:[#allocation5 + $0x1d0] sm:$0xff]
    %v3293 = vld [vmem:[#allocation5 + $0x1d8] sm:$0xff]
    %v3294 = vld [vmem:[#allocation5 + $0x1e0] sm:$0xff]
    %v3295 = vld [vmem:[#allocation5 + $0x1e8] sm:$0xff]
    %v3296 = vld [vmem:[#allocation5 + $0x1f0] sm:$0xff]
    %v3297 = vld [vmem:[#allocation5 + $0x1f8] sm:$0xff]
    %v3362 = vunpack.c.l.b16 %v3234
    %v3363 = vunpack.c.h.b16 %v3234
    %v3364 = vunpack.c.l.b16 %v3235
    %v3365 = vunpack.c.h.b16 %v3235
    %v3366 = vunpack.c.l.b16 %v3236
    %v3367 = vunpack.c.h.b16 %v3236
    %v3368 = vunpack.c.l.b16 %v3237
    %v3369 = vunpack.c.h.b16 %v3237
    %v3370 = vunpack.c.l.b16 %v3238
    %v3371 = vunpack.c.h.b16 %v3238
    %v3372 = vunpack.c.l.b16 %v3239
    %v3373 = vunpack.c.h.b16 %v3239
    %v3374 = vunpack.c.l.b16 %v3240
    %v3375 = vunpack.c.h.b16 %v3240
    %v3376 = vunpack.c.l.b16 %v3241
    %v3377 = vunpack.c.h.b16 %v3241
    %v3378 = vunpack.c.l.b16 %v3242
    %v3379 = vunpack.c.h.b16 %v3242
    %v3380 = vunpack.c.l.b16 %v3243
    %v3381 = vunpack.c.h.b16 %v3243
    %v3382 = vunpack.c.l.b16 %v3244
    %v3383 = vunpack.c.h.b16 %v3244
    %v3384 = vunpack.c.l.b16 %v3245
    %v3385 = vunpack.c.h.b16 %v3245
    %v3386 = vunpack.c.l.b16 %v3246
    %v3387 = vunpack.c.h.b16 %v3246
    %v3388 = vunpack.c.l.b16 %v3247
    %v3389 = vunpack.c.h.b16 %v3247
    %v3390 = vunpack.c.l.b16 %v3248
    %v3391 = vunpack.c.h.b16 %v3248
    %v3392 = vunpack.c.l.b16 %v3249
    %v3393 = vunpack.c.h.b16 %v3249
    %v3394 = vunpack.c.l.b16 %v3250
    %v3395 = vunpack.c.h.b16 %v3250
    %v3396 = vunpack.c.l.b16 %v3251
    %v3397 = vunpack.c.h.b16 %v3251
    %v3398 = vunpack.c.l.b16 %v3252
    %v3399 = vunpack.c.h.b16 %v3252
    %v3400 = vunpack.c.l.b16 %v3253
    %v3401 = vunpack.c.h.b16 %v3253
    %v3402 = vunpack.c.l.b16 %v3254
    %v3403 = vunpack.c.h.b16 %v3254
    %v3404 = vunpack.c.l.b16 %v3255
    %v3405 = vunpack.c.h.b16 %v3255
    %v3406 = vunpack.c.l.b16 %v3256
    %v3407 = vunpack.c.h.b16 %v3256
    %v3408 = vunpack.c.l.b16 %v3257
    %v3409 = vunpack.c.h.b16 %v3257
    %v3410 = vunpack.c.l.b16 %v3258
    %v3411 = vunpack.c.h.b16 %v3258
    %v3412 = vunpack.c.l.b16 %v3259
    %v3413 = vunpack.c.h.b16 %v3259
    %v3414 = vunpack.c.l.b16 %v3260
    %v3415 = vunpack.c.h.b16 %v3260
    %v3416 = vunpack.c.l.b16 %v3261
    %v3417 = vunpack.c.h.b16 %v3261
    %v3418 = vunpack.c.l.b16 %v3262
    %v3419 = vunpack.c.h.b16 %v3262
    %v3420 = vunpack.c.l.b16 %v3263
    %v3421 = vunpack.c.h.b16 %v3263
    %v3422 = vunpack.c.l.b16 %v3264
    %v3423 = vunpack.c.h.b16 %v3264
    %v3424 = vunpack.c.l.b16 %v3265
    %v3425 = vunpack.c.h.b16 %v3265
    %v3426 = vunpack.c.l.b16 %v3266
    %v3427 = vunpack.c.h.b16 %v3266
    %v3428 = vunpack.c.l.b16 %v3267
    %v3429 = vunpack.c.h.b16 %v3267
    %v3430 = vunpack.c.l.b16 %v3268
    %v3431 = vunpack.c.h.b16 %v3268
    %v3432 = vunpack.c.l.b16 %v3269
    %v3433 = vunpack.c.h.b16 %v3269
    %v3434 = vunpack.c.l.b16 %v3270
    %v3435 = vunpack.c.h.b16 %v3270
    %v3436 = vunpack.c.l.b16 %v3271
    %v3437 = vunpack.c.h.b16 %v3271
    %v3438 = vunpack.c.l.b16 %v3272
    %v3439 = vunpack.c.h.b16 %v3272
    %v3440 = vunpack.c.l.b16 %v3273
    %v3441 = vunpack.c.h.b16 %v3273
    %v3442 = vunpack.c.l.b16 %v3274
    %v3443 = vunpack.c.h.b16 %v3274
    %v3444 = vunpack.c.l.b16 %v3275
    %v3445 = vunpack.c.h.b16 %v3275
    %v3446 = vunpack.c.l.b16 %v3276
    %v3447 = vunpack.c.h.b16 %v3276
    %v3448 = vunpack.c.l.b16 %v3277
    %v3449 = vunpack.c.h.b16 %v3277
    %v3450 = vunpack.c.l.b16 %v3278
    %v3451 = vunpack.c.h.b16 %v3278
    %v3452 = vunpack.c.l.b16 %v3279
    %v3453 = vunpack.c.h.b16 %v3279
    %v3454 = vunpack.c.l.b16 %v3280
    %v3455 = vunpack.c.h.b16 %v3280
    %v3456 = vunpack.c.l.b16 %v3281
    %v3457 = vunpack.c.h.b16 %v3281
    %v3458 = vunpack.c.l.b16 %v3282
    %v3459 = vunpack.c.h.b16 %v3282
    %v3460 = vunpack.c.l.b16 %v3283
    %v3461 = vunpack.c.h.b16 %v3283
    %v3462 = vunpack.c.l.b16 %v3284
    %v3463 = vunpack.c.h.b16 %v3284
    %v3464 = vunpack.c.l.b16 %v3285
    %v3465 = vunpack.c.h.b16 %v3285
    %v3466 = vunpack.c.l.b16 %v3286
    %v3467 = vunpack.c.h.b16 %v3286
    %v3468 = vunpack.c.l.b16 %v3287
    %v3469 = vunpack.c.h.b16 %v3287
    %v3470 = vunpack.c.l.b16 %v3288
    %v3471 = vunpack.c.h.b16 %v3288
    %v3472 = vunpack.c.l.b16 %v3289
    %v3473 = vunpack.c.h.b16 %v3289
    %v3474 = vunpack.c.l.b16 %v3290
    %v3475 = vunpack.c.h.b16 %v3290
    %v3476 = vunpack.c.l.b16 %v3291
    %v3477 = vunpack.c.h.b16 %v3291
    %v3478 = vunpack.c.l.b16 %v3292
    %v3479 = vunpack.c.h.b16 %v3292
    %v3480 = vunpack.c.l.b16 %v3293
    %v3481 = vunpack.c.h.b16 %v3293
    %v3482 = vunpack.c.l.b16 %v3294
    %v3483 = vunpack.c.h.b16 %v3294
    %v3484 = vunpack.c.l.b16 %v3295
    %v3485 = vunpack.c.h.b16 %v3295
    %v3486 = vunpack.c.l.b16 %v3296
    %v3487 = vunpack.c.h.b16 %v3296
    %v3488 = vunpack.c.l.b16 %v3297
    %v3489 = vunpack.c.h.b16 %v3297
    %v3490 = vpack.c.b16 %v3364, %v3362
    %v3491 = vpack.c.b16 %v3365, %v3363
    %v3492 = vpack.c.b16 %v3368, %v3366
    %v3493 = vpack.c.b16 %v3369, %v3367
    %v3494 = vpack.c.b16 %v3372, %v3370
    %v3495 = vpack.c.b16 %v3373, %v3371
    %v3496 = vpack.c.b16 %v3376, %v3374
    %v3497 = vpack.c.b16 %v3377, %v3375
    %v3498 = vpack.c.b16 %v3380, %v3378
    %v3499 = vpack.c.b16 %v3381, %v3379
    %v3500 = vpack.c.b16 %v3384, %v3382
    %v3501 = vpack.c.b16 %v3385, %v3383
    %v3502 = vpack.c.b16 %v3388, %v3386
    %v3503 = vpack.c.b16 %v3389, %v3387
    %v3504 = vpack.c.b16 %v3392, %v3390
    %v3505 = vpack.c.b16 %v3393, %v3391
    %v3506 = vpack.c.b16 %v3396, %v3394
    %v3507 = vpack.c.b16 %v3397, %v3395
    %v3508 = vpack.c.b16 %v3400, %v3398
    %v3509 = vpack.c.b16 %v3401, %v3399
    %v3510 = vpack.c.b16 %v3404, %v3402
    %v3511 = vpack.c.b16 %v3405, %v3403
    %v3512 = vpack.c.b16 %v3408, %v3406
    %v3513 = vpack.c.b16 %v3409, %v3407
    %v3514 = vpack.c.b16 %v3412, %v3410
    %v3515 = vpack.c.b16 %v3413, %v3411
    %v3516 = vpack.c.b16 %v3416, %v3414
    %v3517 = vpack.c.b16 %v3417, %v3415
    %v3518 = vpack.c.b16 %v3420, %v3418
    %v3519 = vpack.c.b16 %v3421, %v3419
    %v3520 = vpack.c.b16 %v3424, %v3422
    %v3521 = vpack.c.b16 %v3425, %v3423
    %v3522 = vpack.c.b16 %v3428, %v3426
    %v3523 = vpack.c.b16 %v3429, %v3427
    %v3524 = vpack.c.b16 %v3432, %v3430
    %v3525 = vpack.c.b16 %v3433, %v3431
    %v3526 = vpack.c.b16 %v3436, %v3434
    %v3527 = vpack.c.b16 %v3437, %v3435
    %v3528 = vpack.c.b16 %v3440, %v3438
    %v3529 = vpack.c.b16 %v3441, %v3439
    %v3530 = vpack.c.b16 %v3444, %v3442
    %v3531 = vpack.c.b16 %v3445, %v3443
    %v3532 = vpack.c.b16 %v3448, %v3446
    %v3533 = vpack.c.b16 %v3449, %v3447
    %v3534 = vpack.c.b16 %v3452, %v3450
    %v3535 = vpack.c.b16 %v3453, %v3451
    %v3536 = vpack.c.b16 %v3456, %v3454
    %v3537 = vpack.c.b16 %v3457, %v3455
    %v3538 = vpack.c.b16 %v3460, %v3458
    %v3539 = vpack.c.b16 %v3461, %v3459
    %v3540 = vpack.c.b16 %v3464, %v3462
    %v3541 = vpack.c.b16 %v3465, %v3463
    %v3542 = vpack.c.b16 %v3468, %v3466
    %v3543 = vpack.c.b16 %v3469, %v3467
    %v3544 = vpack.c.b16 %v3472, %v3470
    %v3545 = vpack.c.b16 %v3473, %v3471
    %v3546 = vpack.c.b16 %v3476, %v3474
    %v3547 = vpack.c.b16 %v3477, %v3475
    %v3548 = vpack.c.b16 %v3480, %v3478
    %v3549 = vpack.c.b16 %v3481, %v3479
    %v3550 = vpack.c.b16 %v3484, %v3482
    %v3551 = vpack.c.b16 %v3485, %v3483
    %v3552 = vpack.c.b16 %v3488, %v3486
    %v3553 = vpack.c.b16 %v3489, %v3487
    %3618 = vmatprep.subr.bf16.mxu0 %v3491
    %3619 = vmatpush1.bf16.msra.mxu0 %v3490
    %3620 = vmatprep.subr.bf16.mxu0 %v3493
    %3621 = vmatpush1.bf16.msra.mxu0 %v3492
    %3622 = vmatprep.subr.bf16.mxu0 %v3495
    %3623 = vmatpush1.bf16.msra.mxu0 %v3494
    %3624 = vmatprep.subr.bf16.mxu0 %v3497
    %3625 = vmatpush1.bf16.msra.mxu0 %v3496
    %3626 = vmatprep.subr.bf16.mxu0 %v3499
    %3627 = vmatpush1.bf16.msra.mxu0 %v3498
    %3628 = vmatprep.subr.bf16.mxu0 %v3501
    %3629 = vmatpush1.bf16.msra.mxu0 %v3500
    %3630 = vmatprep.subr.bf16.mxu0 %v3503
    %3631 = vmatpush1.bf16.msra.mxu0 %v3502
    %3632 = vmatprep.subr.bf16.mxu0 %v3505
    %3633 = vmatpush1.bf16.msra.mxu0 %v3504
    %3634 = vmatprep.subr.bf16.mxu0 %v3507
    %3635 = vmatpush1.bf16.msra.mxu0 %v3506
    %3636 = vmatprep.subr.bf16.mxu0 %v3509
    %3637 = vmatpush1.bf16.msra.mxu0 %v3508
    %3638 = vmatprep.subr.bf16.mxu0 %v3511
    %3639 = vmatpush1.bf16.msra.mxu0 %v3510
    %3640 = vmatprep.subr.bf16.mxu0 %v3513
    %3641 = vmatpush1.bf16.msra.mxu0 %v3512
    %3642 = vmatprep.subr.bf16.mxu0 %v3515
    %3643 = vmatpush1.bf16.msra.mxu0 %v3514
    %3644 = vmatprep.subr.bf16.mxu0 %v3517
    %3645 = vmatpush1.bf16.msra.mxu0 %v3516
    %3646 = vmatprep.subr.bf16.mxu0 %v3519
    %3647 = vmatpush1.bf16.msra.mxu0 %v3518
    %3648 = vmatprep.subr.bf16.mxu0 %v3521
    %3649 = vmatpush1.bf16.msra.mxu0 %v3520
    %3650 = vmatprep.mubr.bf16.mxu0 %v3231
    %3651 = vmatmul.mubr.bf16.gmra.mrb[0].mxu0 %v3230
    %v3652 = vpop.f32.mrb[0].mxu0
    %v3653 = vadd.f32 0.0, %v3652
    %v3654 = vpop.f32.mrb[0].mxu0
    %v3655 = vadd.f32 0.0, %v3654
    %v3656 = vpop.f32.mrb[0].mxu0
    %v3657 = vpop.f32.mrb[0].mxu0
    %3658 = vdwg.mxu0
    %3659 = vmatprep.subr.bf16.mxu0 %v3523
    %3660 = vmatpush1.bf16.msra.mxu0 %v3522
    %3661 = vmatprep.subr.bf16.mxu0 %v3525
    %3662 = vmatpush1.bf16.msra.mxu0 %v3524
    %3663 = vmatprep.subr.bf16.mxu0 %v3527
    %3664 = vmatpush1.bf16.msra.mxu0 %v3526
    %3665 = vmatprep.subr.bf16.mxu0 %v3529
    %3666 = vmatpush1.bf16.msra.mxu0 %v3528
    %3667 = vmatprep.subr.bf16.mxu0 %v3531
    %3668 = vmatpush1.bf16.msra.mxu0 %v3530
    %3669 = vmatprep.subr.bf16.mxu0 %v3533
    %3670 = vmatpush1.bf16.msra.mxu0 %v3532
    %3671 = vmatprep.subr.bf16.mxu0 %v3535
    %3672 = vmatpush1.bf16.msra.mxu0 %v3534
    %3673 = vmatprep.subr.bf16.mxu0 %v3537
    %3674 = vmatpush1.bf16.msra.mxu0 %v3536
    %3675 = vmatprep.subr.bf16.mxu0 %v3539
    %3676 = vmatpush1.bf16.msra.mxu0 %v3538
    %3677 = vmatprep.subr.bf16.mxu0 %v3541
    %3678 = vmatpush1.bf16.msra.mxu0 %v3540
    %3679 = vmatprep.subr.bf16.mxu0 %v3543
    %3680 = vmatpush1.bf16.msra.mxu0 %v3542
    %3681 = vmatprep.subr.bf16.mxu0 %v3545
    %3682 = vmatpush1.bf16.msra.mxu0 %v3544
    %3683 = vmatprep.subr.bf16.mxu0 %v3547
    %3684 = vmatpush1.bf16.msra.mxu0 %v3546
    %3685 = vmatprep.subr.bf16.mxu0 %v3549
    %3686 = vmatpush1.bf16.msra.mxu0 %v3548
    %3687 = vmatprep.subr.bf16.mxu0 %v3551
    %3688 = vmatpush1.bf16.msra.mxu0 %v3550
    %3689 = vmatprep.subr.bf16.mxu0 %v3553
    %3690 = vmatpush1.bf16.msra.mxu0 %v3552
    %3691 = vmatprep.mubr.bf16.mxu0 %v3233
    %3692 = vmatmul.mubr.bf16.gmra.mrb[0].mxu0 %v3232
    %v3693 = vpop.f32.mrb[0].mxu0
    %v3694 = vadd.f32 %v3653, %v3693
    %v3695 = vpop.f32.mrb[0].mxu0
    %v3696 = vadd.f32 %v3655, %v3695
    %v3697 = vpop.f32.mrb[0].mxu0
    %v3698 = vpop.f32.mrb[0].mxu0
    %3699 = vdwg.mxu0
    %v3700 = vadd.f32 %v2688, %v3694
    %v3701 = vadd.f32 %v2689, %v3696
    %v3703 = vlaneseq
    %v3704 = vshrl.u32 %v3703, 7
    %v3705 = vsub.s32 0, %v3704
    %v3706 = vrot.slane %v74, %v3705
    %v3707 = vlaneseq
    %v3708 = vshrl.u32 %v3707, 7
    %v3709 = vsub.s32 1, %v3708
    %v3710 = vrot.slane %v74, %v3709
    %v3713 = vadd.f32 %v3700, %v3706
    %v3714 = vadd.f32 %v3701, %v3710
    %v3715 = vsel %vm1239, %v3713, 0.0
    %v3716 = vsel %vm1239, %v3714, 0.0
    %v3717 = vadd.f32 %v3715, %v3716
    %3718 = vadd.xlane.f32.xlu0 %v3717
    %v3719 = vpop.xlane.xlu0 %3718
    %v3720 = vmul.f32 %v3719, %v2695
    %v3721 = vsub.f32 %v3713, %v3720
    %v3722 = vsub.f32 %v3714, %v3720
    %v3723 = vmul.f32 %v3721, %v3721
    %v3724 = vmul.f32 %v3722, %v3722
    %v3725 = vsel %vm1239, %v3723, 0.0
    %v3726 = vsel %vm1239, %v3724, 0.0
    %v3727 = vadd.f32 %v3725, %v3726
    %3728 = vadd.xlane.f32.xlu0 %v3727
    %v3729 = vpop.xlane.xlu0 %3728
    %v3730 = vmul.f32 %v3729, %v2695
    %v3731 = vadd.f32 %v3730, 1e-05
    %v3732 = vrsqrt.pop %v3731
    %v3733 = vmul.f32 %v3721, %v3732
    %v3734 = vmul.f32 %v3722, %v3732
    %v3736 = vlaneseq
    %v3737 = vshrl.u32 %v3736, 7
    %v3738 = vsub.s32 0, %v3737
    %v3739 = vrot.slane %v76, %v3738
    %v3740 = vlaneseq
    %v3741 = vshrl.u32 %v3740, 7
    %v3742 = vsub.s32 1, %v3741
    %v3743 = vrot.slane %v76, %v3742
    %v3746 = vmul.f32 %v3733, %v3739
    %v3747 = vmul.f32 %v3734, %v3743
    %v3749 = vlaneseq
    %v3750 = vshrl.u32 %v3749, 7
    %v3751 = vsub.s32 0, %v3750
    %v3752 = vrot.slane %v78, %v3751
    %v3753 = vlaneseq
    %v3754 = vshrl.u32 %v3753, 7
    %v3755 = vsub.s32 1, %v3754
    %v3756 = vrot.slane %v78, %v3755
    %v3759 = vadd.f32 %v3746, %v3752
    %v3760 = vadd.f32 %v3747, %v3756
    %v3763 = vcombine.low %v3759, %v3760
    %v3765 = vunpack.c.l.s4 1983009808
    %v3766 = vunpack.c.0.s8 %v3765
    %v3767 = vlaneseq
    %v3768 = vshrl.u32 %v3767, 7
    %v3769 = vsub.s32 %v3766, %v3768
    %v3770 = vrot.slane %v3763, %v3769
    %3772 = vst [vmem:[#allocation7] sm:$0xf] %v3770
    %3773 = vst [vmem:[#allocation7 + $0x4] sm:$0x3] %v1608
    // Predicated region
    $region30: #{feature_extractor.1} parent=1 // pred_check
      _
    $region31: #{feature_extractor.1} parent=1 // pred_check_branch
      %3775 = sbr.rel (0) target = $region33
    $region32: #{feature_extractor.1} parent=1 // pred_region
      %s3777 = ssub.s32 96, 96
      %3778 = vsyncadd [#allocation4], %s3777
      %s3780 = sshll.u32 [#allocation7], 4
      %s3781 = int_to_ptr.vmem [resolvable:$true] %s3780
      %3783 = dma.vmem_to_hbm [thread:$0]  %s3781, 96, %s5, [#allocation4]
    $region33: #{feature_extractor.1} parent=1 // pred_fallthru
      _
    // Predicated region
    $region34: #{feature_extractor.1} parent=1 // pred_check
      _
    $region35: #{feature_extractor.1} parent=1 // pred_check_branch
      %3785 = sbr.rel (0) target = $region37
    $region36: #{feature_extractor.1} parent=1 // pred_region
      %3786 = dma.done [#allocation4], 96
    $region37: #{feature_extractor.1} parent=1 // pred_fallthru
      _
    %3787 = vsyncpa [#allocation3], 1
    %3788 = vsyncpa [#allocation6], 1
    %3789 = vsyncpa [#allocation4], 1

</llo_original>
